<compile_context>
chip_gen: v6e
topology: v6e:2x2x1
jax: 0.10.0
libtpu: 0.0.40
codegen_flags: <defaults>
</compile_context>

<pallas_src>
import math

import jax
import jax.numpy as jnp
from jax.experimental import pallas as pl
from jax.experimental.pallas import tpu as pltpu

# ----------------- small hyper-params consistent with the module -----------------
B = 2             # batch
S = 8             # hubert frame count (seq_len)
D = 32            # config.embedding_dim (768 in the original)
NHEAD = 4         # TransformerEncoderLayer nhead (8 originally; must divide D)
HEAD_DIM = D // NHEAD
FF = 64           # dim_feedforward (1536 originally)
K = 16            # config.kmeans_n_clusters (512 originally)
VOCAB = 16        # vocab_size
NUM_LAYERS = 2    # nn.TransformerEncoder num_layers
LN_EPS = 1e-5     # PyTorch LayerNorm default eps
MAX_LEN = 64      # PositionalEncoding max_len (10000 originally)


# ------------------------------- in-kernel helpers --------------------------------
def _layer_norm(x, gamma, beta):
    mu = jnp.mean(x, axis=-1, keepdims=True)
    var = jnp.mean((x - mu) ** 2, axis=-1, keepdims=True)
    return (x - mu) * jax.lax.rsqrt(var + LN_EPS) * gamma + beta


# ----------------------------- fused forward kernel --------------------------------
def _fused_forward_kernel(
    f_ref, ct_ref, cn_ref, emb_ref, pe_ref,
    # encoder layer 0
    wqkv0_ref, bqkv0_ref, wo0_ref, w10_ref, b10_ref, w20_ref, vec0_ref,
    # encoder layer 1
    wqkv1_ref, bqkv1_ref, wo1_ref, w11_ref, b11_ref, w21_ref, vec1_ref,
    # output head
    wa_ref, wb_ref, bb_ref, hvec_ref,
    # output
    o_ref,
    # scratch
    ctx_ref,
):
    # ---- 1) k-means predict (nearest centroid, lowest-index tie-break) + embedding ----
    f = f_ref[...]                                                        # [N, D], N = B*S
    # expanded squared distance; ||f||^2 is constant per row and dropped for the argmin
    dist = cn_ref[...] - 2.0 * jnp.dot(f, ct_ref[...],
                                       preferred_element_type=jnp.float32)       # [N, K]
    dmin = jnp.min(dist, axis=-1, keepdims=True)
    col = jax.lax.broadcasted_iota(jnp.int32, dist.shape, 1)
    idx = jnp.min(jnp.where(dist <= dmin, col, K), axis=-1, keepdims=True)        # [N, 1]
    onehot = (col == idx).astype(jnp.float32)                                     # [N, K]
    # self.eembedding(quant_indices) as a one-hot matmul
    x = jnp.dot(onehot, emb_ref[...], preferred_element_type=jnp.float32)         # [N, D]

    # ---- 2) 2x post-LN TransformerEncoderLayer (static unroll over layers) ----
    scale = 1.0 / math.sqrt(HEAD_DIM)
    layer_refs = (
        (wqkv0_ref, bqkv0_ref, wo0_ref, w10_ref, b10_ref, w20_ref, vec0_ref),
        (wqkv1_ref, bqkv1_ref, wo1_ref, w11_ref, b11_ref, w21_ref, vec1_ref),
    )
    for wqkv_r, bqkv_r, wo_r, w1_r, b1_r, w2_r, vec_r in layer_refs:
        vec = vec_r[...]                      # [6, D]: bo, ln1_g, ln1_b, b2, ln2_g, ln2_b
        # fused Q/K/V projection over all B*S rows: one [N,D] @ [D,3D] matmul
        qkv = jnp.dot(x, wqkv_r[...], preferred_element_type=jnp.float32) + bqkv_r[...]
        # attention is per-batch (no cross-batch mixing): static 2-iteration loop
        for b in range(B):
            rows = slice(b * S, (b + 1) * S)
            q_b = qkv[rows, 0:D]
            k_b = qkv[rows, D:2 * D]
            v_b = qkv[rows, 2 * D:3 * D]
            for h in range(NHEAD):                                  # static unroll over heads
                cs = slice(h * HEAD_DIM, (h + 1) * HEAD_DIM)
                qh, kh, vh = q_b[:, cs], k_b[:, cs], v_b[:, cs]
                s = jax.lax.dot_general(qh, kh, (((1,), (1,)), ((), ())),
                                        preferred_element_type=jnp.float32) * scale  # q @ k^T
                s = s - jnp.max(s, axis=-1, keepdims=True)
                p = jnp.exp(s)
                p = p * pl.reciprocal(jnp.sum(p, axis=-1, keepdims=True), approx=True)
                ctx_ref[b * S:(b + 1) * S, h * HEAD_DIM:(h + 1) * HEAD_DIM] = jnp.dot(
                    p, vh, preferred_element_type=jnp.float32)
        # concat(heads) @ Wo^T as one [N,D] @ [D,D] matmul on the assembled context
        attn_out = jnp.dot(ctx_ref[...], wo_r[...],
                           preferred_element_type=jnp.float32) + vec[0:1]
        # dropout(p=0.1) layers are identity in eval mode
        x1 = _layer_norm(x + attn_out, vec[1:2], vec[2:3])
        ff = jnp.maximum(
            jnp.dot(x1, w1_r[...], preferred_element_type=jnp.float32) + b1_r[...], 0.0)  # ReLU
        ff = jnp.dot(ff, w2_r[...], preferred_element_type=jnp.float32) + vec[3:4]
        x = _layer_norm(x1 + ff, vec[4:5], vec[5:6])

    # ---- 3) positional encoding (applied AFTER the encoder, as in the module) + head ----
    hvec = hvec_ref[...]                                   # [3, D]: ba, ln_g, ln_b
    xp = x + pe_ref[...]                                   # self.positional_encoding(encoded)
    h = jnp.dot(xp, wa_ref[...], preferred_element_type=jnp.float32) + hvec[0:1]
    h = 0.5 * h * (1.0 + jax.lax.erf(h * (1.0 / math.sqrt(2.0))))   # exact GELU (nn.GELU default)
    h = _layer_norm(h, hvec[1:2], hvec[2:3])
    logits = jnp.dot(h, wb_ref[...], preferred_element_type=jnp.float32) + bb_ref[...]  # [N, V]
    m = jnp.max(logits, axis=-1, keepdims=True)
    lse = jnp.log(jnp.sum(jnp.exp(logits - m), axis=-1, keepdims=True)) + m
    o_ref[...] = logits - lse                               # F.log_softmax(logits, -1)


# ---------------------------------- forward ---------------------------------------
def kmeans_ctc_asr_forward(features, fused):
    b, s, d = features.shape
    n = b * s
    feats_flat = features.reshape(n, d)                    # features.reshape(-1, feat_dim)
    inputs = [feats_flat, fused['centroids_t'], fused['c_norms'],
              fused['emb_table'], fused['pe_tiled']]
    for lp in fused['layers']:
        inputs += [lp['wqkv'], lp['bqkv'], lp['wo_t'], lp['w1_t'],
                   lp['b1'], lp['w2_t'], lp['vecs']]
    hp = fused['head']
    inputs += [hp['wa_t'], hp['wb_t'], hp['bb'], hp['vecs']]

    log_probs_flat = pl.pallas_call(
        _fused_forward_kernel,
        out_shape=jax.ShapeDtypeStruct((n, VOCAB), jnp.float32),
        scratch_shapes=[pltpu.VMEM((n, d), jnp.float32)],   # per-head context assembly
    )(*inputs)
    return log_probs_flat.reshape(b, s, VOCAB)


# ------------------------------- parameter setup ----------------------------------
def positional_encoding_table(max_len, d_model):
    position = jnp.arange(max_len, dtype=jnp.float32)[:, None]
    div_term = jnp.exp(jnp.arange(0, d_model, 2, dtype=jnp.float32)
                       * (-math.log(10000.0) / d_model))
    pe = jnp.zeros((max_len, d_model), jnp.float32)
    pe = pe.at[:, 0::2].set(jnp.sin(position * div_term))
    pe = pe.at[:, 1::2].set(jnp.cos(position * div_term))
    return pe


def init_params(key):
    keys = jax.random.split(key, 16)

    def w(k, shape, scale=0.02):
        return (scale * jax.random.normal(k, shape)).astype(jnp.float32)

    params = {
        'centroids': w(keys[0], (K, D), 1.0),   # quantizer.cluster_centers_
        'emb_table': w(keys[1], (K, D), 1.0),   # nn.Embedding(kmeans_n_clusters, embedding_dim)
        'pe': positional_encoding_table(MAX_LEN, D),
    }
    layers = []
    for l in range(NUM_LAYERS):
        lk = jax.random.split(keys[2 + l], 6)
        layers.append(dict(
            wq=w(lk[0], (D, D)), wk=w(lk[1], (D, D)), wv=w(lk[2], (D, D)),
            bq=jnp.zeros((1, D), jnp.float32), bk=jnp.zeros((1, D), jnp.float32),
            bv=jnp.zeros((1, D), jnp.float32),
            wo=w(lk[3], (D, D)), bo=jnp.zeros((1, D), jnp.float32),
            ln1_g=jnp.ones((1, D), jnp.float32), ln1_b=jnp.zeros((1, D), jnp.float32),
            w1=w(lk[4], (FF, D)), b1=jnp.zeros((1, FF), jnp.float32),
            w2=w(lk[5], (D, FF)), b2=jnp.zeros((1, D), jnp.float32),
            ln2_g=jnp.ones((1, D), jnp.float32), ln2_b=jnp.zeros((1, D), jnp.float32),
        ))
    params['encoder_layers'] = layers
    params['head'] = dict(
        wa=w(keys[8], (D, D)), ba=jnp.zeros((1, D), jnp.float32),
        ln_g=jnp.ones((1, D), jnp.float32), ln_b=jnp.zeros((1, D), jnp.float32),
        wb=w(keys[9], (VOCAB, D)), bb=jnp.zeros((1, VOCAB), jnp.float32),
    )
    return params


def prepare_fused_params(params, batch, seq_len):
    """Host-side one-time prep: pre-transpose / fuse weights so the kernel has no `.T`,
    precompute centroid norms, pack tiny bias/gamma/beta vectors, and pre-tile the PE."""
    c = params['centroids']
    fused = {
        'centroids_t': c.T,                                  # [D, K]
        'c_norms': jnp.sum(c * c, axis=-1)[None, :],         # [1, K] precomputed ||c||^2
        'emb_table': params['emb_table'],                    # [K, D]
        'pe_tiled': jnp.tile(params['pe'][:seq_len], (batch, 1)),   # [B*S, D]
    }
    layers = []
    for lp in params['encoder_layers']:
        layers.append(dict(
            wqkv=jnp.concatenate([lp['wq'], lp['wk'], lp['wv']], axis=0).T,   # [D, 3D]
            bqkv=jnp.concatenate([lp['bq'], lp['bk'], lp['bv']], axis=1),     # [1, 3D]
            wo_t=lp['wo'].T,                                                  # [D, D]
            w1_t=lp['w1'].T,                                                  # [D, FF]
            b1=lp['b1'],                                                      # [1, FF]
            w2_t=lp['w2'].T,                                                  # [FF, D]
            vecs=jnp.concatenate([lp['bo'], lp['ln1_g'], lp['ln1_b'],
                                  lp['b2'], lp['ln2_g'], lp['ln2_b']], axis=0),  # [6, D]
        ))
    fused['layers'] = layers
    hp = params['head']
    fused['head'] = dict(
        wa_t=hp['wa'].T,                                                      # [D, D]
        wb_t=hp['wb'].T,                                                      # [D, VOCAB]
        bb=hp['bb'],                                                          # [1, VOCAB]
        vecs=jnp.concatenate([hp['ba'], hp['ln_g'], hp['ln_b']], axis=0),     # [3, D]
    )
    return fused


# ------------------------------------ main -----------------------------------------
if __name__ == "__main__":
    key = jax.random.PRNGKey(0)
    pkey, fkey = jax.random.split(key)
    params = init_params(pkey)
    fused = prepare_fused_params(params, B, S)
    # synthetic hubert last_hidden_state features
    features = jax.random.normal(fkey, (B, S, D), dtype=jnp.float32)

    log_probs = jax.jit(kmeans_ctc_asr_forward)(features, fused)
    log_probs = jax.block_until_ready(log_probs)
    assert log_probs.shape == (B, S, VOCAB)
    assert log_probs.dtype == jnp.float32
    print("KERNEL_OK")
</pallas_src>

<mosaic_0001>
module attributes {stable_mosaic.version = 11 : i64} {
  func.func @_fused_forward_kernel(%arg0: memref<16x32xf32, #tpu.memory_space<vmem>>, %arg1: memref<32x16xf32, #tpu.memory_space<vmem>>, %arg2: memref<1x16xf32, #tpu.memory_space<vmem>>, %arg3: memref<16x32xf32, #tpu.memory_space<vmem>>, %arg4: memref<16x32xf32, #tpu.memory_space<vmem>>, %arg5: memref<32x96xf32, #tpu.memory_space<vmem>>, %arg6: memref<1x96xf32, #tpu.memory_space<vmem>>, %arg7: memref<32x32xf32, #tpu.memory_space<vmem>>, %arg8: memref<32x64xf32, #tpu.memory_space<vmem>>, %arg9: memref<1x64xf32, #tpu.memory_space<vmem>>, %arg10: memref<64x32xf32, #tpu.memory_space<vmem>>, %arg11: memref<6x32xf32, #tpu.memory_space<vmem>>, %arg12: memref<32x96xf32, #tpu.memory_space<vmem>>, %arg13: memref<1x96xf32, #tpu.memory_space<vmem>>, %arg14: memref<32x32xf32, #tpu.memory_space<vmem>>, %arg15: memref<32x64xf32, #tpu.memory_space<vmem>>, %arg16: memref<1x64xf32, #tpu.memory_space<vmem>>, %arg17: memref<64x32xf32, #tpu.memory_space<vmem>>, %arg18: memref<6x32xf32, #tpu.memory_space<vmem>>, %arg19: memref<32x32xf32, #tpu.memory_space<vmem>>, %arg20: memref<32x16xf32, #tpu.memory_space<vmem>>, %arg21: memref<1x16xf32, #tpu.memory_space<vmem>>, %arg22: memref<3x32xf32, #tpu.memory_space<vmem>>, %arg23: memref<16x16xf32, #tpu.memory_space<vmem>>, %arg24: memref<16x32xf32, #tpu.memory_space<vmem>>) attributes {dimension_semantics = [], scalar_prefetch = 0 : i64, scratch_operands = 1 : i64, tpu.core_type = #tpu.core_type<tc>} {
    %c0 = arith.constant 0 : index
    %c0_0 = arith.constant 0 : index
    %0 = vector.load %arg0[%c0, %c0_0] : memref<16x32xf32, #tpu.memory_space<vmem>>, vector<16x32xf32>
    %c0_1 = arith.constant 0 : index
    %c0_2 = arith.constant 0 : index
    %1 = vector.load %arg2[%c0_1, %c0_2] : memref<1x16xf32, #tpu.memory_space<vmem>>, vector<1x16xf32>
    %c0_3 = arith.constant 0 : index
    %c0_4 = arith.constant 0 : index
    %2 = vector.load %arg1[%c0_3, %c0_4] : memref<32x16xf32, #tpu.memory_space<vmem>>, vector<32x16xf32>
    %cst = arith.constant dense<0.000000e+00> : vector<16x16xf32>
    %3 = tpu.matmul %0, %2, %cst {dimension_numbers = #tpu.dot_dimension_numbers<[1], [0], [0], [1], [0, 0, 1, 1], [], []>} : vector<16x32xf32>, vector<32x16xf32>, vector<16x16xf32> -> vector<16x16xf32>
    %cst_5 = arith.constant 2.000000e+00 : f32
    %4 = vector.broadcast %cst_5 : f32 to vector<16x16xf32>
    %5 = arith.mulf %4, %3 : vector<16x16xf32>
    %6 = vector.broadcast %1 : vector<1x16xf32> to vector<16x16xf32>
    %7 = arith.subf %6, %5 : vector<16x16xf32>
    %cst_6 = arith.constant dense<0x7F800000> : vector<16xf32>
    %8 = vector.multi_reduction <minimumf>, %7, %cst_6 [1] : vector<16x16xf32> to vector<16xf32>
    %9 = vector.shape_cast %8 : vector<16xf32> to vector<16x1xf32>
    %10 = tpu.iota {dimensions = array<i32: 1>} : vector<16x16xi32>
    %11 = vector.broadcast %9 : vector<16x1xf32> to vector<16x16xf32>
    %12 = arith.cmpf ole, %7, %11 : vector<16x16xf32>
    %c16_i32 = arith.constant 16 : i32
    %13 = vector.broadcast %c16_i32 : i32 to vector<16x16xi32>
    %14 = arith.select %12, %10, %13 : vector<16x16xi1>, vector<16x16xi32>
    %cst_7 = arith.constant dense<2147483647> : vector<16xi32>
    %15 = vector.multi_reduction <minsi>, %14, %cst_7 [1] : vector<16x16xi32> to vector<16xi32>
    %16 = vector.shape_cast %15 : vector<16xi32> to vector<16x1xi32>
    %17 = vector.broadcast %16 : vector<16x1xi32> to vector<16x16xi32>
    %18 = arith.cmpi eq, %10, %17 : vector<16x16xi32>
    %19 = arith.extui %18 : vector<16x16xi1> to vector<16x16xi32>
    %20 = arith.sitofp %19 : vector<16x16xi32> to vector<16x16xf32>
    %c0_8 = arith.constant 0 : index
    %c0_9 = arith.constant 0 : index
    %21 = vector.load %arg3[%c0_8, %c0_9] : memref<16x32xf32, #tpu.memory_space<vmem>>, vector<16x32xf32>
    %cst_10 = arith.constant dense<0.000000e+00> : vector<16x32xf32>
    %22 = tpu.matmul %20, %21, %cst_10 {dimension_numbers = #tpu.dot_dimension_numbers<[1], [0], [0], [1], [0, 0, 1, 1], [], []>} : vector<16x16xf32>, vector<16x32xf32>, vector<16x32xf32> -> vector<16x32xf32>
    %c0_11 = arith.constant 0 : index
    %c0_12 = arith.constant 0 : index
    %23 = vector.load %arg11[%c0_11, %c0_12] : memref<6x32xf32, #tpu.memory_space<vmem>>, vector<6x32xf32>
    %c0_13 = arith.constant 0 : index
    %c0_14 = arith.constant 0 : index
    %24 = vector.load %arg5[%c0_13, %c0_14] : memref<32x96xf32, #tpu.memory_space<vmem>>, vector<32x96xf32>
    %cst_15 = arith.constant dense<0.000000e+00> : vector<16x96xf32>
    %25 = tpu.matmul %22, %24, %cst_15 {dimension_numbers = #tpu.dot_dimension_numbers<[1], [0], [0], [1], [0, 0, 1, 1], [], []>} : vector<16x32xf32>, vector<32x96xf32>, vector<16x96xf32> -> vector<16x96xf32>
    %c0_16 = arith.constant 0 : index
    %c0_17 = arith.constant 0 : index
    %26 = vector.load %arg6[%c0_16, %c0_17] : memref<1x96xf32, #tpu.memory_space<vmem>>, vector<1x96xf32>
    %27 = vector.broadcast %26 : vector<1x96xf32> to vector<16x96xf32>
    %28 = arith.addf %25, %27 : vector<16x96xf32>
    %29 = vector.extract_strided_slice %28 {offsets = [0, 0], sizes = [8, 32], strides = [1, 1]} : vector<16x96xf32> to vector<8x32xf32>
    %30 = vector.extract_strided_slice %28 {offsets = [0, 32], sizes = [8, 32], strides = [1, 1]} : vector<16x96xf32> to vector<8x32xf32>
    %31 = vector.extract_strided_slice %28 {offsets = [0, 64], sizes = [8, 32], strides = [1, 1]} : vector<16x96xf32> to vector<8x32xf32>
    %32 = vector.extract_strided_slice %29 {offsets = [0, 0], sizes = [8, 8], strides = [1, 1]} : vector<8x32xf32> to vector<8x8xf32>
    %33 = vector.extract_strided_slice %30 {offsets = [0, 0], sizes = [8, 8], strides = [1, 1]} : vector<8x32xf32> to vector<8x8xf32>
    %34 = vector.extract_strided_slice %31 {offsets = [0, 0], sizes = [8, 8], strides = [1, 1]} : vector<8x32xf32> to vector<8x8xf32>
    %cst_18 = arith.constant dense<0.000000e+00> : vector<8x8xf32>
    %35 = tpu.matmul %32, %33, %cst_18 {dimension_numbers = #tpu.dot_dimension_numbers<[1], [1], [0], [0], [0, 0, 1, 0], [], []>} : vector<8x8xf32>, vector<8x8xf32>, vector<8x8xf32> -> vector<8x8xf32>
    %cst_19 = arith.constant 0.353553385 : f32
    %36 = vector.broadcast %cst_19 : f32 to vector<8x8xf32>
    %37 = arith.mulf %35, %36 : vector<8x8xf32>
    %cst_20 = arith.constant dense<0xFF800000> : vector<8xf32>
    %38 = vector.multi_reduction <maximumf>, %37, %cst_20 [1] : vector<8x8xf32> to vector<8xf32>
    %39 = vector.shape_cast %38 : vector<8xf32> to vector<8x1xf32>
    %40 = vector.broadcast %39 : vector<8x1xf32> to vector<8x8xf32>
    %41 = arith.subf %37, %40 : vector<8x8xf32>
    %42 = math.exp %41 : vector<8x8xf32>
    %cst_21 = arith.constant dense<0.000000e+00> : vector<8xf32>
    %43 = vector.multi_reduction <add>, %42, %cst_21 [1] : vector<8x8xf32> to vector<8xf32>
    %44 = vector.shape_cast %43 : vector<8xf32> to vector<8x1xf32>
    %45 = tpu.reciprocal %44 {approx = true} : vector<8x1xf32> -> vector<8x1xf32>
    %46 = vector.broadcast %45 : vector<8x1xf32> to vector<8x8xf32>
    %47 = arith.mulf %42, %46 : vector<8x8xf32>
    %cst_22 = arith.constant dense<0.000000e+00> : vector<8x8xf32>
    %48 = tpu.matmul %47, %34, %cst_22 {dimension_numbers = #tpu.dot_dimension_numbers<[1], [0], [0], [1], [0, 0, 1, 1], [], []>} : vector<8x8xf32>, vector<8x8xf32>, vector<8x8xf32> -> vector<8x8xf32>
    %c0_23 = arith.constant 0 : index
    %c0_24 = arith.constant 0 : index
    %49 = vector.load %arg24[%c0_23, %c0_24] : memref<16x32xf32, #tpu.memory_space<vmem>>, vector<8x8xf32>
    tpu.vector_store %arg24[%c0_23, %c0_24], %48 {strides = array<i32>} : memref<16x32xf32, #tpu.memory_space<vmem>>, vector<8x8xf32>,
    %50 = vector.extract_strided_slice %29 {offsets = [0, 8], sizes = [8, 8], strides = [1, 1]} : vector<8x32xf32> to vector<8x8xf32>
    %51 = vector.extract_strided_slice %30 {offsets = [0, 8], sizes = [8, 8], strides = [1, 1]} : vector<8x32xf32> to vector<8x8xf32>
    %52 = vector.extract_strided_slice %31 {offsets = [0, 8], sizes = [8, 8], strides = [1, 1]} : vector<8x32xf32> to vector<8x8xf32>
    %cst_25 = arith.constant dense<0.000000e+00> : vector<8x8xf32>
    %53 = tpu.matmul %50, %51, %cst_25 {dimension_numbers = #tpu.dot_dimension_numbers<[1], [1], [0], [0], [0, 0, 1, 0], [], []>} : vector<8x8xf32>, vector<8x8xf32>, vector<8x8xf32> -> vector<8x8xf32>
    %cst_26 = arith.constant 0.353553385 : f32
    %54 = vector.broadcast %cst_26 : f32 to vector<8x8xf32>
    %55 = arith.mulf %53, %54 : vector<8x8xf32>
    %cst_27 = arith.constant dense<0xFF800000> : vector<8xf32>
    %56 = vector.multi_reduction <maximumf>, %55, %cst_27 [1] : vector<8x8xf32> to vector<8xf32>
    %57 = vector.shape_cast %56 : vector<8xf32> to vector<8x1xf32>
    %58 = vector.broadcast %57 : vector<8x1xf32> to vector<8x8xf32>
    %59 = arith.subf %55, %58 : vector<8x8xf32>
    %60 = math.exp %59 : vector<8x8xf32>
    %cst_28 = arith.constant dense<0.000000e+00> : vector<8xf32>
    %61 = vector.multi_reduction <add>, %60, %cst_28 [1] : vector<8x8xf32> to vector<8xf32>
    %62 = vector.shape_cast %61 : vector<8xf32> to vector<8x1xf32>
    %63 = tpu.reciprocal %62 {approx = true} : vector<8x1xf32> -> vector<8x1xf32>
    %64 = vector.broadcast %63 : vector<8x1xf32> to vector<8x8xf32>
    %65 = arith.mulf %60, %64 : vector<8x8xf32>
    %cst_29 = arith.constant dense<0.000000e+00> : vector<8x8xf32>
    %66 = tpu.matmul %65, %52, %cst_29 {dimension_numbers = #tpu.dot_dimension_numbers<[1], [0], [0], [1], [0, 0, 1, 1], [], []>} : vector<8x8xf32>, vector<8x8xf32>, vector<8x8xf32> -> vector<8x8xf32>
    %c0_30 = arith.constant 0 : index
    %c8 = arith.constant 8 : index
    %67 = vector.load %arg24[%c0_30, %c8] : memref<16x32xf32, #tpu.memory_space<vmem>>, vector<8x8xf32>
    tpu.vector_store %arg24[%c0_30, %c8], %66 {strides = array<i32>} : memref<16x32xf32, #tpu.memory_space<vmem>>, vector<8x8xf32>,
    %68 = vector.extract_strided_slice %29 {offsets = [0, 16], sizes = [8, 8], strides = [1, 1]} : vector<8x32xf32> to vector<8x8xf32>
    %69 = vector.extract_strided_slice %30 {offsets = [0, 16], sizes = [8, 8], strides = [1, 1]} : vector<8x32xf32> to vector<8x8xf32>
    %70 = vector.extract_strided_slice %31 {offsets = [0, 16], sizes = [8, 8], strides = [1, 1]} : vector<8x32xf32> to vector<8x8xf32>
    %cst_31 = arith.constant dense<0.000000e+00> : vector<8x8xf32>
    %71 = tpu.matmul %68, %69, %cst_31 {dimension_numbers = #tpu.dot_dimension_numbers<[1], [1], [0], [0], [0, 0, 1, 0], [], []>} : vector<8x8xf32>, vector<8x8xf32>, vector<8x8xf32> -> vector<8x8xf32>
    %cst_32 = arith.constant 0.353553385 : f32
    %72 = vector.broadcast %cst_32 : f32 to vector<8x8xf32>
    %73 = arith.mulf %71, %72 : vector<8x8xf32>
    %cst_33 = arith.constant dense<0xFF800000> : vector<8xf32>
    %74 = vector.multi_reduction <maximumf>, %73, %cst_33 [1] : vector<8x8xf32> to vector<8xf32>
    %75 = vector.shape_cast %74 : vector<8xf32> to vector<8x1xf32>
    %76 = vector.broadcast %75 : vector<8x1xf32> to vector<8x8xf32>
    %77 = arith.subf %73, %76 : vector<8x8xf32>
    %78 = math.exp %77 : vector<8x8xf32>
    %cst_34 = arith.constant dense<0.000000e+00> : vector<8xf32>
    %79 = vector.multi_reduction <add>, %78, %cst_34 [1] : vector<8x8xf32> to vector<8xf32>
    %80 = vector.shape_cast %79 : vector<8xf32> to vector<8x1xf32>
    %81 = tpu.reciprocal %80 {approx = true} : vector<8x1xf32> -> vector<8x1xf32>
    %82 = vector.broadcast %81 : vector<8x1xf32> to vector<8x8xf32>
    %83 = arith.mulf %78, %82 : vector<8x8xf32>
    %cst_35 = arith.constant dense<0.000000e+00> : vector<8x8xf32>
    %84 = tpu.matmul %83, %70, %cst_35 {dimension_numbers = #tpu.dot_dimension_numbers<[1], [0], [0], [1], [0, 0, 1, 1], [], []>} : vector<8x8xf32>, vector<8x8xf32>, vector<8x8xf32> -> vector<8x8xf32>
    %c0_36 = arith.constant 0 : index
    %c16 = arith.constant 16 : index
    %85 = vector.load %arg24[%c0_36, %c16] : memref<16x32xf32, #tpu.memory_space<vmem>>, vector<8x8xf32>
    tpu.vector_store %arg24[%c0_36, %c16], %84 {strides = array<i32>} : memref<16x32xf32, #tpu.memory_space<vmem>>, vector<8x8xf32>,
    %86 = vector.extract_strided_slice %29 {offsets = [0, 24], sizes = [8, 8], strides = [1, 1]} : vector<8x32xf32> to vector<8x8xf32>
    %87 = vector.extract_strided_slice %30 {offsets = [0, 24], sizes = [8, 8], strides = [1, 1]} : vector<8x32xf32> to vector<8x8xf32>
    %88 = vector.extract_strided_slice %31 {offsets = [0, 24], sizes = [8, 8], strides = [1, 1]} : vector<8x32xf32> to vector<8x8xf32>
    %cst_37 = arith.constant dense<0.000000e+00> : vector<8x8xf32>
    %89 = tpu.matmul %86, %87, %cst_37 {dimension_numbers = #tpu.dot_dimension_numbers<[1], [1], [0], [0], [0, 0, 1, 0], [], []>} : vector<8x8xf32>, vector<8x8xf32>, vector<8x8xf32> -> vector<8x8xf32>
    %cst_38 = arith.constant 0.353553385 : f32
    %90 = vector.broadcast %cst_38 : f32 to vector<8x8xf32>
    %91 = arith.mulf %89, %90 : vector<8x8xf32>
    %cst_39 = arith.constant dense<0xFF800000> : vector<8xf32>
    %92 = vector.multi_reduction <maximumf>, %91, %cst_39 [1] : vector<8x8xf32> to vector<8xf32>
    %93 = vector.shape_cast %92 : vector<8xf32> to vector<8x1xf32>
    %94 = vector.broadcast %93 : vector<8x1xf32> to vector<8x8xf32>
    %95 = arith.subf %91, %94 : vector<8x8xf32>
    %96 = math.exp %95 : vector<8x8xf32>
    %cst_40 = arith.constant dense<0.000000e+00> : vector<8xf32>
    %97 = vector.multi_reduction <add>, %96, %cst_40 [1] : vector<8x8xf32> to vector<8xf32>
    %98 = vector.shape_cast %97 : vector<8xf32> to vector<8x1xf32>
    %99 = tpu.reciprocal %98 {approx = true} : vector<8x1xf32> -> vector<8x1xf32>
    %100 = vector.broadcast %99 : vector<8x1xf32> to vector<8x8xf32>
    %101 = arith.mulf %96, %100 : vector<8x8xf32>
    %cst_41 = arith.constant dense<0.000000e+00> : vector<8x8xf32>
    %102 = tpu.matmul %101, %88, %cst_41 {dimension_numbers = #tpu.dot_dimension_numbers<[1], [0], [0], [1], [0, 0, 1, 1], [], []>} : vector<8x8xf32>, vector<8x8xf32>, vector<8x8xf32> -> vector<8x8xf32>
    %c0_42 = arith.constant 0 : index
    %c24 = arith.constant 24 : index
    %103 = vector.load %arg24[%c0_42, %c24] : memref<16x32xf32, #tpu.memory_space<vmem>>, vector<8x8xf32>
    tpu.vector_store %arg24[%c0_42, %c24], %102 {strides = array<i32>} : memref<16x32xf32, #tpu.memory_space<vmem>>, vector<8x8xf32>,
    %104 = vector.extract_strided_slice %28 {offsets = [8, 0], sizes = [8, 32], strides = [1, 1]} : vector<16x96xf32> to vector<8x32xf32>
    %105 = vector.extract_strided_slice %28 {offsets = [8, 32], sizes = [8, 32], strides = [1, 1]} : vector<16x96xf32> to vector<8x32xf32>
    %106 = vector.extract_strided_slice %28 {offsets = [8, 64], sizes = [8, 32], strides = [1, 1]} : vector<16x96xf32> to vector<8x32xf32>
    %107 = vector.extract_strided_slice %104 {offsets = [0, 0], sizes = [8, 8], strides = [1, 1]} : vector<8x32xf32> to vector<8x8xf32>
    %108 = vector.extract_strided_slice %105 {offsets = [0, 0], sizes = [8, 8], strides = [1, 1]} : vector<8x32xf32> to vector<8x8xf32>
    %109 = vector.extract_strided_slice %106 {offsets = [0, 0], sizes = [8, 8], strides = [1, 1]} : vector<8x32xf32> to vector<8x8xf32>
    %cst_43 = arith.constant dense<0.000000e+00> : vector<8x8xf32>
    %110 = tpu.matmul %107, %108, %cst_43 {dimension_numbers = #tpu.dot_dimension_numbers<[1], [1], [0], [0], [0, 0, 1, 0], [], []>} : vector<8x8xf32>, vector<8x8xf32>, vector<8x8xf32> -> vector<8x8xf32>
    %cst_44 = arith.constant 0.353553385 : f32
    %111 = vector.broadcast %cst_44 : f32 to vector<8x8xf32>
    %112 = arith.mulf %110, %111 : vector<8x8xf32>
    %cst_45 = arith.constant dense<0xFF800000> : vector<8xf32>
    %113 = vector.multi_reduction <maximumf>, %112, %cst_45 [1] : vector<8x8xf32> to vector<8xf32>
    %114 = vector.shape_cast %113 : vector<8xf32> to vector<8x1xf32>
    %115 = vector.broadcast %114 : vector<8x1xf32> to vector<8x8xf32>
    %116 = arith.subf %112, %115 : vector<8x8xf32>
    %117 = math.exp %116 : vector<8x8xf32>
    %cst_46 = arith.constant dense<0.000000e+00> : vector<8xf32>
    %118 = vector.multi_reduction <add>, %117, %cst_46 [1] : vector<8x8xf32> to vector<8xf32>
    %119 = vector.shape_cast %118 : vector<8xf32> to vector<8x1xf32>
    %120 = tpu.reciprocal %119 {approx = true} : vector<8x1xf32> -> vector<8x1xf32>
    %121 = vector.broadcast %120 : vector<8x1xf32> to vector<8x8xf32>
    %122 = arith.mulf %117, %121 : vector<8x8xf32>
    %cst_47 = arith.constant dense<0.000000e+00> : vector<8x8xf32>
    %123 = tpu.matmul %122, %109, %cst_47 {dimension_numbers = #tpu.dot_dimension_numbers<[1], [0], [0], [1], [0, 0, 1, 1], [], []>} : vector<8x8xf32>, vector<8x8xf32>, vector<8x8xf32> -> vector<8x8xf32>
    %c8_48 = arith.constant 8 : index
    %c0_49 = arith.constant 0 : index
    %124 = vector.load %arg24[%c8_48, %c0_49] : memref<16x32xf32, #tpu.memory_space<vmem>>, vector<8x8xf32>
    tpu.vector_store %arg24[%c8_48, %c0_49], %123 {strides = array<i32>} : memref<16x32xf32, #tpu.memory_space<vmem>>, vector<8x8xf32>,
    %125 = vector.extract_strided_slice %104 {offsets = [0, 8], sizes = [8, 8], strides = [1, 1]} : vector<8x32xf32> to vector<8x8xf32>
    %126 = vector.extract_strided_slice %105 {offsets = [0, 8], sizes = [8, 8], strides = [1, 1]} : vector<8x32xf32> to vector<8x8xf32>
    %127 = vector.extract_strided_slice %106 {offsets = [0, 8], sizes = [8, 8], strides = [1, 1]} : vector<8x32xf32> to vector<8x8xf32>
    %cst_50 = arith.constant dense<0.000000e+00> : vector<8x8xf32>
    %128 = tpu.matmul %125, %126, %cst_50 {dimension_numbers = #tpu.dot_dimension_numbers<[1], [1], [0], [0], [0, 0, 1, 0], [], []>} : vector<8x8xf32>, vector<8x8xf32>, vector<8x8xf32> -> vector<8x8xf32>
    %cst_51 = arith.constant 0.353553385 : f32
    %129 = vector.broadcast %cst_51 : f32 to vector<8x8xf32>
    %130 = arith.mulf %128, %129 : vector<8x8xf32>
    %cst_52 = arith.constant dense<0xFF800000> : vector<8xf32>
    %131 = vector.multi_reduction <maximumf>, %130, %cst_52 [1] : vector<8x8xf32> to vector<8xf32>
    %132 = vector.shape_cast %131 : vector<8xf32> to vector<8x1xf32>
    %133 = vector.broadcast %132 : vector<8x1xf32> to vector<8x8xf32>
    %134 = arith.subf %130, %133 : vector<8x8xf32>
    %135 = math.exp %134 : vector<8x8xf32>
    %cst_53 = arith.constant dense<0.000000e+00> : vector<8xf32>
    %136 = vector.multi_reduction <add>, %135, %cst_53 [1] : vector<8x8xf32> to vector<8xf32>
    %137 = vector.shape_cast %136 : vector<8xf32> to vector<8x1xf32>
    %138 = tpu.reciprocal %137 {approx = true} : vector<8x1xf32> -> vector<8x1xf32>
    %139 = vector.broadcast %138 : vector<8x1xf32> to vector<8x8xf32>
    %140 = arith.mulf %135, %139 : vector<8x8xf32>
    %cst_54 = arith.constant dense<0.000000e+00> : vector<8x8xf32>
    %141 = tpu.matmul %140, %127, %cst_54 {dimension_numbers = #tpu.dot_dimension_numbers<[1], [0], [0], [1], [0, 0, 1, 1], [], []>} : vector<8x8xf32>, vector<8x8xf32>, vector<8x8xf32> -> vector<8x8xf32>
    %c8_55 = arith.constant 8 : index
    %c8_56 = arith.constant 8 : index
    %142 = vector.load %arg24[%c8_55, %c8_56] : memref<16x32xf32, #tpu.memory_space<vmem>>, vector<8x8xf32>
    tpu.vector_store %arg24[%c8_55, %c8_56], %141 {strides = array<i32>} : memref<16x32xf32, #tpu.memory_space<vmem>>, vector<8x8xf32>,
    %143 = vector.extract_strided_slice %104 {offsets = [0, 16], sizes = [8, 8], strides = [1, 1]} : vector<8x32xf32> to vector<8x8xf32>
    %144 = vector.extract_strided_slice %105 {offsets = [0, 16], sizes = [8, 8], strides = [1, 1]} : vector<8x32xf32> to vector<8x8xf32>
    %145 = vector.extract_strided_slice %106 {offsets = [0, 16], sizes = [8, 8], strides = [1, 1]} : vector<8x32xf32> to vector<8x8xf32>
    %cst_57 = arith.constant dense<0.000000e+00> : vector<8x8xf32>
    %146 = tpu.matmul %143, %144, %cst_57 {dimension_numbers = #tpu.dot_dimension_numbers<[1], [1], [0], [0], [0, 0, 1, 0], [], []>} : vector<8x8xf32>, vector<8x8xf32>, vector<8x8xf32> -> vector<8x8xf32>
    %cst_58 = arith.constant 0.353553385 : f32
    %147 = vector.broadcast %cst_58 : f32 to vector<8x8xf32>
    %148 = arith.mulf %146, %147 : vector<8x8xf32>
    %cst_59 = arith.constant dense<0xFF800000> : vector<8xf32>
    %149 = vector.multi_reduction <maximumf>, %148, %cst_59 [1] : vector<8x8xf32> to vector<8xf32>
    %150 = vector.shape_cast %149 : vector<8xf32> to vector<8x1xf32>
    %151 = vector.broadcast %150 : vector<8x1xf32> to vector<8x8xf32>
    %152 = arith.subf %148, %151 : vector<8x8xf32>
    %153 = math.exp %152 : vector<8x8xf32>
    %cst_60 = arith.constant dense<0.000000e+00> : vector<8xf32>
    %154 = vector.multi_reduction <add>, %153, %cst_60 [1] : vector<8x8xf32> to vector<8xf32>
    %155 = vector.shape_cast %154 : vector<8xf32> to vector<8x1xf32>
    %156 = tpu.reciprocal %155 {approx = true} : vector<8x1xf32> -> vector<8x1xf32>
    %157 = vector.broadcast %156 : vector<8x1xf32> to vector<8x8xf32>
    %158 = arith.mulf %153, %157 : vector<8x8xf32>
    %cst_61 = arith.constant dense<0.000000e+00> : vector<8x8xf32>
    %159 = tpu.matmul %158, %145, %cst_61 {dimension_numbers = #tpu.dot_dimension_numbers<[1], [0], [0], [1], [0, 0, 1, 1], [], []>} : vector<8x8xf32>, vector<8x8xf32>, vector<8x8xf32> -> vector<8x8xf32>
    %c8_62 = arith.constant 8 : index
    %c16_63 = arith.constant 16 : index
    %160 = vector.load %arg24[%c8_62, %c16_63] : memref<16x32xf32, #tpu.memory_space<vmem>>, vector<8x8xf32>
    tpu.vector_store %arg24[%c8_62, %c16_63], %159 {strides = array<i32>} : memref<16x32xf32, #tpu.memory_space<vmem>>, vector<8x8xf32>,
    %161 = vector.extract_strided_slice %104 {offsets = [0, 24], sizes = [8, 8], strides = [1, 1]} : vector<8x32xf32> to vector<8x8xf32>
    %162 = vector.extract_strided_slice %105 {offsets = [0, 24], sizes = [8, 8], strides = [1, 1]} : vector<8x32xf32> to vector<8x8xf32>
    %163 = vector.extract_strided_slice %106 {offsets = [0, 24], sizes = [8, 8], strides = [1, 1]} : vector<8x32xf32> to vector<8x8xf32>
    %cst_64 = arith.constant dense<0.000000e+00> : vector<8x8xf32>
    %164 = tpu.matmul %161, %162, %cst_64 {dimension_numbers = #tpu.dot_dimension_numbers<[1], [1], [0], [0], [0, 0, 1, 0], [], []>} : vector<8x8xf32>, vector<8x8xf32>, vector<8x8xf32> -> vector<8x8xf32>
    %cst_65 = arith.constant 0.353553385 : f32
    %165 = vector.broadcast %cst_65 : f32 to vector<8x8xf32>
    %166 = arith.mulf %164, %165 : vector<8x8xf32>
    %cst_66 = arith.constant dense<0xFF800000> : vector<8xf32>
    %167 = vector.multi_reduction <maximumf>, %166, %cst_66 [1] : vector<8x8xf32> to vector<8xf32>
    %168 = vector.shape_cast %167 : vector<8xf32> to vector<8x1xf32>
    %169 = vector.broadcast %168 : vector<8x1xf32> to vector<8x8xf32>
    %170 = arith.subf %166, %169 : vector<8x8xf32>
    %171 = math.exp %170 : vector<8x8xf32>
    %cst_67 = arith.constant dense<0.000000e+00> : vector<8xf32>
    %172 = vector.multi_reduction <add>, %171, %cst_67 [1] : vector<8x8xf32> to vector<8xf32>
    %173 = vector.shape_cast %172 : vector<8xf32> to vector<8x1xf32>
    %174 = tpu.reciprocal %173 {approx = true} : vector<8x1xf32> -> vector<8x1xf32>
    %175 = vector.broadcast %174 : vector<8x1xf32> to vector<8x8xf32>
    %176 = arith.mulf %171, %175 : vector<8x8xf32>
    %cst_68 = arith.constant dense<0.000000e+00> : vector<8x8xf32>
    %177 = tpu.matmul %176, %163, %cst_68 {dimension_numbers = #tpu.dot_dimension_numbers<[1], [0], [0], [1], [0, 0, 1, 1], [], []>} : vector<8x8xf32>, vector<8x8xf32>, vector<8x8xf32> -> vector<8x8xf32>
    %c8_69 = arith.constant 8 : index
    %c24_70 = arith.constant 24 : index
    %178 = vector.load %arg24[%c8_69, %c24_70] : memref<16x32xf32, #tpu.memory_space<vmem>>, vector<8x8xf32>
    tpu.vector_store %arg24[%c8_69, %c24_70], %177 {strides = array<i32>} : memref<16x32xf32, #tpu.memory_space<vmem>>, vector<8x8xf32>,
    %c0_71 = arith.constant 0 : index
    %c0_72 = arith.constant 0 : index
    %179 = vector.load %arg24[%c0_71, %c0_72] : memref<16x32xf32, #tpu.memory_space<vmem>>, vector<16x32xf32>
    %c0_73 = arith.constant 0 : index
    %c0_74 = arith.constant 0 : index
    %180 = vector.load %arg7[%c0_73, %c0_74] : memref<32x32xf32, #tpu.memory_space<vmem>>, vector<32x32xf32>
    %cst_75 = arith.constant dense<0.000000e+00> : vector<16x32xf32>
    %181 = tpu.matmul %179, %180, %cst_75 {dimension_numbers = #tpu.dot_dimension_numbers<[1], [0], [0], [1], [0, 0, 1, 1], [], []>} : vector<16x32xf32>, vector<32x32xf32>, vector<16x32xf32> -> vector<16x32xf32>
    %182 = vector.extract_strided_slice %23 {offsets = [0, 0], sizes = [1, 32], strides = [1, 1]} : vector<6x32xf32> to vector<1x32xf32>
    %183 = vector.broadcast %182 : vector<1x32xf32> to vector<16x32xf32>
    %184 = arith.addf %181, %183 : vector<16x32xf32>
    %185 = arith.addf %22, %184 : vector<16x32xf32>
    %186 = vector.extract_strided_slice %23 {offsets = [1, 0], sizes = [1, 32], strides = [1, 1]} : vector<6x32xf32> to vector<1x32xf32>
    %187 = vector.extract_strided_slice %23 {offsets = [2, 0], sizes = [1, 32], strides = [1, 1]} : vector<6x32xf32> to vector<1x32xf32>
    %cst_76 = arith.constant dense<0.000000e+00> : vector<16xf32>
    %188 = vector.multi_reduction <add>, %185, %cst_76 [1] : vector<16x32xf32> to vector<16xf32>
    %189 = vector.shape_cast %188 : vector<16xf32> to vector<16x1xf32>
    %cst_77 = arith.constant 3.200000e+01 : f32
    %190 = vector.broadcast %cst_77 : f32 to vector<16x1xf32>
    %191 = arith.divf %189, %190 : vector<16x1xf32>
    %192 = vector.broadcast %191 : vector<16x1xf32> to vector<16x32xf32>
    %193 = arith.subf %185, %192 : vector<16x32xf32>
    %194 = arith.mulf %193, %193 : vector<16x32xf32>
    %cst_78 = arith.constant dense<0.000000e+00> : vector<16xf32>
    %195 = vector.multi_reduction <add>, %194, %cst_78 [1] : vector<16x32xf32> to vector<16xf32>
    %196 = vector.shape_cast %195 : vector<16xf32> to vector<16x1xf32>
    %cst_79 = arith.constant 3.200000e+01 : f32
    %197 = vector.broadcast %cst_79 : f32 to vector<16x1xf32>
    %198 = arith.divf %196, %197 : vector<16x1xf32>
    %199 = vector.broadcast %191 : vector<16x1xf32> to vector<16x32xf32>
    %200 = arith.subf %185, %199 : vector<16x32xf32>
    %cst_80 = arith.constant 9.99999974E-6 : f32
    %201 = vector.broadcast %cst_80 : f32 to vector<16x1xf32>
    %202 = arith.addf %198, %201 : vector<16x1xf32>
    %203 = math.rsqrt %202 : vector<16x1xf32>
    %204 = vector.broadcast %203 : vector<16x1xf32> to vector<16x32xf32>
    %205 = arith.mulf %200, %204 : vector<16x32xf32>
    %206 = vector.broadcast %186 : vector<1x32xf32> to vector<16x32xf32>
    %207 = arith.mulf %205, %206 : vector<16x32xf32>
    %208 = vector.broadcast %187 : vector<1x32xf32> to vector<16x32xf32>
    %209 = arith.addf %207, %208 : vector<16x32xf32>
    %c0_81 = arith.constant 0 : index
    %c0_82 = arith.constant 0 : index
    %210 = vector.load %arg8[%c0_81, %c0_82] : memref<32x64xf32, #tpu.memory_space<vmem>>, vector<32x64xf32>
    %cst_83 = arith.constant dense<0.000000e+00> : vector<16x64xf32>
    %211 = tpu.matmul %209, %210, %cst_83 {dimension_numbers = #tpu.dot_dimension_numbers<[1], [0], [0], [1], [0, 0, 1, 1], [], []>} : vector<16x32xf32>, vector<32x64xf32>, vector<16x64xf32> -> vector<16x64xf32>
    %c0_84 = arith.constant 0 : index
    %c0_85 = arith.constant 0 : index
    %212 = vector.load %arg9[%c0_84, %c0_85] : memref<1x64xf32, #tpu.memory_space<vmem>>, vector<1x64xf32>
    %213 = vector.broadcast %212 : vector<1x64xf32> to vector<16x64xf32>
    %214 = arith.addf %211, %213 : vector<16x64xf32>
    %cst_86 = arith.constant 0.000000e+00 : f32
    %215 = vector.broadcast %cst_86 : f32 to vector<16x64xf32>
    %216 = arith.maximumf %214, %215 : vector<16x64xf32>
    %c0_87 = arith.constant 0 : index
    %c0_88 = arith.constant 0 : index
    %217 = vector.load %arg10[%c0_87, %c0_88] : memref<64x32xf32, #tpu.memory_space<vmem>>, vector<64x32xf32>
    %cst_89 = arith.constant dense<0.000000e+00> : vector<16x32xf32>
    %218 = tpu.matmul %216, %217, %cst_89 {dimension_numbers = #tpu.dot_dimension_numbers<[1], [0], [0], [1], [0, 0, 1, 1], [], []>} : vector<16x64xf32>, vector<64x32xf32>, vector<16x32xf32> -> vector<16x32xf32>
    %219 = vector.extract_strided_slice %23 {offsets = [3, 0], sizes = [1, 32], strides = [1, 1]} : vector<6x32xf32> to vector<1x32xf32>
    %220 = vector.broadcast %219 : vector<1x32xf32> to vector<16x32xf32>
    %221 = arith.addf %218, %220 : vector<16x32xf32>
    %222 = arith.addf %209, %221 : vector<16x32xf32>
    %223 = vector.extract_strided_slice %23 {offsets = [4, 0], sizes = [1, 32], strides = [1, 1]} : vector<6x32xf32> to vector<1x32xf32>
    %224 = vector.extract_strided_slice %23 {offsets = [5, 0], sizes = [1, 32], strides = [1, 1]} : vector<6x32xf32> to vector<1x32xf32>
    %cst_90 = arith.constant dense<0.000000e+00> : vector<16xf32>
    %225 = vector.multi_reduction <add>, %222, %cst_90 [1] : vector<16x32xf32> to vector<16xf32>
    %226 = vector.shape_cast %225 : vector<16xf32> to vector<16x1xf32>
    %cst_91 = arith.constant 3.200000e+01 : f32
    %227 = vector.broadcast %cst_91 : f32 to vector<16x1xf32>
    %228 = arith.divf %226, %227 : vector<16x1xf32>
    %229 = vector.broadcast %228 : vector<16x1xf32> to vector<16x32xf32>
    %230 = arith.subf %222, %229 : vector<16x32xf32>
    %231 = arith.mulf %230, %230 : vector<16x32xf32>
    %cst_92 = arith.constant dense<0.000000e+00> : vector<16xf32>
    %232 = vector.multi_reduction <add>, %231, %cst_92 [1] : vector<16x32xf32> to vector<16xf32>
    %233 = vector.shape_cast %232 : vector<16xf32> to vector<16x1xf32>
    %cst_93 = arith.constant 3.200000e+01 : f32
    %234 = vector.broadcast %cst_93 : f32 to vector<16x1xf32>
    %235 = arith.divf %233, %234 : vector<16x1xf32>
    %236 = vector.broadcast %228 : vector<16x1xf32> to vector<16x32xf32>
    %237 = arith.subf %222, %236 : vector<16x32xf32>
    %cst_94 = arith.constant 9.99999974E-6 : f32
    %238 = vector.broadcast %cst_94 : f32 to vector<16x1xf32>
    %239 = arith.addf %235, %238 : vector<16x1xf32>
    %240 = math.rsqrt %239 : vector<16x1xf32>
    %241 = vector.broadcast %240 : vector<16x1xf32> to vector<16x32xf32>
    %242 = arith.mulf %237, %241 : vector<16x32xf32>
    %243 = vector.broadcast %223 : vector<1x32xf32> to vector<16x32xf32>
    %244 = arith.mulf %242, %243 : vector<16x32xf32>
    %245 = vector.broadcast %224 : vector<1x32xf32> to vector<16x32xf32>
    %246 = arith.addf %244, %245 : vector<16x32xf32>
    %c0_95 = arith.constant 0 : index
    %c0_96 = arith.constant 0 : index
    %247 = vector.load %arg18[%c0_95, %c0_96] : memref<6x32xf32, #tpu.memory_space<vmem>>, vector<6x32xf32>
    %c0_97 = arith.constant 0 : index
    %c0_98 = arith.constant 0 : index
    %248 = vector.load %arg12[%c0_97, %c0_98] : memref<32x96xf32, #tpu.memory_space<vmem>>, vector<32x96xf32>
    %cst_99 = arith.constant dense<0.000000e+00> : vector<16x96xf32>
    %249 = tpu.matmul %246, %248, %cst_99 {dimension_numbers = #tpu.dot_dimension_numbers<[1], [0], [0], [1], [0, 0, 1, 1], [], []>} : vector<16x32xf32>, vector<32x96xf32>, vector<16x96xf32> -> vector<16x96xf32>
    %c0_100 = arith.constant 0 : index
    %c0_101 = arith.constant 0 : index
    %250 = vector.load %arg13[%c0_100, %c0_101] : memref<1x96xf32, #tpu.memory_space<vmem>>, vector<1x96xf32>
    %251 = vector.broadcast %250 : vector<1x96xf32> to vector<16x96xf32>
    %252 = arith.addf %249, %251 : vector<16x96xf32>
    %253 = vector.extract_strided_slice %252 {offsets = [0, 0], sizes = [8, 32], strides = [1, 1]} : vector<16x96xf32> to vector<8x32xf32>
    %254 = vector.extract_strided_slice %252 {offsets = [0, 32], sizes = [8, 32], strides = [1, 1]} : vector<16x96xf32> to vector<8x32xf32>
    %255 = vector.extract_strided_slice %252 {offsets = [0, 64], sizes = [8, 32], strides = [1, 1]} : vector<16x96xf32> to vector<8x32xf32>
    %256 = vector.extract_strided_slice %253 {offsets = [0, 0], sizes = [8, 8], strides = [1, 1]} : vector<8x32xf32> to vector<8x8xf32>
    %257 = vector.extract_strided_slice %254 {offsets = [0, 0], sizes = [8, 8], strides = [1, 1]} : vector<8x32xf32> to vector<8x8xf32>
    %258 = vector.extract_strided_slice %255 {offsets = [0, 0], sizes = [8, 8], strides = [1, 1]} : vector<8x32xf32> to vector<8x8xf32>
    %cst_102 = arith.constant dense<0.000000e+00> : vector<8x8xf32>
    %259 = tpu.matmul %256, %257, %cst_102 {dimension_numbers = #tpu.dot_dimension_numbers<[1], [1], [0], [0], [0, 0, 1, 0], [], []>} : vector<8x8xf32>, vector<8x8xf32>, vector<8x8xf32> -> vector<8x8xf32>
    %cst_103 = arith.constant 0.353553385 : f32
    %260 = vector.broadcast %cst_103 : f32 to vector<8x8xf32>
    %261 = arith.mulf %259, %260 : vector<8x8xf32>
    %cst_104 = arith.constant dense<0xFF800000> : vector<8xf32>
    %262 = vector.multi_reduction <maximumf>, %261, %cst_104 [1] : vector<8x8xf32> to vector<8xf32>
    %263 = vector.shape_cast %262 : vector<8xf32> to vector<8x1xf32>
    %264 = vector.broadcast %263 : vector<8x1xf32> to vector<8x8xf32>
    %265 = arith.subf %261, %264 : vector<8x8xf32>
    %266 = math.exp %265 : vector<8x8xf32>
    %cst_105 = arith.constant dense<0.000000e+00> : vector<8xf32>
    %267 = vector.multi_reduction <add>, %266, %cst_105 [1] : vector<8x8xf32> to vector<8xf32>
    %268 = vector.shape_cast %267 : vector<8xf32> to vector<8x1xf32>
    %269 = tpu.reciprocal %268 {approx = true} : vector<8x1xf32> -> vector<8x1xf32>
    %270 = vector.broadcast %269 : vector<8x1xf32> to vector<8x8xf32>
    %271 = arith.mulf %266, %270 : vector<8x8xf32>
    %cst_106 = arith.constant dense<0.000000e+00> : vector<8x8xf32>
    %272 = tpu.matmul %271, %258, %cst_106 {dimension_numbers = #tpu.dot_dimension_numbers<[1], [0], [0], [1], [0, 0, 1, 1], [], []>} : vector<8x8xf32>, vector<8x8xf32>, vector<8x8xf32> -> vector<8x8xf32>
    %c0_107 = arith.constant 0 : index
    %c0_108 = arith.constant 0 : index
    %273 = vector.load %arg24[%c0_107, %c0_108] : memref<16x32xf32, #tpu.memory_space<vmem>>, vector<8x8xf32>
    tpu.vector_store %arg24[%c0_107, %c0_108], %272 {strides = array<i32>} : memref<16x32xf32, #tpu.memory_space<vmem>>, vector<8x8xf32>,
    %274 = vector.extract_strided_slice %253 {offsets = [0, 8], sizes = [8, 8], strides = [1, 1]} : vector<8x32xf32> to vector<8x8xf32>
    %275 = vector.extract_strided_slice %254 {offsets = [0, 8], sizes = [8, 8], strides = [1, 1]} : vector<8x32xf32> to vector<8x8xf32>
    %276 = vector.extract_strided_slice %255 {offsets = [0, 8], sizes = [8, 8], strides = [1, 1]} : vector<8x32xf32> to vector<8x8xf32>
    %cst_109 = arith.constant dense<0.000000e+00> : vector<8x8xf32>
    %277 = tpu.matmul %274, %275, %cst_109 {dimension_numbers = #tpu.dot_dimension_numbers<[1], [1], [0], [0], [0, 0, 1, 0], [], []>} : vector<8x8xf32>, vector<8x8xf32>, vector<8x8xf32> -> vector<8x8xf32>
    %cst_110 = arith.constant 0.353553385 : f32
    %278 = vector.broadcast %cst_110 : f32 to vector<8x8xf32>
    %279 = arith.mulf %277, %278 : vector<8x8xf32>
    %cst_111 = arith.constant dense<0xFF800000> : vector<8xf32>
    %280 = vector.multi_reduction <maximumf>, %279, %cst_111 [1] : vector<8x8xf32> to vector<8xf32>
    %281 = vector.shape_cast %280 : vector<8xf32> to vector<8x1xf32>
    %282 = vector.broadcast %281 : vector<8x1xf32> to vector<8x8xf32>
    %283 = arith.subf %279, %282 : vector<8x8xf32>
    %284 = math.exp %283 : vector<8x8xf32>
    %cst_112 = arith.constant dense<0.000000e+00> : vector<8xf32>
    %285 = vector.multi_reduction <add>, %284, %cst_112 [1] : vector<8x8xf32> to vector<8xf32>
    %286 = vector.shape_cast %285 : vector<8xf32> to vector<8x1xf32>
    %287 = tpu.reciprocal %286 {approx = true} : vector<8x1xf32> -> vector<8x1xf32>
    %288 = vector.broadcast %287 : vector<8x1xf32> to vector<8x8xf32>
    %289 = arith.mulf %284, %288 : vector<8x8xf32>
    %cst_113 = arith.constant dense<0.000000e+00> : vector<8x8xf32>
    %290 = tpu.matmul %289, %276, %cst_113 {dimension_numbers = #tpu.dot_dimension_numbers<[1], [0], [0], [1], [0, 0, 1, 1], [], []>} : vector<8x8xf32>, vector<8x8xf32>, vector<8x8xf32> -> vector<8x8xf32>
    %c0_114 = arith.constant 0 : index
    %c8_115 = arith.constant 8 : index
    %291 = vector.load %arg24[%c0_114, %c8_115] : memref<16x32xf32, #tpu.memory_space<vmem>>, vector<8x8xf32>
    tpu.vector_store %arg24[%c0_114, %c8_115], %290 {strides = array<i32>} : memref<16x32xf32, #tpu.memory_space<vmem>>, vector<8x8xf32>,
    %292 = vector.extract_strided_slice %253 {offsets = [0, 16], sizes = [8, 8], strides = [1, 1]} : vector<8x32xf32> to vector<8x8xf32>
    %293 = vector.extract_strided_slice %254 {offsets = [0, 16], sizes = [8, 8], strides = [1, 1]} : vector<8x32xf32> to vector<8x8xf32>
    %294 = vector.extract_strided_slice %255 {offsets = [0, 16], sizes = [8, 8], strides = [1, 1]} : vector<8x32xf32> to vector<8x8xf32>
    %cst_116 = arith.constant dense<0.000000e+00> : vector<8x8xf32>
    %295 = tpu.matmul %292, %293, %cst_116 {dimension_numbers = #tpu.dot_dimension_numbers<[1], [1], [0], [0], [0, 0, 1, 0], [], []>} : vector<8x8xf32>, vector<8x8xf32>, vector<8x8xf32> -> vector<8x8xf32>
    %cst_117 = arith.constant 0.353553385 : f32
    %296 = vector.broadcast %cst_117 : f32 to vector<8x8xf32>
    %297 = arith.mulf %295, %296 : vector<8x8xf32>
    %cst_118 = arith.constant dense<0xFF800000> : vector<8xf32>
    %298 = vector.multi_reduction <maximumf>, %297, %cst_118 [1] : vector<8x8xf32> to vector<8xf32>
    %299 = vector.shape_cast %298 : vector<8xf32> to vector<8x1xf32>
    %300 = vector.broadcast %299 : vector<8x1xf32> to vector<8x8xf32>
    %301 = arith.subf %297, %300 : vector<8x8xf32>
    %302 = math.exp %301 : vector<8x8xf32>
    %cst_119 = arith.constant dense<0.000000e+00> : vector<8xf32>
    %303 = vector.multi_reduction <add>, %302, %cst_119 [1] : vector<8x8xf32> to vector<8xf32>
    %304 = vector.shape_cast %303 : vector<8xf32> to vector<8x1xf32>
    %305 = tpu.reciprocal %304 {approx = true} : vector<8x1xf32> -> vector<8x1xf32>
    %306 = vector.broadcast %305 : vector<8x1xf32> to vector<8x8xf32>
    %307 = arith.mulf %302, %306 : vector<8x8xf32>
    %cst_120 = arith.constant dense<0.000000e+00> : vector<8x8xf32>
    %308 = tpu.matmul %307, %294, %cst_120 {dimension_numbers = #tpu.dot_dimension_numbers<[1], [0], [0], [1], [0, 0, 1, 1], [], []>} : vector<8x8xf32>, vector<8x8xf32>, vector<8x8xf32> -> vector<8x8xf32>
    %c0_121 = arith.constant 0 : index
    %c16_122 = arith.constant 16 : index
    %309 = vector.load %arg24[%c0_121, %c16_122] : memref<16x32xf32, #tpu.memory_space<vmem>>, vector<8x8xf32>
    tpu.vector_store %arg24[%c0_121, %c16_122], %308 {strides = array<i32>} : memref<16x32xf32, #tpu.memory_space<vmem>>, vector<8x8xf32>,
    %310 = vector.extract_strided_slice %253 {offsets = [0, 24], sizes = [8, 8], strides = [1, 1]} : vector<8x32xf32> to vector<8x8xf32>
    %311 = vector.extract_strided_slice %254 {offsets = [0, 24], sizes = [8, 8], strides = [1, 1]} : vector<8x32xf32> to vector<8x8xf32>
    %312 = vector.extract_strided_slice %255 {offsets = [0, 24], sizes = [8, 8], strides = [1, 1]} : vector<8x32xf32> to vector<8x8xf32>
    %cst_123 = arith.constant dense<0.000000e+00> : vector<8x8xf32>
    %313 = tpu.matmul %310, %311, %cst_123 {dimension_numbers = #tpu.dot_dimension_numbers<[1], [1], [0], [0], [0, 0, 1, 0], [], []>} : vector<8x8xf32>, vector<8x8xf32>, vector<8x8xf32> -> vector<8x8xf32>
    %cst_124 = arith.constant 0.353553385 : f32
    %314 = vector.broadcast %cst_124 : f32 to vector<8x8xf32>
    %315 = arith.mulf %313, %314 : vector<8x8xf32>
    %cst_125 = arith.constant dense<0xFF800000> : vector<8xf32>
    %316 = vector.multi_reduction <maximumf>, %315, %cst_125 [1] : vector<8x8xf32> to vector<8xf32>
    %317 = vector.shape_cast %316 : vector<8xf32> to vector<8x1xf32>
    %318 = vector.broadcast %317 : vector<8x1xf32> to vector<8x8xf32>
    %319 = arith.subf %315, %318 : vector<8x8xf32>
    %320 = math.exp %319 : vector<8x8xf32>
    %cst_126 = arith.constant dense<0.000000e+00> : vector<8xf32>
    %321 = vector.multi_reduction <add>, %320, %cst_126 [1] : vector<8x8xf32> to vector<8xf32>
    %322 = vector.shape_cast %321 : vector<8xf32> to vector<8x1xf32>
    %323 = tpu.reciprocal %322 {approx = true} : vector<8x1xf32> -> vector<8x1xf32>
    %324 = vector.broadcast %323 : vector<8x1xf32> to vector<8x8xf32>
    %325 = arith.mulf %320, %324 : vector<8x8xf32>
    %cst_127 = arith.constant dense<0.000000e+00> : vector<8x8xf32>
    %326 = tpu.matmul %325, %312, %cst_127 {dimension_numbers = #tpu.dot_dimension_numbers<[1], [0], [0], [1], [0, 0, 1, 1], [], []>} : vector<8x8xf32>, vector<8x8xf32>, vector<8x8xf32> -> vector<8x8xf32>
    %c0_128 = arith.constant 0 : index
    %c24_129 = arith.constant 24 : index
    %327 = vector.load %arg24[%c0_128, %c24_129] : memref<16x32xf32, #tpu.memory_space<vmem>>, vector<8x8xf32>
    tpu.vector_store %arg24[%c0_128, %c24_129], %326 {strides = array<i32>} : memref<16x32xf32, #tpu.memory_space<vmem>>, vector<8x8xf32>,
    %328 = vector.extract_strided_slice %252 {offsets = [8, 0], sizes = [8, 32], strides = [1, 1]} : vector<16x96xf32> to vector<8x32xf32>
    %329 = vector.extract_strided_slice %252 {offsets = [8, 32], sizes = [8, 32], strides = [1, 1]} : vector<16x96xf32> to vector<8x32xf32>
    %330 = vector.extract_strided_slice %252 {offsets = [8, 64], sizes = [8, 32], strides = [1, 1]} : vector<16x96xf32> to vector<8x32xf32>
    %331 = vector.extract_strided_slice %328 {offsets = [0, 0], sizes = [8, 8], strides = [1, 1]} : vector<8x32xf32> to vector<8x8xf32>
    %332 = vector.extract_strided_slice %329 {offsets = [0, 0], sizes = [8, 8], strides = [1, 1]} : vector<8x32xf32> to vector<8x8xf32>
    %333 = vector.extract_strided_slice %330 {offsets = [0, 0], sizes = [8, 8], strides = [1, 1]} : vector<8x32xf32> to vector<8x8xf32>
    %cst_130 = arith.constant dense<0.000000e+00> : vector<8x8xf32>
    %334 = tpu.matmul %331, %332, %cst_130 {dimension_numbers = #tpu.dot_dimension_numbers<[1], [1], [0], [0], [0, 0, 1, 0], [], []>} : vector<8x8xf32>, vector<8x8xf32>, vector<8x8xf32> -> vector<8x8xf32>
    %cst_131 = arith.constant 0.353553385 : f32
    %335 = vector.broadcast %cst_131 : f32 to vector<8x8xf32>
    %336 = arith.mulf %334, %335 : vector<8x8xf32>
    %cst_132 = arith.constant dense<0xFF800000> : vector<8xf32>
    %337 = vector.multi_reduction <maximumf>, %336, %cst_132 [1] : vector<8x8xf32> to vector<8xf32>
    %338 = vector.shape_cast %337 : vector<8xf32> to vector<8x1xf32>
    %339 = vector.broadcast %338 : vector<8x1xf32> to vector<8x8xf32>
    %340 = arith.subf %336, %339 : vector<8x8xf32>
    %341 = math.exp %340 : vector<8x8xf32>
    %cst_133 = arith.constant dense<0.000000e+00> : vector<8xf32>
    %342 = vector.multi_reduction <add>, %341, %cst_133 [1] : vector<8x8xf32> to vector<8xf32>
    %343 = vector.shape_cast %342 : vector<8xf32> to vector<8x1xf32>
    %344 = tpu.reciprocal %343 {approx = true} : vector<8x1xf32> -> vector<8x1xf32>
    %345 = vector.broadcast %344 : vector<8x1xf32> to vector<8x8xf32>
    %346 = arith.mulf %341, %345 : vector<8x8xf32>
    %cst_134 = arith.constant dense<0.000000e+00> : vector<8x8xf32>
    %347 = tpu.matmul %346, %333, %cst_134 {dimension_numbers = #tpu.dot_dimension_numbers<[1], [0], [0], [1], [0, 0, 1, 1], [], []>} : vector<8x8xf32>, vector<8x8xf32>, vector<8x8xf32> -> vector<8x8xf32>
    %c8_135 = arith.constant 8 : index
    %c0_136 = arith.constant 0 : index
    %348 = vector.load %arg24[%c8_135, %c0_136] : memref<16x32xf32, #tpu.memory_space<vmem>>, vector<8x8xf32>
    tpu.vector_store %arg24[%c8_135, %c0_136], %347 {strides = array<i32>} : memref<16x32xf32, #tpu.memory_space<vmem>>, vector<8x8xf32>,
    %349 = vector.extract_strided_slice %328 {offsets = [0, 8], sizes = [8, 8], strides = [1, 1]} : vector<8x32xf32> to vector<8x8xf32>
    %350 = vector.extract_strided_slice %329 {offsets = [0, 8], sizes = [8, 8], strides = [1, 1]} : vector<8x32xf32> to vector<8x8xf32>
    %351 = vector.extract_strided_slice %330 {offsets = [0, 8], sizes = [8, 8], strides = [1, 1]} : vector<8x32xf32> to vector<8x8xf32>
    %cst_137 = arith.constant dense<0.000000e+00> : vector<8x8xf32>
    %352 = tpu.matmul %349, %350, %cst_137 {dimension_numbers = #tpu.dot_dimension_numbers<[1], [1], [0], [0], [0, 0, 1, 0], [], []>} : vector<8x8xf32>, vector<8x8xf32>, vector<8x8xf32> -> vector<8x8xf32>
    %cst_138 = arith.constant 0.353553385 : f32
    %353 = vector.broadcast %cst_138 : f32 to vector<8x8xf32>
    %354 = arith.mulf %352, %353 : vector<8x8xf32>
    %cst_139 = arith.constant dense<0xFF800000> : vector<8xf32>
    %355 = vector.multi_reduction <maximumf>, %354, %cst_139 [1] : vector<8x8xf32> to vector<8xf32>
    %356 = vector.shape_cast %355 : vector<8xf32> to vector<8x1xf32>
    %357 = vector.broadcast %356 : vector<8x1xf32> to vector<8x8xf32>
    %358 = arith.subf %354, %357 : vector<8x8xf32>
    %359 = math.exp %358 : vector<8x8xf32>
    %cst_140 = arith.constant dense<0.000000e+00> : vector<8xf32>
    %360 = vector.multi_reduction <add>, %359, %cst_140 [1] : vector<8x8xf32> to vector<8xf32>
    %361 = vector.shape_cast %360 : vector<8xf32> to vector<8x1xf32>
    %362 = tpu.reciprocal %361 {approx = true} : vector<8x1xf32> -> vector<8x1xf32>
    %363 = vector.broadcast %362 : vector<8x1xf32> to vector<8x8xf32>
    %364 = arith.mulf %359, %363 : vector<8x8xf32>
    %cst_141 = arith.constant dense<0.000000e+00> : vector<8x8xf32>
    %365 = tpu.matmul %364, %351, %cst_141 {dimension_numbers = #tpu.dot_dimension_numbers<[1], [0], [0], [1], [0, 0, 1, 1], [], []>} : vector<8x8xf32>, vector<8x8xf32>, vector<8x8xf32> -> vector<8x8xf32>
    %c8_142 = arith.constant 8 : index
    %c8_143 = arith.constant 8 : index
    %366 = vector.load %arg24[%c8_142, %c8_143] : memref<16x32xf32, #tpu.memory_space<vmem>>, vector<8x8xf32>
    tpu.vector_store %arg24[%c8_142, %c8_143], %365 {strides = array<i32>} : memref<16x32xf32, #tpu.memory_space<vmem>>, vector<8x8xf32>,
    %367 = vector.extract_strided_slice %328 {offsets = [0, 16], sizes = [8, 8], strides = [1, 1]} : vector<8x32xf32> to vector<8x8xf32>
    %368 = vector.extract_strided_slice %329 {offsets = [0, 16], sizes = [8, 8], strides = [1, 1]} : vector<8x32xf32> to vector<8x8xf32>
    %369 = vector.extract_strided_slice %330 {offsets = [0, 16], sizes = [8, 8], strides = [1, 1]} : vector<8x32xf32> to vector<8x8xf32>
    %cst_144 = arith.constant dense<0.000000e+00> : vector<8x8xf32>
    %370 = tpu.matmul %367, %368, %cst_144 {dimension_numbers = #tpu.dot_dimension_numbers<[1], [1], [0], [0], [0, 0, 1, 0], [], []>} : vector<8x8xf32>, vector<8x8xf32>, vector<8x8xf32> -> vector<8x8xf32>
    %cst_145 = arith.constant 0.353553385 : f32
    %371 = vector.broadcast %cst_145 : f32 to vector<8x8xf32>
    %372 = arith.mulf %370, %371 : vector<8x8xf32>
    %cst_146 = arith.constant dense<0xFF800000> : vector<8xf32>
    %373 = vector.multi_reduction <maximumf>, %372, %cst_146 [1] : vector<8x8xf32> to vector<8xf32>
    %374 = vector.shape_cast %373 : vector<8xf32> to vector<8x1xf32>
    %375 = vector.broadcast %374 : vector<8x1xf32> to vector<8x8xf32>
    %376 = arith.subf %372, %375 : vector<8x8xf32>
    %377 = math.exp %376 : vector<8x8xf32>
    %cst_147 = arith.constant dense<0.000000e+00> : vector<8xf32>
    %378 = vector.multi_reduction <add>, %377, %cst_147 [1] : vector<8x8xf32> to vector<8xf32>
    %379 = vector.shape_cast %378 : vector<8xf32> to vector<8x1xf32>
    %380 = tpu.reciprocal %379 {approx = true} : vector<8x1xf32> -> vector<8x1xf32>
    %381 = vector.broadcast %380 : vector<8x1xf32> to vector<8x8xf32>
    %382 = arith.mulf %377, %381 : vector<8x8xf32>
    %cst_148 = arith.constant dense<0.000000e+00> : vector<8x8xf32>
    %383 = tpu.matmul %382, %369, %cst_148 {dimension_numbers = #tpu.dot_dimension_numbers<[1], [0], [0], [1], [0, 0, 1, 1], [], []>} : vector<8x8xf32>, vector<8x8xf32>, vector<8x8xf32> -> vector<8x8xf32>
    %c8_149 = arith.constant 8 : index
    %c16_150 = arith.constant 16 : index
    %384 = vector.load %arg24[%c8_149, %c16_150] : memref<16x32xf32, #tpu.memory_space<vmem>>, vector<8x8xf32>
    tpu.vector_store %arg24[%c8_149, %c16_150], %383 {strides = array<i32>} : memref<16x32xf32, #tpu.memory_space<vmem>>, vector<8x8xf32>,
    %385 = vector.extract_strided_slice %328 {offsets = [0, 24], sizes = [8, 8], strides = [1, 1]} : vector<8x32xf32> to vector<8x8xf32>
    %386 = vector.extract_strided_slice %329 {offsets = [0, 24], sizes = [8, 8], strides = [1, 1]} : vector<8x32xf32> to vector<8x8xf32>
    %387 = vector.extract_strided_slice %330 {offsets = [0, 24], sizes = [8, 8], strides = [1, 1]} : vector<8x32xf32> to vector<8x8xf32>
    %cst_151 = arith.constant dense<0.000000e+00> : vector<8x8xf32>
    %388 = tpu.matmul %385, %386, %cst_151 {dimension_numbers = #tpu.dot_dimension_numbers<[1], [1], [0], [0], [0, 0, 1, 0], [], []>} : vector<8x8xf32>, vector<8x8xf32>, vector<8x8xf32> -> vector<8x8xf32>
    %cst_152 = arith.constant 0.353553385 : f32
    %389 = vector.broadcast %cst_152 : f32 to vector<8x8xf32>
    %390 = arith.mulf %388, %389 : vector<8x8xf32>
    %cst_153 = arith.constant dense<0xFF800000> : vector<8xf32>
    %391 = vector.multi_reduction <maximumf>, %390, %cst_153 [1] : vector<8x8xf32> to vector<8xf32>
    %392 = vector.shape_cast %391 : vector<8xf32> to vector<8x1xf32>
    %393 = vector.broadcast %392 : vector<8x1xf32> to vector<8x8xf32>
    %394 = arith.subf %390, %393 : vector<8x8xf32>
    %395 = math.exp %394 : vector<8x8xf32>
    %cst_154 = arith.constant dense<0.000000e+00> : vector<8xf32>
    %396 = vector.multi_reduction <add>, %395, %cst_154 [1] : vector<8x8xf32> to vector<8xf32>
    %397 = vector.shape_cast %396 : vector<8xf32> to vector<8x1xf32>
    %398 = tpu.reciprocal %397 {approx = true} : vector<8x1xf32> -> vector<8x1xf32>
    %399 = vector.broadcast %398 : vector<8x1xf32> to vector<8x8xf32>
    %400 = arith.mulf %395, %399 : vector<8x8xf32>
    %cst_155 = arith.constant dense<0.000000e+00> : vector<8x8xf32>
    %401 = tpu.matmul %400, %387, %cst_155 {dimension_numbers = #tpu.dot_dimension_numbers<[1], [0], [0], [1], [0, 0, 1, 1], [], []>} : vector<8x8xf32>, vector<8x8xf32>, vector<8x8xf32> -> vector<8x8xf32>
    %c8_156 = arith.constant 8 : index
    %c24_157 = arith.constant 24 : index
    %402 = vector.load %arg24[%c8_156, %c24_157] : memref<16x32xf32, #tpu.memory_space<vmem>>, vector<8x8xf32>
    tpu.vector_store %arg24[%c8_156, %c24_157], %401 {strides = array<i32>} : memref<16x32xf32, #tpu.memory_space<vmem>>, vector<8x8xf32>,
    %c0_158 = arith.constant 0 : index
    %c0_159 = arith.constant 0 : index
    %403 = vector.load %arg24[%c0_158, %c0_159] : memref<16x32xf32, #tpu.memory_space<vmem>>, vector<16x32xf32>
    %c0_160 = arith.constant 0 : index
    %c0_161 = arith.constant 0 : index
    %404 = vector.load %arg14[%c0_160, %c0_161] : memref<32x32xf32, #tpu.memory_space<vmem>>, vector<32x32xf32>
    %cst_162 = arith.constant dense<0.000000e+00> : vector<16x32xf32>
    %405 = tpu.matmul %403, %404, %cst_162 {dimension_numbers = #tpu.dot_dimension_numbers<[1], [0], [0], [1], [0, 0, 1, 1], [], []>} : vector<16x32xf32>, vector<32x32xf32>, vector<16x32xf32> -> vector<16x32xf32>
    %406 = vector.extract_strided_slice %247 {offsets = [0, 0], sizes = [1, 32], strides = [1, 1]} : vector<6x32xf32> to vector<1x32xf32>
    %407 = vector.broadcast %406 : vector<1x32xf32> to vector<16x32xf32>
    %408 = arith.addf %405, %407 : vector<16x32xf32>
    %409 = arith.addf %246, %408 : vector<16x32xf32>
    %410 = vector.extract_strided_slice %247 {offsets = [1, 0], sizes = [1, 32], strides = [1, 1]} : vector<6x32xf32> to vector<1x32xf32>
    %411 = vector.extract_strided_slice %247 {offsets = [2, 0], sizes = [1, 32], strides = [1, 1]} : vector<6x32xf32> to vector<1x32xf32>
    %cst_163 = arith.constant dense<0.000000e+00> : vector<16xf32>
    %412 = vector.multi_reduction <add>, %409, %cst_163 [1] : vector<16x32xf32> to vector<16xf32>
    %413 = vector.shape_cast %412 : vector<16xf32> to vector<16x1xf32>
    %cst_164 = arith.constant 3.200000e+01 : f32
    %414 = vector.broadcast %cst_164 : f32 to vector<16x1xf32>
    %415 = arith.divf %413, %414 : vector<16x1xf32>
    %416 = vector.broadcast %415 : vector<16x1xf32> to vector<16x32xf32>
    %417 = arith.subf %409, %416 : vector<16x32xf32>
    %418 = arith.mulf %417, %417 : vector<16x32xf32>
    %cst_165 = arith.constant dense<0.000000e+00> : vector<16xf32>
    %419 = vector.multi_reduction <add>, %418, %cst_165 [1] : vector<16x32xf32> to vector<16xf32>
    %420 = vector.shape_cast %419 : vector<16xf32> to vector<16x1xf32>
    %cst_166 = arith.constant 3.200000e+01 : f32
    %421 = vector.broadcast %cst_166 : f32 to vector<16x1xf32>
    %422 = arith.divf %420, %421 : vector<16x1xf32>
    %423 = vector.broadcast %415 : vector<16x1xf32> to vector<16x32xf32>
    %424 = arith.subf %409, %423 : vector<16x32xf32>
    %cst_167 = arith.constant 9.99999974E-6 : f32
    %425 = vector.broadcast %cst_167 : f32 to vector<16x1xf32>
    %426 = arith.addf %422, %425 : vector<16x1xf32>
    %427 = math.rsqrt %426 : vector<16x1xf32>
    %428 = vector.broadcast %427 : vector<16x1xf32> to vector<16x32xf32>
    %429 = arith.mulf %424, %428 : vector<16x32xf32>
    %430 = vector.broadcast %410 : vector<1x32xf32> to vector<16x32xf32>
    %431 = arith.mulf %429, %430 : vector<16x32xf32>
    %432 = vector.broadcast %411 : vector<1x32xf32> to vector<16x32xf32>
    %433 = arith.addf %431, %432 : vector<16x32xf32>
    %c0_168 = arith.constant 0 : index
    %c0_169 = arith.constant 0 : index
    %434 = vector.load %arg15[%c0_168, %c0_169] : memref<32x64xf32, #tpu.memory_space<vmem>>, vector<32x64xf32>
    %cst_170 = arith.constant dense<0.000000e+00> : vector<16x64xf32>
    %435 = tpu.matmul %433, %434, %cst_170 {dimension_numbers = #tpu.dot_dimension_numbers<[1], [0], [0], [1], [0, 0, 1, 1], [], []>} : vector<16x32xf32>, vector<32x64xf32>, vector<16x64xf32> -> vector<16x64xf32>
    %c0_171 = arith.constant 0 : index
    %c0_172 = arith.constant 0 : index
    %436 = vector.load %arg16[%c0_171, %c0_172] : memref<1x64xf32, #tpu.memory_space<vmem>>, vector<1x64xf32>
    %437 = vector.broadcast %436 : vector<1x64xf32> to vector<16x64xf32>
    %438 = arith.addf %435, %437 : vector<16x64xf32>
    %cst_173 = arith.constant 0.000000e+00 : f32
    %439 = vector.broadcast %cst_173 : f32 to vector<16x64xf32>
    %440 = arith.maximumf %438, %439 : vector<16x64xf32>
    %c0_174 = arith.constant 0 : index
    %c0_175 = arith.constant 0 : index
    %441 = vector.load %arg17[%c0_174, %c0_175] : memref<64x32xf32, #tpu.memory_space<vmem>>, vector<64x32xf32>
    %cst_176 = arith.constant dense<0.000000e+00> : vector<16x32xf32>
    %442 = tpu.matmul %440, %441, %cst_176 {dimension_numbers = #tpu.dot_dimension_numbers<[1], [0], [0], [1], [0, 0, 1, 1], [], []>} : vector<16x64xf32>, vector<64x32xf32>, vector<16x32xf32> -> vector<16x32xf32>
    %443 = vector.extract_strided_slice %247 {offsets = [3, 0], sizes = [1, 32], strides = [1, 1]} : vector<6x32xf32> to vector<1x32xf32>
    %444 = vector.broadcast %443 : vector<1x32xf32> to vector<16x32xf32>
    %445 = arith.addf %442, %444 : vector<16x32xf32>
    %446 = arith.addf %433, %445 : vector<16x32xf32>
    %447 = vector.extract_strided_slice %247 {offsets = [4, 0], sizes = [1, 32], strides = [1, 1]} : vector<6x32xf32> to vector<1x32xf32>
    %448 = vector.extract_strided_slice %247 {offsets = [5, 0], sizes = [1, 32], strides = [1, 1]} : vector<6x32xf32> to vector<1x32xf32>
    %cst_177 = arith.constant dense<0.000000e+00> : vector<16xf32>
    %449 = vector.multi_reduction <add>, %446, %cst_177 [1] : vector<16x32xf32> to vector<16xf32>
    %450 = vector.shape_cast %449 : vector<16xf32> to vector<16x1xf32>
    %cst_178 = arith.constant 3.200000e+01 : f32
    %451 = vector.broadcast %cst_178 : f32 to vector<16x1xf32>
    %452 = arith.divf %450, %451 : vector<16x1xf32>
    %453 = vector.broadcast %452 : vector<16x1xf32> to vector<16x32xf32>
    %454 = arith.subf %446, %453 : vector<16x32xf32>
    %455 = arith.mulf %454, %454 : vector<16x32xf32>
    %cst_179 = arith.constant dense<0.000000e+00> : vector<16xf32>
    %456 = vector.multi_reduction <add>, %455, %cst_179 [1] : vector<16x32xf32> to vector<16xf32>
    %457 = vector.shape_cast %456 : vector<16xf32> to vector<16x1xf32>
    %cst_180 = arith.constant 3.200000e+01 : f32
    %458 = vector.broadcast %cst_180 : f32 to vector<16x1xf32>
    %459 = arith.divf %457, %458 : vector<16x1xf32>
    %460 = vector.broadcast %452 : vector<16x1xf32> to vector<16x32xf32>
    %461 = arith.subf %446, %460 : vector<16x32xf32>
    %cst_181 = arith.constant 9.99999974E-6 : f32
    %462 = vector.broadcast %cst_181 : f32 to vector<16x1xf32>
    %463 = arith.addf %459, %462 : vector<16x1xf32>
    %464 = math.rsqrt %463 : vector<16x1xf32>
    %465 = vector.broadcast %464 : vector<16x1xf32> to vector<16x32xf32>
    %466 = arith.mulf %461, %465 : vector<16x32xf32>
    %467 = vector.broadcast %447 : vector<1x32xf32> to vector<16x32xf32>
    %468 = arith.mulf %466, %467 : vector<16x32xf32>
    %469 = vector.broadcast %448 : vector<1x32xf32> to vector<16x32xf32>
    %470 = arith.addf %468, %469 : vector<16x32xf32>
    %c0_182 = arith.constant 0 : index
    %c0_183 = arith.constant 0 : index
    %471 = vector.load %arg22[%c0_182, %c0_183] : memref<3x32xf32, #tpu.memory_space<vmem>>, vector<3x32xf32>
    %c0_184 = arith.constant 0 : index
    %c0_185 = arith.constant 0 : index
    %472 = vector.load %arg4[%c0_184, %c0_185] : memref<16x32xf32, #tpu.memory_space<vmem>>, vector<16x32xf32>
    %473 = arith.addf %470, %472 : vector<16x32xf32>
    %c0_186 = arith.constant 0 : index
    %c0_187 = arith.constant 0 : index
    %474 = vector.load %arg19[%c0_186, %c0_187] : memref<32x32xf32, #tpu.memory_space<vmem>>, vector<32x32xf32>
    %cst_188 = arith.constant dense<0.000000e+00> : vector<16x32xf32>
    %475 = tpu.matmul %473, %474, %cst_188 {dimension_numbers = #tpu.dot_dimension_numbers<[1], [0], [0], [1], [0, 0, 1, 1], [], []>} : vector<16x32xf32>, vector<32x32xf32>, vector<16x32xf32> -> vector<16x32xf32>
    %476 = vector.extract_strided_slice %471 {offsets = [0, 0], sizes = [1, 32], strides = [1, 1]} : vector<3x32xf32> to vector<1x32xf32>
    %477 = vector.broadcast %476 : vector<1x32xf32> to vector<16x32xf32>
    %478 = arith.addf %475, %477 : vector<16x32xf32>
    %cst_189 = arith.constant 5.000000e-01 : f32
    %479 = vector.broadcast %cst_189 : f32 to vector<16x32xf32>
    %480 = arith.mulf %479, %478 : vector<16x32xf32>
    %cst_190 = arith.constant 0.707106769 : f32
    %481 = vector.broadcast %cst_190 : f32 to vector<16x32xf32>
    %482 = arith.mulf %478, %481 : vector<16x32xf32>
    %483 = math.erf %482 : vector<16x32xf32>
    %cst_191 = arith.constant 1.000000e+00 : f32
    %484 = vector.broadcast %cst_191 : f32 to vector<16x32xf32>
    %485 = arith.addf %484, %483 : vector<16x32xf32>
    %486 = arith.mulf %480, %485 : vector<16x32xf32>
    %487 = vector.extract_strided_slice %471 {offsets = [1, 0], sizes = [1, 32], strides = [1, 1]} : vector<3x32xf32> to vector<1x32xf32>
    %488 = vector.extract_strided_slice %471 {offsets = [2, 0], sizes = [1, 32], strides = [1, 1]} : vector<3x32xf32> to vector<1x32xf32>
    %cst_192 = arith.constant dense<0.000000e+00> : vector<16xf32>
    %489 = vector.multi_reduction <add>, %486, %cst_192 [1] : vector<16x32xf32> to vector<16xf32>
    %490 = vector.shape_cast %489 : vector<16xf32> to vector<16x1xf32>
    %cst_193 = arith.constant 3.200000e+01 : f32
    %491 = vector.broadcast %cst_193 : f32 to vector<16x1xf32>
    %492 = arith.divf %490, %491 : vector<16x1xf32>
    %493 = vector.broadcast %492 : vector<16x1xf32> to vector<16x32xf32>
    %494 = arith.subf %486, %493 : vector<16x32xf32>
    %495 = arith.mulf %494, %494 : vector<16x32xf32>
    %cst_194 = arith.constant dense<0.000000e+00> : vector<16xf32>
    %496 = vector.multi_reduction <add>, %495, %cst_194 [1] : vector<16x32xf32> to vector<16xf32>
    %497 = vector.shape_cast %496 : vector<16xf32> to vector<16x1xf32>
    %cst_195 = arith.constant 3.200000e+01 : f32
    %498 = vector.broadcast %cst_195 : f32 to vector<16x1xf32>
    %499 = arith.divf %497, %498 : vector<16x1xf32>
    %500 = vector.broadcast %492 : vector<16x1xf32> to vector<16x32xf32>
    %501 = arith.subf %486, %500 : vector<16x32xf32>
    %cst_196 = arith.constant 9.99999974E-6 : f32
    %502 = vector.broadcast %cst_196 : f32 to vector<16x1xf32>
    %503 = arith.addf %499, %502 : vector<16x1xf32>
    %504 = math.rsqrt %503 : vector<16x1xf32>
    %505 = vector.broadcast %504 : vector<16x1xf32> to vector<16x32xf32>
    %506 = arith.mulf %501, %505 : vector<16x32xf32>
    %507 = vector.broadcast %487 : vector<1x32xf32> to vector<16x32xf32>
    %508 = arith.mulf %506, %507 : vector<16x32xf32>
    %509 = vector.broadcast %488 : vector<1x32xf32> to vector<16x32xf32>
    %510 = arith.addf %508, %509 : vector<16x32xf32>
    %c0_197 = arith.constant 0 : index
    %c0_198 = arith.constant 0 : index
    %511 = vector.load %arg20[%c0_197, %c0_198] : memref<32x16xf32, #tpu.memory_space<vmem>>, vector<32x16xf32>
    %cst_199 = arith.constant dense<0.000000e+00> : vector<16x16xf32>
    %512 = tpu.matmul %510, %511, %cst_199 {dimension_numbers = #tpu.dot_dimension_numbers<[1], [0], [0], [1], [0, 0, 1, 1], [], []>} : vector<16x32xf32>, vector<32x16xf32>, vector<16x16xf32> -> vector<16x16xf32>
    %c0_200 = arith.constant 0 : index
    %c0_201 = arith.constant 0 : index
    %513 = vector.load %arg21[%c0_200, %c0_201] : memref<1x16xf32, #tpu.memory_space<vmem>>, vector<1x16xf32>
    %514 = vector.broadcast %513 : vector<1x16xf32> to vector<16x16xf32>
    %515 = arith.addf %512, %514 : vector<16x16xf32>
    %cst_202 = arith.constant dense<0xFF800000> : vector<16xf32>
    %516 = vector.multi_reduction <maximumf>, %515, %cst_202 [1] : vector<16x16xf32> to vector<16xf32>
    %517 = vector.shape_cast %516 : vector<16xf32> to vector<16x1xf32>
    %518 = vector.broadcast %517 : vector<16x1xf32> to vector<16x16xf32>
    %519 = arith.subf %515, %518 : vector<16x16xf32>
    %520 = math.exp %519 : vector<16x16xf32>
    %cst_203 = arith.constant dense<0.000000e+00> : vector<16xf32>
    %521 = vector.multi_reduction <add>, %520, %cst_203 [1] : vector<16x16xf32> to vector<16xf32>
    %522 = vector.shape_cast %521 : vector<16xf32> to vector<16x1xf32>
    %523 = math.log %522 : vector<16x1xf32>
    %524 = arith.addf %523, %517 : vector<16x1xf32>
    %525 = vector.broadcast %524 : vector<16x1xf32> to vector<16x16xf32>
    %526 = arith.subf %515, %525 : vector<16x16xf32>
    %c0_204 = arith.constant 0 : index
    %c0_205 = arith.constant 0 : index
    %527 = vector.load %arg23[%c0_204, %c0_205] : memref<16x16xf32, #tpu.memory_space<vmem>>, vector<16x16xf32>
    tpu.vector_store %arg23[%c0_204, %c0_205], %526 {strides = array<i32>} : memref<16x16xf32, #tpu.memory_space<vmem>>, vector<16x16xf32>,
    return
  }
}

</mosaic_0001>

<llo_original>
// kernel: kmeans_ctc_asr_forward.1
$region0: #{kmeans_ctc_asr_forward.1}
  #allocation0 [shape = 'u32[]', space=smem, size = 0x4, offset = 0x4, fixed_abs, tag = 'smem constant byte address 0x4 - core index']
  #allocation1 [shape = 'u32[144,128]{1,0:T(1,128)}', space=vmem, size = 0x12000, scoped, tag = 'internal scratch']
  #allocation2 [shape = 'f32[16,32]{1,0:T(8,128)}', space=vmem, size = 0x2000, scoped, tag = 'scratch operand']
  %s0 = inlined_call_operand.hbm [shape: f32[16,32], index: 0, kind: input, shape index: {}]
  %s1 = inlined_call_operand.vmem [shape: f32[32,16], index: 1, kind: input, shape index: {}]
  %s2 = inlined_call_operand.vmem [shape: f32[1,16], index: 2, kind: input, shape index: {}]
  %s3 = inlined_call_operand.hbm [shape: f32[16,32], index: 3, kind: input, shape index: {}]
  %s4 = inlined_call_operand.vmem [shape: f32[16,32], index: 4, kind: input, shape index: {}]
  %s5 = inlined_call_operand.vmem [shape: f32[32,96], index: 5, kind: input, shape index: {}]
  %s6 = inlined_call_operand.hbm [shape: f32[1,96], index: 6, kind: input, shape index: {}]
  %s7 = inlined_call_operand.vmem [shape: f32[32,32], index: 7, kind: input, shape index: {}]
  %s8 = inlined_call_operand.vmem [shape: f32[32,64], index: 8, kind: input, shape index: {}]
  %s9 = inlined_call_operand.hbm [shape: f32[1,64], index: 9, kind: input, shape index: {}]
  %s10 = inlined_call_operand.vmem [shape: f32[64,32], index: 10, kind: input, shape index: {}]
  %s11 = inlined_call_operand.hbm [shape: f32[6,32], index: 11, kind: input, shape index: {}]
  %s12 = inlined_call_operand.vmem [shape: f32[32,96], index: 12, kind: input, shape index: {}]
  %s13 = inlined_call_operand.vmem [shape: f32[1,96], index: 13, kind: input, shape index: {}]
  %s14 = inlined_call_operand.vmem [shape: f32[32,32], index: 14, kind: input, shape index: {}]
  %s15 = inlined_call_operand.vmem [shape: f32[32,64], index: 15, kind: input, shape index: {}]
  %s16 = inlined_call_operand.vmem [shape: f32[1,64], index: 16, kind: input, shape index: {}]
  %s17 = inlined_call_operand.vmem [shape: f32[64,32], index: 17, kind: input, shape index: {}]
  %s18 = inlined_call_operand.vmem [shape: f32[6,32], index: 18, kind: input, shape index: {}]
  %s19 = inlined_call_operand.vmem [shape: f32[32,32], index: 19, kind: input, shape index: {}]
  %s20 = inlined_call_operand.vmem [shape: f32[32,16], index: 20, kind: input, shape index: {}]
  %s21 = inlined_call_operand.hbm [shape: f32[1,16], index: 21, kind: input, shape index: {}]
  %s22 = inlined_call_operand.hbm [shape: f32[3,32], index: 22, kind: input, shape index: {}]
  %s23 = inlined_call_operand.hbm [shape: f32[16,16], index: 23, kind: output, shape index: {}]
  %s24 = sld [smem:[#allocation0]]
  $region130: #{kmeans_ctc_asr_forward.1} parent=0
    _
  %s26 = ssub.s32 1, %s24
  %s27 = scalar_select 0, %s26, %s24
  $region1: #{kmeans_ctc_asr_forward.1} parent=0
    #allocation3 [shape = 'u8[8192]{0}', space=vmem, size = 0x2000, scoped, tag = 'input window, operand 0, single buffered']
    #allocation4 [shape = 's32[1]{0}', space=sflag, size = 0x4, scoped, tag = 'scoped memory for kmeans_ctc_asr_forward.1']
    #allocation5 [shape = 's32[1]{0}', space=sflag, size = 0x4, scoped, tag = 'scoped memory for kmeans_ctc_asr_forward.1']
    #allocation6 [shape = 'u8[8192]{0}', space=vmem, size = 0x2000, scoped, tag = 'input window, operand 3, single buffered']
    #allocation7 [shape = 's32[1]{0}', space=sflag, size = 0x4, scoped, tag = 'scoped memory for kmeans_ctc_asr_forward.1']
    #allocation8 [shape = 'u8[512]{0}', space=vmem, size = 0x400, scoped, tag = 'input window, operand 6, single buffered']
    #allocation9 [shape = 'u8[512]{0}', space=vmem, size = 0x400, scoped, tag = 'input window, operand 9, single buffered']
    #allocation10 [shape = 's32[1]{0}', space=sflag, size = 0x4, scoped, tag = 'scoped memory for kmeans_ctc_asr_forward.1']
    #allocation11 [shape = 'u8[4096]{0}', space=vmem, size = 0x1000, scoped, tag = 'input window, operand 11, single buffered']
    #allocation12 [shape = 'u8[512]{0}', space=vmem, size = 0x400, scoped, tag = 'input window, operand 21, single buffered']
    #allocation13 [shape = 's32[1]{0}', space=sflag, size = 0x4, scoped, tag = 'scoped memory for kmeans_ctc_asr_forward.1']
    #allocation14 [shape = 'u8[2048]{0}', space=vmem, size = 0x800, scoped, tag = 'input window, operand 22, single buffered']
    #allocation15 [shape = 'u8[8192]{0}', space=vmem, size = 0x2000, scoped, tag = 'output window, operand 0, single buffered']
    %28 = vsyncpa [#allocation4], 0
    %29 = vsyncpa [#allocation7], 0
    %30 = vsyncpa [#allocation10], 0
    %31 = vsyncpa [#allocation13], 0
    %32 = vsyncpa [#allocation5], 0
    // Predicated region
    $region2: #{kmeans_ctc_asr_forward.1} parent=1 // pred_check
      _
    $region3: #{kmeans_ctc_asr_forward.1} parent=1 // pred_check_branch
      %34 = sbr.rel (0) target = $region5
    $region4: #{kmeans_ctc_asr_forward.1} parent=1 // pred_region
      %s36 = ssub.s32 256, 256
      %37 = vsyncadd [#allocation4], %s36
      %s38 = sshll.u32 [#allocation3], 4
      %s39 = int_to_ptr.vmem [resolvable:$true] %s38
      %44 = dma.hbm_to_vmem [thread:$0]  %s0, 256, %s39, [#allocation4], 128, 128, 8
    $region5: #{kmeans_ctc_asr_forward.1} parent=1 // pred_fallthru
      _
    // Predicated region
    $region6: #{kmeans_ctc_asr_forward.1} parent=1 // pred_check
      _
    $region7: #{kmeans_ctc_asr_forward.1} parent=1 // pred_check_branch
      %46 = sbr.rel (0) target = $region9
    $region8: #{kmeans_ctc_asr_forward.1} parent=1 // pred_region
      _
    $region9: #{kmeans_ctc_asr_forward.1} parent=1 // pred_fallthru
      _
    // Predicated region
    $region10: #{kmeans_ctc_asr_forward.1} parent=1 // pred_check
      _
    $region11: #{kmeans_ctc_asr_forward.1} parent=1 // pred_check_branch
      %48 = sbr.rel (0) target = $region13
    $region12: #{kmeans_ctc_asr_forward.1} parent=1 // pred_region
      _
    $region13: #{kmeans_ctc_asr_forward.1} parent=1 // pred_fallthru
      _
    // Predicated region
    $region14: #{kmeans_ctc_asr_forward.1} parent=1 // pred_check
      _
    $region15: #{kmeans_ctc_asr_forward.1} parent=1 // pred_check_branch
      %50 = sbr.rel (0) target = $region17
    $region16: #{kmeans_ctc_asr_forward.1} parent=1 // pred_region
      %s52 = ssub.s32 256, 256
      %53 = vsyncadd [#allocation7], %s52
      %s54 = sshll.u32 [#allocation6], 4
      %s55 = int_to_ptr.vmem [resolvable:$true] %s54
      %60 = dma.hbm_to_vmem [thread:$0]  %s3, 256, %s55, [#allocation7], 128, 128, 8
    $region17: #{kmeans_ctc_asr_forward.1} parent=1 // pred_fallthru
      _
    // Predicated region
    $region18: #{kmeans_ctc_asr_forward.1} parent=1 // pred_check
      _
    $region19: #{kmeans_ctc_asr_forward.1} parent=1 // pred_check_branch
      %62 = sbr.rel (0) target = $region21
    $region20: #{kmeans_ctc_asr_forward.1} parent=1 // pred_region
      _
    $region21: #{kmeans_ctc_asr_forward.1} parent=1 // pred_fallthru
      _
    // Predicated region
    $region22: #{kmeans_ctc_asr_forward.1} parent=1 // pred_check
      _
    $region23: #{kmeans_ctc_asr_forward.1} parent=1 // pred_check_branch
      %64 = sbr.rel (0) target = $region25
    $region24: #{kmeans_ctc_asr_forward.1} parent=1 // pred_region
      _
    $region25: #{kmeans_ctc_asr_forward.1} parent=1 // pred_fallthru
      _
    // Predicated region
    $region26: #{kmeans_ctc_asr_forward.1} parent=1 // pred_check
      _
    $region27: #{kmeans_ctc_asr_forward.1} parent=1 // pred_check_branch
      %66 = sbr.rel (0) target = $region29
    $region28: #{kmeans_ctc_asr_forward.1} parent=1 // pred_region
      %s68 = ssub.s32 16, 16
      %69 = vsyncadd [#allocation7], %s68
      %s71 = sshll.u32 [#allocation8], 4
      %s72 = int_to_ptr.vmem [resolvable:$true] %s71
      %74 = dma.hbm_to_vmem [thread:$0]  %s6, 16, %s72, [#allocation7]
    $region29: #{kmeans_ctc_asr_forward.1} parent=1 // pred_fallthru
      _
    // Predicated region
    $region30: #{kmeans_ctc_asr_forward.1} parent=1 // pred_check
      _
    $region31: #{kmeans_ctc_asr_forward.1} parent=1 // pred_check_branch
      %76 = sbr.rel (0) target = $region33
    $region32: #{kmeans_ctc_asr_forward.1} parent=1 // pred_region
      _
    $region33: #{kmeans_ctc_asr_forward.1} parent=1 // pred_fallthru
      _
    // Predicated region
    $region34: #{kmeans_ctc_asr_forward.1} parent=1 // pred_check
      _
    $region35: #{kmeans_ctc_asr_forward.1} parent=1 // pred_check_branch
      %78 = sbr.rel (0) target = $region37
    $region36: #{kmeans_ctc_asr_forward.1} parent=1 // pred_region
      _
    $region37: #{kmeans_ctc_asr_forward.1} parent=1 // pred_fallthru
      _
    // Predicated region
    $region38: #{kmeans_ctc_asr_forward.1} parent=1 // pred_check
      _
    $region39: #{kmeans_ctc_asr_forward.1} parent=1 // pred_check_branch
      %80 = sbr.rel (0) target = $region41
    $region40: #{kmeans_ctc_asr_forward.1} parent=1 // pred_region
      %s82 = ssub.s32 16, 16
      %83 = vsyncadd [#allocation10], %s82
      %s85 = sshll.u32 [#allocation9], 4
      %s86 = int_to_ptr.vmem [resolvable:$true] %s85
      %88 = dma.hbm_to_vmem [thread:$0]  %s9, 16, %s86, [#allocation10]
    $region41: #{kmeans_ctc_asr_forward.1} parent=1 // pred_fallthru
      _
    // Predicated region
    $region42: #{kmeans_ctc_asr_forward.1} parent=1 // pred_check
      _
    $region43: #{kmeans_ctc_asr_forward.1} parent=1 // pred_check_branch
      %90 = sbr.rel (0) target = $region45
    $region44: #{kmeans_ctc_asr_forward.1} parent=1 // pred_region
      _
    $region45: #{kmeans_ctc_asr_forward.1} parent=1 // pred_fallthru
      _
    // Predicated region
    $region46: #{kmeans_ctc_asr_forward.1} parent=1 // pred_check
      _
    $region47: #{kmeans_ctc_asr_forward.1} parent=1 // pred_check_branch
      %92 = sbr.rel (0) target = $region49
    $region48: #{kmeans_ctc_asr_forward.1} parent=1 // pred_region
      %s94 = ssub.s32 128, 128
      %95 = vsyncadd [#allocation10], %s94
      %s97 = sshll.u32 [#allocation11], 4
      %s98 = int_to_ptr.vmem [resolvable:$true] %s97
      %100 = dma.hbm_to_vmem [thread:$0]  %s11, 128, %s98, [#allocation10]
    $region49: #{kmeans_ctc_asr_forward.1} parent=1 // pred_fallthru
      _
    // Predicated region
    $region50: #{kmeans_ctc_asr_forward.1} parent=1 // pred_check
      _
    $region51: #{kmeans_ctc_asr_forward.1} parent=1 // pred_check_branch
      %102 = sbr.rel (0) target = $region53
    $region52: #{kmeans_ctc_asr_forward.1} parent=1 // pred_region
      _
    $region53: #{kmeans_ctc_asr_forward.1} parent=1 // pred_fallthru
      _
    // Predicated region
    $region54: #{kmeans_ctc_asr_forward.1} parent=1 // pred_check
      _
    $region55: #{kmeans_ctc_asr_forward.1} parent=1 // pred_check_branch
      %104 = sbr.rel (0) target = $region57
    $region56: #{kmeans_ctc_asr_forward.1} parent=1 // pred_region
      _
    $region57: #{kmeans_ctc_asr_forward.1} parent=1 // pred_fallthru
      _
    // Predicated region
    $region58: #{kmeans_ctc_asr_forward.1} parent=1 // pred_check
      _
    $region59: #{kmeans_ctc_asr_forward.1} parent=1 // pred_check_branch
      %106 = sbr.rel (0) target = $region61
    $region60: #{kmeans_ctc_asr_forward.1} parent=1 // pred_region
      _
    $region61: #{kmeans_ctc_asr_forward.1} parent=1 // pred_fallthru
      _
    // Predicated region
    $region62: #{kmeans_ctc_asr_forward.1} parent=1 // pred_check
      _
    $region63: #{kmeans_ctc_asr_forward.1} parent=1 // pred_check_branch
      %108 = sbr.rel (0) target = $region65
    $region64: #{kmeans_ctc_asr_forward.1} parent=1 // pred_region
      _
    $region65: #{kmeans_ctc_asr_forward.1} parent=1 // pred_fallthru
      _
    // Predicated region
    $region66: #{kmeans_ctc_asr_forward.1} parent=1 // pred_check
      _
    $region67: #{kmeans_ctc_asr_forward.1} parent=1 // pred_check_branch
      %110 = sbr.rel (0) target = $region69
    $region68: #{kmeans_ctc_asr_forward.1} parent=1 // pred_region
      _
    $region69: #{kmeans_ctc_asr_forward.1} parent=1 // pred_fallthru
      _
    // Predicated region
    $region70: #{kmeans_ctc_asr_forward.1} parent=1 // pred_check
      _
    $region71: #{kmeans_ctc_asr_forward.1} parent=1 // pred_check_branch
      %112 = sbr.rel (0) target = $region73
    $region72: #{kmeans_ctc_asr_forward.1} parent=1 // pred_region
      _
    $region73: #{kmeans_ctc_asr_forward.1} parent=1 // pred_fallthru
      _
    // Predicated region
    $region74: #{kmeans_ctc_asr_forward.1} parent=1 // pred_check
      _
    $region75: #{kmeans_ctc_asr_forward.1} parent=1 // pred_check_branch
      %114 = sbr.rel (0) target = $region77
    $region76: #{kmeans_ctc_asr_forward.1} parent=1 // pred_region
      _
    $region77: #{kmeans_ctc_asr_forward.1} parent=1 // pred_fallthru
      _
    // Predicated region
    $region78: #{kmeans_ctc_asr_forward.1} parent=1 // pred_check
      _
    $region79: #{kmeans_ctc_asr_forward.1} parent=1 // pred_check_branch
      %116 = sbr.rel (0) target = $region81
    $region80: #{kmeans_ctc_asr_forward.1} parent=1 // pred_region
      _
    $region81: #{kmeans_ctc_asr_forward.1} parent=1 // pred_fallthru
      _
    // Predicated region
    $region82: #{kmeans_ctc_asr_forward.1} parent=1 // pred_check
      _
    $region83: #{kmeans_ctc_asr_forward.1} parent=1 // pred_check_branch
      %118 = sbr.rel (0) target = $region85
    $region84: #{kmeans_ctc_asr_forward.1} parent=1 // pred_region
      _
    $region85: #{kmeans_ctc_asr_forward.1} parent=1 // pred_fallthru
      _
    // Predicated region
    $region86: #{kmeans_ctc_asr_forward.1} parent=1 // pred_check
      _
    $region87: #{kmeans_ctc_asr_forward.1} parent=1 // pred_check_branch
      %120 = sbr.rel (0) target = $region89
    $region88: #{kmeans_ctc_asr_forward.1} parent=1 // pred_region
      %s122 = ssub.s32 16, 16
      %123 = vsyncadd [#allocation13], %s122
      %s125 = sshll.u32 [#allocation12], 4
      %s126 = int_to_ptr.vmem [resolvable:$true] %s125
      %128 = dma.hbm_to_vmem [thread:$0]  %s21, 16, %s126, [#allocation13]
    $region89: #{kmeans_ctc_asr_forward.1} parent=1 // pred_fallthru
      _
    // Predicated region
    $region90: #{kmeans_ctc_asr_forward.1} parent=1 // pred_check
      _
    $region91: #{kmeans_ctc_asr_forward.1} parent=1 // pred_check_branch
      %130 = sbr.rel (0) target = $region93
    $region92: #{kmeans_ctc_asr_forward.1} parent=1 // pred_region
      %s132 = ssub.s32 64, 64
      %133 = vsyncadd [#allocation13], %s132
      %s135 = sshll.u32 [#allocation14], 4
      %s136 = int_to_ptr.vmem [resolvable:$true] %s135
      %138 = dma.hbm_to_vmem [thread:$0]  %s22, 64, %s136, [#allocation13]
    $region93: #{kmeans_ctc_asr_forward.1} parent=1 // pred_fallthru
      _
    // Predicated region
    $region94: #{kmeans_ctc_asr_forward.1} parent=1 // pred_check
      _
    $region95: #{kmeans_ctc_asr_forward.1} parent=1 // pred_check_branch
      %140 = sbr.rel (0) target = $region97
    $region96: #{kmeans_ctc_asr_forward.1} parent=1 // pred_region
      %141 = dma.done [#allocation4], 256
    $region97: #{kmeans_ctc_asr_forward.1} parent=1 // pred_fallthru
      _
    // Predicated region
    $region98: #{kmeans_ctc_asr_forward.1} parent=1 // pred_check
      _
    $region99: #{kmeans_ctc_asr_forward.1} parent=1 // pred_check_branch
      %143 = sbr.rel (0) target = $region101
    $region100: #{kmeans_ctc_asr_forward.1} parent=1 // pred_region
      %144 = dma.done [#allocation7], 256
    $region101: #{kmeans_ctc_asr_forward.1} parent=1 // pred_fallthru
      _
    // Predicated region
    $region102: #{kmeans_ctc_asr_forward.1} parent=1 // pred_check
      _
    $region103: #{kmeans_ctc_asr_forward.1} parent=1 // pred_check_branch
      %146 = sbr.rel (0) target = $region105
    $region104: #{kmeans_ctc_asr_forward.1} parent=1 // pred_region
      %147 = dma.done [#allocation7], 16
    $region105: #{kmeans_ctc_asr_forward.1} parent=1 // pred_fallthru
      _
    // Predicated region
    $region106: #{kmeans_ctc_asr_forward.1} parent=1 // pred_check
      _
    $region107: #{kmeans_ctc_asr_forward.1} parent=1 // pred_check_branch
      %149 = sbr.rel (0) target = $region109
    $region108: #{kmeans_ctc_asr_forward.1} parent=1 // pred_region
      %150 = dma.done [#allocation10], 16
    $region109: #{kmeans_ctc_asr_forward.1} parent=1 // pred_fallthru
      _
    // Predicated region
    $region110: #{kmeans_ctc_asr_forward.1} parent=1 // pred_check
      _
    $region111: #{kmeans_ctc_asr_forward.1} parent=1 // pred_check_branch
      %152 = sbr.rel (0) target = $region113
    $region112: #{kmeans_ctc_asr_forward.1} parent=1 // pred_region
      %153 = dma.done [#allocation10], 128
    $region113: #{kmeans_ctc_asr_forward.1} parent=1 // pred_fallthru
      _
    // Predicated region
    $region114: #{kmeans_ctc_asr_forward.1} parent=1 // pred_check
      _
    $region115: #{kmeans_ctc_asr_forward.1} parent=1 // pred_check_branch
      %155 = sbr.rel (0) target = $region117
    $region116: #{kmeans_ctc_asr_forward.1} parent=1 // pred_region
      %156 = dma.done [#allocation13], 16
    $region117: #{kmeans_ctc_asr_forward.1} parent=1 // pred_fallthru
      _
    // Predicated region
    $region118: #{kmeans_ctc_asr_forward.1} parent=1 // pred_check
      _
    $region119: #{kmeans_ctc_asr_forward.1} parent=1 // pred_check_branch
      %158 = sbr.rel (0) target = $region121
    $region120: #{kmeans_ctc_asr_forward.1} parent=1 // pred_region
      %159 = dma.done [#allocation13], 64
    $region121: #{kmeans_ctc_asr_forward.1} parent=1 // pred_fallthru
      _
    %v160 = vld [vmem:[#allocation3] sm:$0xff]
    %v161 = vld [vmem:[#allocation3 + $0x8] sm:$0xff]
    %v162 = vld [vmem:[%s2] sm:$0x1]
    %v163 = vld [vmem:[%s1] sm:$0xff]
    %v164 = vld [vmem:[%s1 + $0x8] sm:$0xff]
    %v165 = vld [vmem:[%s1 + $0x10] sm:$0xff]
    %v166 = vld [vmem:[%s1 + $0x18] sm:$0xff]
    %vm167 = vcmask 261120
    %v169 = vsel %vm167, %v160, 0
    %v172 = vsel %vm167, %v161, 0
    %174 = vmatprep.subr.mxu0 0.0
    %175 = vmatpush1.msra.mxu0 0.0
    %176 = vmatprep.subr.mxu0 0.0
    %177 = vmatpush1.msra.mxu0 0.0
    %178 = vmatprep.subr.mxu0 0.0
    %179 = vmatpush1.msra.mxu0 0.0
    %180 = vmatprep.subr.mxu0 0.0
    %181 = vmatpush1.msra.mxu0 0.0
    %182 = vmatprep.subr.mxu0 0.0
    %183 = vmatpush1.msra.mxu0 0.0
    %184 = vmatprep.subr.mxu0 0.0
    %185 = vmatpush1.msra.mxu0 0.0
    %186 = vmatprep.subr.mxu0 0.0
    %187 = vmatpush1.msra.mxu0 0.0
    %188 = vmatprep.subr.mxu0 0.0
    %189 = vmatpush1.msra.mxu0 0.0
    %190 = vmatprep.subr.mxu0 0.0
    %191 = vmatpush1.msra.mxu0 0.0
    %192 = vmatprep.subr.mxu0 0.0
    %193 = vmatpush1.msra.mxu0 0.0
    %194 = vmatprep.subr.mxu0 0.0
    %195 = vmatpush1.msra.mxu0 0.0
    %196 = vmatprep.subr.mxu0 0.0
    %197 = vmatpush1.msra.mxu0 0.0
    %198 = vmatprep.subr.mxu0 0.0
    %199 = vmatpush1.msra.mxu0 %v166
    %200 = vmatprep.subr.mxu0 0.0
    %201 = vmatpush1.msra.mxu0 %v165
    %202 = vmatprep.subr.mxu0 0.0
    %203 = vmatpush1.msra.mxu0 %v164
    %204 = vmatprep.subr.mxu0 0.0
    %205 = vmatpush1.msra.mxu0 %v163
    %206 = vmatprep.subr.mxu0 0.0
    %207 = vmatpush2.msra.mxu0 0.0
    %208 = vmatprep.subr.mxu0 0.0
    %209 = vmatpush2.msra.mxu0 0.0
    %210 = vmatprep.subr.mxu0 0.0
    %211 = vmatpush2.msra.mxu0 0.0
    %212 = vmatprep.subr.mxu0 0.0
    %213 = vmatpush2.msra.mxu0 0.0
    %214 = vmatprep.subr.mxu0 0.0
    %215 = vmatpush2.msra.mxu0 0.0
    %216 = vmatprep.subr.mxu0 0.0
    %217 = vmatpush2.msra.mxu0 0.0
    %218 = vmatprep.subr.mxu0 0.0
    %219 = vmatpush2.msra.mxu0 0.0
    %220 = vmatprep.subr.mxu0 0.0
    %221 = vmatpush2.msra.mxu0 0.0
    %222 = vmatprep.subr.mxu0 0.0
    %223 = vmatpush2.msra.mxu0 0.0
    %224 = vmatprep.subr.mxu0 0.0
    %225 = vmatpush2.msra.mxu0 0.0
    %226 = vmatprep.subr.mxu0 0.0
    %227 = vmatpush2.msra.mxu0 0.0
    %228 = vmatprep.subr.mxu0 0.0
    %229 = vmatpush2.msra.mxu0 0.0
    %230 = vmatprep.subr.mxu0 0.0
    %231 = vmatpush2.msra.mxu0 0.0
    %232 = vmatprep.subr.mxu0 0.0
    %233 = vmatpush2.msra.mxu0 0.0
    %234 = vmatprep.subr.mxu0 0.0
    %235 = vmatpush2.msra.mxu0 0.0
    %236 = vmatprep.subr.mxu0 0.0
    %237 = vmatpush2.msra.mxu0 0.0
    %238 = vmatprep.mubr.f32.mxu0 0.0
    %239 = vmatmul.mubr.f32.gmra.mxu0 %v169
    %v240 = vpop.f32.mrf.mxu0
    %v241 = vadd.f32 0.0, %v240
    %v242 = vpop.f32.mrf.mxu0
    %243 = vmatprep.mubr.f32.mxu0 0.0
    %244 = vmatmul.mubr.f32.gmra.mxu0 %v172
    %v245 = vpop.f32.mrf.mxu0
    %v246 = vadd.f32 0.0, %v245
    %v247 = vpop.f32.mrf.mxu0
    %248 = vdwg.mxu0
    %v249 = vmul.f32 %v241, 2.0
    %v250 = vmul.f32 %v246, 2.0
    %v252 = vlaneseq
    %v253 = vshrl.u32 %v252, 7
    %v254 = vsub.s32 0, %v253
    %v255 = vrot.slane %v162, %v254
    %v257 = vsub.f32 %v255, %v249
    %v258 = vsub.f32 %v255, %v250
    %vm259 = vcmask 130048
    %v260 = vsel %vm259, %v257, inf
    %261 = vmin.xlane.f32.xlu0 %v260
    %v262 = vpop.xlane.xlu0 %261
    %v263 = vsel %vm259, %v258, inf
    %264 = vmin.xlane.f32.xlu0 %v263
    %v265 = vpop.xlane.xlu0 %264
    %v266 = vlaneseq
    %v267 = vand.u32 %v266, 127
    %vm268 = vcmp.le.f32.partialorder %v257, %v262
    %vm269 = vcmp.le.f32.partialorder %v258, %v265
    %v270 = vsel %vm268, %v267, 16
    %v271 = vsel %vm269, %v267, 16
    %v272 = vsel %vm259, %v270, 2147483647
    %v273 = vand.u32 %v272, 65535
    %v274 = vshra.s32 %v272, 16
    %v275 = vcvt.s32.f32 %v273
    %v276 = vcvt.s32.f32 %v274
    %277 = vmin.xlane.f32.xlu0 %v276
    %v278 = vpop.xlane.xlu0 %277
    %vm279 = vcmp.eq.f32.partialorder %v276, %v278
    %v280 = vsel %vm279, %v275, inf
    %281 = vmin.xlane.f32.xlu0 %v280
    %v282 = vpop.xlane.xlu0 %281
    %v283 = vcvt.f32.s32 %v282
    %v284 = vcvt.f32.s32 %v278
    %v285 = vshll.u32 %v284, 16
    %v286 = vadd.s32 %v285, %v283
    %v287 = vsel %vm259, %v271, 2147483647
    %v288 = vand.u32 %v287, 65535
    %v289 = vshra.s32 %v287, 16
    %v290 = vcvt.s32.f32 %v288
    %v291 = vcvt.s32.f32 %v289
    %292 = vmin.xlane.f32.xlu0 %v291
    %v293 = vpop.xlane.xlu0 %292
    %vm294 = vcmp.eq.f32.partialorder %v291, %v293
    %v295 = vsel %vm294, %v290, inf
    %296 = vmin.xlane.f32.xlu0 %v295
    %v297 = vpop.xlane.xlu0 %296
    %v298 = vcvt.f32.s32 %v297
    %v299 = vcvt.f32.s32 %v293
    %v300 = vshll.u32 %v299, 16
    %v301 = vadd.s32 %v300, %v298
    %vm302 = vcmp.eq.s32.totalorder %v267, %v286
    %vm303 = vcmp.eq.s32.totalorder %v267, %v301
    %v304 = vsel %vm302, 1, 0
    %v305 = vsel %vm303, 1, 0
    %v306 = vcvt.s32.f32 %v304
    %v307 = vcvt.s32.f32 %v305
    %v308 = vld [vmem:[#allocation6] sm:$0xff]
    %v309 = vld [vmem:[#allocation6 + $0x8] sm:$0xff]
    %v311 = vsel %vm259, %v306, 0
    %v314 = vsel %vm259, %v307, 0
    %316 = vmatprep.subr.mxu0 0.0
    %317 = vmatpush1.msra.mxu0 0.0
    %318 = vmatprep.subr.mxu0 0.0
    %319 = vmatpush1.msra.mxu0 0.0
    %320 = vmatprep.subr.mxu0 0.0
    %321 = vmatpush1.msra.mxu0 0.0
    %322 = vmatprep.subr.mxu0 0.0
    %323 = vmatpush1.msra.mxu0 0.0
    %324 = vmatprep.subr.mxu0 0.0
    %325 = vmatpush1.msra.mxu0 0.0
    %326 = vmatprep.subr.mxu0 0.0
    %327 = vmatpush1.msra.mxu0 0.0
    %328 = vmatprep.subr.mxu0 0.0
    %329 = vmatpush1.msra.mxu0 0.0
    %330 = vmatprep.subr.mxu0 0.0
    %331 = vmatpush1.msra.mxu0 0.0
    %332 = vmatprep.subr.mxu0 0.0
    %333 = vmatpush1.msra.mxu0 0.0
    %334 = vmatprep.subr.mxu0 0.0
    %335 = vmatpush1.msra.mxu0 0.0
    %336 = vmatprep.subr.mxu0 0.0
    %337 = vmatpush1.msra.mxu0 0.0
    %338 = vmatprep.subr.mxu0 0.0
    %339 = vmatpush1.msra.mxu0 0.0
    %340 = vmatprep.subr.mxu0 0.0
    %341 = vmatpush1.msra.mxu0 0.0
    %342 = vmatprep.subr.mxu0 0.0
    %343 = vmatpush1.msra.mxu0 0.0
    %344 = vmatprep.subr.mxu0 0.0
    %345 = vmatpush1.msra.mxu0 %v309
    %346 = vmatprep.subr.mxu0 0.0
    %347 = vmatpush1.msra.mxu0 %v308
    %348 = vmatprep.subr.mxu0 0.0
    %349 = vmatpush2.msra.mxu0 0.0
    %350 = vmatprep.subr.mxu0 0.0
    %351 = vmatpush2.msra.mxu0 0.0
    %352 = vmatprep.subr.mxu0 0.0
    %353 = vmatpush2.msra.mxu0 0.0
    %354 = vmatprep.subr.mxu0 0.0
    %355 = vmatpush2.msra.mxu0 0.0
    %356 = vmatprep.subr.mxu0 0.0
    %357 = vmatpush2.msra.mxu0 0.0
    %358 = vmatprep.subr.mxu0 0.0
    %359 = vmatpush2.msra.mxu0 0.0
    %360 = vmatprep.subr.mxu0 0.0
    %361 = vmatpush2.msra.mxu0 0.0
    %362 = vmatprep.subr.mxu0 0.0
    %363 = vmatpush2.msra.mxu0 0.0
    %364 = vmatprep.subr.mxu0 0.0
    %365 = vmatpush2.msra.mxu0 0.0
    %366 = vmatprep.subr.mxu0 0.0
    %367 = vmatpush2.msra.mxu0 0.0
    %368 = vmatprep.subr.mxu0 0.0
    %369 = vmatpush2.msra.mxu0 0.0
    %370 = vmatprep.subr.mxu0 0.0
    %371 = vmatpush2.msra.mxu0 0.0
    %372 = vmatprep.subr.mxu0 0.0
    %373 = vmatpush2.msra.mxu0 0.0
    %374 = vmatprep.subr.mxu0 0.0
    %375 = vmatpush2.msra.mxu0 0.0
    %376 = vmatprep.subr.mxu0 0.0
    %377 = vmatpush2.msra.mxu0 0.0
    %378 = vmatprep.subr.mxu0 0.0
    %379 = vmatpush2.msra.mxu0 0.0
    %380 = vmatprep.mubr.f32.mxu0 0.0
    %381 = vmatmul.mubr.f32.gmra.mxu0 %v311
    %v382 = vpop.f32.mrf.mxu0
    %v383 = vadd.f32 0.0, %v382
    %v384 = vpop.f32.mrf.mxu0
    %385 = vmatprep.mubr.f32.mxu0 0.0
    %386 = vmatmul.mubr.f32.gmra.mxu0 %v314
    %v387 = vpop.f32.mrf.mxu0
    %v388 = vadd.f32 0.0, %v387
    %v389 = vpop.f32.mrf.mxu0
    %390 = vdwg.mxu0
    %v391 = vld [vmem:[#allocation11] sm:$0x3f]
    %v392 = vld [vmem:[%s5] sm:$0xff]
    %v393 = vld [vmem:[%s5 + $0x8] sm:$0xff]
    %v394 = vld [vmem:[%s5 + $0x10] sm:$0xff]
    %v395 = vld [vmem:[%s5 + $0x18] sm:$0xff]
    %v396 = vld [vmem:[#allocation8] sm:$0x1]
    %v398 = vlaneseq
    %v399 = vshrl.u32 %v398, 7
    %v400 = vsub.s32 0, %v399
    %v401 = vrot.slane %v396, %v400
    %v404 = vsel %vm167, %v383, 0
    %v407 = vsel %vm167, %v388, 0
    %409 = vmatprep.subr.mxu0 0.0
    %410 = vmatpush1.msra.mxu0 0.0
    %411 = vmatprep.subr.mxu0 0.0
    %412 = vmatpush1.msra.mxu0 0.0
    %413 = vmatprep.subr.mxu0 0.0
    %414 = vmatpush1.msra.mxu0 0.0
    %415 = vmatprep.subr.mxu0 0.0
    %416 = vmatpush1.msra.mxu0 0.0
    %417 = vmatprep.subr.mxu0 0.0
    %418 = vmatpush1.msra.mxu0 0.0
    %419 = vmatprep.subr.mxu0 0.0
    %420 = vmatpush1.msra.mxu0 0.0
    %421 = vmatprep.subr.mxu0 0.0
    %422 = vmatpush1.msra.mxu0 0.0
    %423 = vmatprep.subr.mxu0 0.0
    %424 = vmatpush1.msra.mxu0 0.0
    %425 = vmatprep.subr.mxu0 0.0
    %426 = vmatpush1.msra.mxu0 0.0
    %427 = vmatprep.subr.mxu0 0.0
    %428 = vmatpush1.msra.mxu0 0.0
    %429 = vmatprep.subr.mxu0 0.0
    %430 = vmatpush1.msra.mxu0 0.0
    %431 = vmatprep.subr.mxu0 0.0
    %432 = vmatpush1.msra.mxu0 0.0
    %433 = vmatprep.subr.mxu0 0.0
    %434 = vmatpush1.msra.mxu0 %v395
    %435 = vmatprep.subr.mxu0 0.0
    %436 = vmatpush1.msra.mxu0 %v394
    %437 = vmatprep.subr.mxu0 0.0
    %438 = vmatpush1.msra.mxu0 %v393
    %439 = vmatprep.subr.mxu0 0.0
    %440 = vmatpush1.msra.mxu0 %v392
    %441 = vmatprep.subr.mxu0 0.0
    %442 = vmatpush2.msra.mxu0 0.0
    %443 = vmatprep.subr.mxu0 0.0
    %444 = vmatpush2.msra.mxu0 0.0
    %445 = vmatprep.subr.mxu0 0.0
    %446 = vmatpush2.msra.mxu0 0.0
    %447 = vmatprep.subr.mxu0 0.0
    %448 = vmatpush2.msra.mxu0 0.0
    %449 = vmatprep.subr.mxu0 0.0
    %450 = vmatpush2.msra.mxu0 0.0
    %451 = vmatprep.subr.mxu0 0.0
    %452 = vmatpush2.msra.mxu0 0.0
    %453 = vmatprep.subr.mxu0 0.0
    %454 = vmatpush2.msra.mxu0 0.0
    %455 = vmatprep.subr.mxu0 0.0
    %456 = vmatpush2.msra.mxu0 0.0
    %457 = vmatprep.subr.mxu0 0.0
    %458 = vmatpush2.msra.mxu0 0.0
    %459 = vmatprep.subr.mxu0 0.0
    %460 = vmatpush2.msra.mxu0 0.0
    %461 = vmatprep.subr.mxu0 0.0
    %462 = vmatpush2.msra.mxu0 0.0
    %463 = vmatprep.subr.mxu0 0.0
    %464 = vmatpush2.msra.mxu0 0.0
    %465 = vmatprep.subr.mxu0 0.0
    %466 = vmatpush2.msra.mxu0 0.0
    %467 = vmatprep.subr.mxu0 0.0
    %468 = vmatpush2.msra.mxu0 0.0
    %469 = vmatprep.subr.mxu0 0.0
    %470 = vmatpush2.msra.mxu0 0.0
    %471 = vmatprep.subr.mxu0 0.0
    %472 = vmatpush2.msra.mxu0 0.0
    %473 = vmatprep.mubr.f32.mxu0 0.0
    %474 = vmatmul.mubr.f32.gmra.mxu0 %v404
    %v475 = vpop.f32.mrf.mxu0
    %v476 = vadd.f32 %v401, %v475
    %v477 = vpop.f32.mrf.mxu0
    %478 = vmatprep.mubr.f32.mxu0 0.0
    %479 = vmatmul.mubr.f32.gmra.mxu0 %v407
    %v480 = vpop.f32.mrf.mxu0
    %v481 = vadd.f32 %v401, %v480
    %v482 = vpop.f32.mrf.mxu0
    %483 = vdwg.mxu0
    %485 = vrot.lane.b32.xlu0 %v476, 96
    %v486 = vpop.permute.xlu0 %485
    %vm487 = vcmask 64512
    %v488 = vsel %vm487, %v476, 0
    %v490 = vsel %vm487, %v486, 0
    %492 = vmatprep.subr.mxu0 0.0
    %493 = vmatpush1.xpose.msra.mxu0 0.0
    %494 = vmatprep.subr.mxu0 0.0
    %495 = vmatpush1.xpose.msra.mxu0 0.0
    %496 = vmatprep.subr.mxu0 0.0
    %497 = vmatpush1.xpose.msra.mxu0 0.0
    %498 = vmatprep.subr.mxu0 0.0
    %499 = vmatpush1.xpose.msra.mxu0 0.0
    %500 = vmatprep.subr.mxu0 0.0
    %501 = vmatpush1.xpose.msra.mxu0 0.0
    %502 = vmatprep.subr.mxu0 0.0
    %503 = vmatpush1.xpose.msra.mxu0 0.0
    %504 = vmatprep.subr.mxu0 0.0
    %505 = vmatpush1.xpose.msra.mxu0 0.0
    %506 = vmatprep.subr.mxu0 0.0
    %507 = vmatpush1.xpose.msra.mxu0 0.0
    %508 = vmatprep.subr.mxu0 0.0
    %509 = vmatpush1.xpose.msra.mxu0 0.0
    %510 = vmatprep.subr.mxu0 0.0
    %511 = vmatpush1.xpose.msra.mxu0 0.0
    %512 = vmatprep.subr.mxu0 0.0
    %513 = vmatpush1.xpose.msra.mxu0 0.0
    %514 = vmatprep.subr.mxu0 0.0
    %515 = vmatpush1.xpose.msra.mxu0 0.0
    %516 = vmatprep.subr.mxu0 0.0
    %517 = vmatpush1.xpose.msra.mxu0 0.0
    %518 = vmatprep.subr.mxu0 0.0
    %519 = vmatpush1.xpose.msra.mxu0 0.0
    %520 = vmatprep.subr.mxu0 0.0
    %521 = vmatpush1.xpose.msra.mxu0 0.0
    %522 = vmatprep.subr.mxu0 0.0
    %523 = vmatpush1.xpose.msra.mxu0 %v490
    %524 = vmatprep.subr.mxu0 0.0
    %525 = vmatpush2.xpose.msra.mxu0 0.0
    %526 = vmatprep.subr.mxu0 0.0
    %527 = vmatpush2.xpose.msra.mxu0 0.0
    %528 = vmatprep.subr.mxu0 0.0
    %529 = vmatpush2.xpose.msra.mxu0 0.0
    %530 = vmatprep.subr.mxu0 0.0
    %531 = vmatpush2.xpose.msra.mxu0 0.0
    %532 = vmatprep.subr.mxu0 0.0
    %533 = vmatpush2.xpose.msra.mxu0 0.0
    %534 = vmatprep.subr.mxu0 0.0
    %535 = vmatpush2.xpose.msra.mxu0 0.0
    %536 = vmatprep.subr.mxu0 0.0
    %537 = vmatpush2.xpose.msra.mxu0 0.0
    %538 = vmatprep.subr.mxu0 0.0
    %539 = vmatpush2.xpose.msra.mxu0 0.0
    %540 = vmatprep.subr.mxu0 0.0
    %541 = vmatpush2.xpose.msra.mxu0 0.0
    %542 = vmatprep.subr.mxu0 0.0
    %543 = vmatpush2.xpose.msra.mxu0 0.0
    %544 = vmatprep.subr.mxu0 0.0
    %545 = vmatpush2.xpose.msra.mxu0 0.0
    %546 = vmatprep.subr.mxu0 0.0
    %547 = vmatpush2.xpose.msra.mxu0 0.0
    %548 = vmatprep.subr.mxu0 0.0
    %549 = vmatpush2.xpose.msra.mxu0 0.0
    %550 = vmatprep.subr.mxu0 0.0
    %551 = vmatpush2.xpose.msra.mxu0 0.0
    %552 = vmatprep.subr.mxu0 0.0
    %553 = vmatpush2.xpose.msra.mxu0 0.0
    %554 = vmatprep.subr.mxu0 0.0
    %555 = vmatpush2.xpose.msra.mxu0 0.0
    %556 = vmatprep.mubr.f32.mxu0 0.0
    %557 = vmatmul.mubr.f32.gmra.mxu0 %v488
    %v558 = vpop.f32.mrf.mxu0
    %v559 = vadd.f32 0.0, %v558
    %v560 = vpop.f32.mrf.mxu0
    %561 = vdwg.mxu0
    %v562 = vmul.f32 %v559, 0.35355338
    %v563 = vsel %vm487, %v562, -inf
    %564 = vmax.xlane.f32.xlu0 %v563
    %v565 = vpop.xlane.xlu0 %564
    %v566 = vsub.f32 %v562, %v565
    %v567 = vmul.f32 %v566, 1.442695
    %v568 = vpow.pop %v567
    %v569 = vsel %vm487, %v568, 0.0
    %570 = vadd.xlane.f32.xlu0 %v569
    %v571 = vpop.xlane.xlu0 %570
    %v572 = vrcp.pop %v571
    %v573 = vmul.f32 %v568, %v572
    %574 = vrot.lane.b32.xlu0 %v476, 64
    %v575 = vpop.permute.xlu0 %574
    %v578 = vsel %vm487, %v573, 0
    %580 = vmatprep.subr.mxu0 0.0
    %581 = vmatpush1.msra.mxu0 0.0
    %582 = vmatprep.subr.mxu0 0.0
    %583 = vmatpush1.msra.mxu0 0.0
    %584 = vmatprep.subr.mxu0 0.0
    %585 = vmatpush1.msra.mxu0 0.0
    %586 = vmatprep.subr.mxu0 0.0
    %587 = vmatpush1.msra.mxu0 0.0
    %588 = vmatprep.subr.mxu0 0.0
    %589 = vmatpush1.msra.mxu0 0.0
    %590 = vmatprep.subr.mxu0 0.0
    %591 = vmatpush1.msra.mxu0 0.0
    %592 = vmatprep.subr.mxu0 0.0
    %593 = vmatpush1.msra.mxu0 0.0
    %594 = vmatprep.subr.mxu0 0.0
    %595 = vmatpush1.msra.mxu0 0.0
    %596 = vmatprep.subr.mxu0 0.0
    %597 = vmatpush1.msra.mxu0 0.0
    %598 = vmatprep.subr.mxu0 0.0
    %599 = vmatpush1.msra.mxu0 0.0
    %600 = vmatprep.subr.mxu0 0.0
    %601 = vmatpush1.msra.mxu0 0.0
    %602 = vmatprep.subr.mxu0 0.0
    %603 = vmatpush1.msra.mxu0 0.0
    %604 = vmatprep.subr.mxu0 0.0
    %605 = vmatpush1.msra.mxu0 0.0
    %606 = vmatprep.subr.mxu0 0.0
    %607 = vmatpush1.msra.mxu0 0.0
    %608 = vmatprep.subr.mxu0 0.0
    %609 = vmatpush1.msra.mxu0 0.0
    %610 = vmatprep.subr.mxu0 0.0
    %611 = vmatpush1.msra.mxu0 %v575
    %612 = vmatprep.subr.mxu0 0.0
    %613 = vmatpush2.msra.mxu0 0.0
    %614 = vmatprep.subr.mxu0 0.0
    %615 = vmatpush2.msra.mxu0 0.0
    %616 = vmatprep.subr.mxu0 0.0
    %617 = vmatpush2.msra.mxu0 0.0
    %618 = vmatprep.subr.mxu0 0.0
    %619 = vmatpush2.msra.mxu0 0.0
    %620 = vmatprep.subr.mxu0 0.0
    %621 = vmatpush2.msra.mxu0 0.0
    %622 = vmatprep.subr.mxu0 0.0
    %623 = vmatpush2.msra.mxu0 0.0
    %624 = vmatprep.subr.mxu0 0.0
    %625 = vmatpush2.msra.mxu0 0.0
    %626 = vmatprep.subr.mxu0 0.0
    %627 = vmatpush2.msra.mxu0 0.0
    %628 = vmatprep.subr.mxu0 0.0
    %629 = vmatpush2.msra.mxu0 0.0
    %630 = vmatprep.subr.mxu0 0.0
    %631 = vmatpush2.msra.mxu0 0.0
    %632 = vmatprep.subr.mxu0 0.0
    %633 = vmatpush2.msra.mxu0 0.0
    %634 = vmatprep.subr.mxu0 0.0
    %635 = vmatpush2.msra.mxu0 0.0
    %636 = vmatprep.subr.mxu0 0.0
    %637 = vmatpush2.msra.mxu0 0.0
    %638 = vmatprep.subr.mxu0 0.0
    %639 = vmatpush2.msra.mxu0 0.0
    %640 = vmatprep.subr.mxu0 0.0
    %641 = vmatpush2.msra.mxu0 0.0
    %642 = vmatprep.subr.mxu0 0.0
    %643 = vmatpush2.msra.mxu0 0.0
    %644 = vmatprep.mubr.f32.mxu0 0.0
    %645 = vmatmul.mubr.f32.gmra.mxu0 %v578
    %v646 = vpop.f32.mrf.mxu0
    %v647 = vadd.f32 0.0, %v646
    %v648 = vpop.f32.mrf.mxu0
    %649 = vdwg.mxu0
    %650 = vst.msk [vmem:[#allocation2] sm:$0xff] %vm487, %v647
    %651 = vrot.lane.b32.xlu0 %v476, 120
    %v652 = vpop.permute.xlu0 %651
    %653 = vrot.lane.b32.xlu0 %v476, 88
    %v654 = vpop.permute.xlu0 %653
    %v655 = vsel %vm487, %v652, 0
    %v657 = vsel %vm487, %v654, 0
    %659 = vmatprep.subr.mxu0 0.0
    %660 = vmatpush1.xpose.msra.mxu0 0.0
    %661 = vmatprep.subr.mxu0 0.0
    %662 = vmatpush1.xpose.msra.mxu0 0.0
    %663 = vmatprep.subr.mxu0 0.0
    %664 = vmatpush1.xpose.msra.mxu0 0.0
    %665 = vmatprep.subr.mxu0 0.0
    %666 = vmatpush1.xpose.msra.mxu0 0.0
    %667 = vmatprep.subr.mxu0 0.0
    %668 = vmatpush1.xpose.msra.mxu0 0.0
    %669 = vmatprep.subr.mxu0 0.0
    %670 = vmatpush1.xpose.msra.mxu0 0.0
    %671 = vmatprep.subr.mxu0 0.0
    %672 = vmatpush1.xpose.msra.mxu0 0.0
    %673 = vmatprep.subr.mxu0 0.0
    %674 = vmatpush1.xpose.msra.mxu0 0.0
    %675 = vmatprep.subr.mxu0 0.0
    %676 = vmatpush1.xpose.msra.mxu0 0.0
    %677 = vmatprep.subr.mxu0 0.0
    %678 = vmatpush1.xpose.msra.mxu0 0.0
    %679 = vmatprep.subr.mxu0 0.0
    %680 = vmatpush1.xpose.msra.mxu0 0.0
    %681 = vmatprep.subr.mxu0 0.0
    %682 = vmatpush1.xpose.msra.mxu0 0.0
    %683 = vmatprep.subr.mxu0 0.0
    %684 = vmatpush1.xpose.msra.mxu0 0.0
    %685 = vmatprep.subr.mxu0 0.0
    %686 = vmatpush1.xpose.msra.mxu0 0.0
    %687 = vmatprep.subr.mxu0 0.0
    %688 = vmatpush1.xpose.msra.mxu0 0.0
    %689 = vmatprep.subr.mxu0 0.0
    %690 = vmatpush1.xpose.msra.mxu0 %v657
    %691 = vmatprep.subr.mxu0 0.0
    %692 = vmatpush2.xpose.msra.mxu0 0.0
    %693 = vmatprep.subr.mxu0 0.0
    %694 = vmatpush2.xpose.msra.mxu0 0.0
    %695 = vmatprep.subr.mxu0 0.0
    %696 = vmatpush2.xpose.msra.mxu0 0.0
    %697 = vmatprep.subr.mxu0 0.0
    %698 = vmatpush2.xpose.msra.mxu0 0.0
    %699 = vmatprep.subr.mxu0 0.0
    %700 = vmatpush2.xpose.msra.mxu0 0.0
    %701 = vmatprep.subr.mxu0 0.0
    %702 = vmatpush2.xpose.msra.mxu0 0.0
    %703 = vmatprep.subr.mxu0 0.0
    %704 = vmatpush2.xpose.msra.mxu0 0.0
    %705 = vmatprep.subr.mxu0 0.0
    %706 = vmatpush2.xpose.msra.mxu0 0.0
    %707 = vmatprep.subr.mxu0 0.0
    %708 = vmatpush2.xpose.msra.mxu0 0.0
    %709 = vmatprep.subr.mxu0 0.0
    %710 = vmatpush2.xpose.msra.mxu0 0.0
    %711 = vmatprep.subr.mxu0 0.0
    %712 = vmatpush2.xpose.msra.mxu0 0.0
    %713 = vmatprep.subr.mxu0 0.0
    %714 = vmatpush2.xpose.msra.mxu0 0.0
    %715 = vmatprep.subr.mxu0 0.0
    %716 = vmatpush2.xpose.msra.mxu0 0.0
    %717 = vmatprep.subr.mxu0 0.0
    %718 = vmatpush2.xpose.msra.mxu0 0.0
    %719 = vmatprep.subr.mxu0 0.0
    %720 = vmatpush2.xpose.msra.mxu0 0.0
    %721 = vmatprep.subr.mxu0 0.0
    %722 = vmatpush2.xpose.msra.mxu0 0.0
    %723 = vmatprep.mubr.f32.mxu0 0.0
    %724 = vmatmul.mubr.f32.gmra.mxu0 %v655
    %v725 = vpop.f32.mrf.mxu0
    %v726 = vadd.f32 0.0, %v725
    %v727 = vpop.f32.mrf.mxu0
    %728 = vdwg.mxu0
    %v729 = vmul.f32 %v726, 0.35355338
    %v730 = vsel %vm487, %v729, -inf
    %731 = vmax.xlane.f32.xlu0 %v730
    %v732 = vpop.xlane.xlu0 %731
    %v733 = vsub.f32 %v729, %v732
    %v734 = vmul.f32 %v733, 1.442695
    %v735 = vpow.pop %v734
    %v736 = vsel %vm487, %v735, 0.0
    %737 = vadd.xlane.f32.xlu0 %v736
    %v738 = vpop.xlane.xlu0 %737
    %v739 = vrcp.pop %v738
    %v740 = vmul.f32 %v735, %v739
    %741 = vrot.lane.b32.xlu0 %v476, 56
    %v742 = vpop.permute.xlu0 %741
    %v745 = vsel %vm487, %v740, 0
    %747 = vmatprep.subr.mxu0 0.0
    %748 = vmatpush1.msra.mxu0 0.0
    %749 = vmatprep.subr.mxu0 0.0
    %750 = vmatpush1.msra.mxu0 0.0
    %751 = vmatprep.subr.mxu0 0.0
    %752 = vmatpush1.msra.mxu0 0.0
    %753 = vmatprep.subr.mxu0 0.0
    %754 = vmatpush1.msra.mxu0 0.0
    %755 = vmatprep.subr.mxu0 0.0
    %756 = vmatpush1.msra.mxu0 0.0
    %757 = vmatprep.subr.mxu0 0.0
    %758 = vmatpush1.msra.mxu0 0.0
    %759 = vmatprep.subr.mxu0 0.0
    %760 = vmatpush1.msra.mxu0 0.0
    %761 = vmatprep.subr.mxu0 0.0
    %762 = vmatpush1.msra.mxu0 0.0
    %763 = vmatprep.subr.mxu0 0.0
    %764 = vmatpush1.msra.mxu0 0.0
    %765 = vmatprep.subr.mxu0 0.0
    %766 = vmatpush1.msra.mxu0 0.0
    %767 = vmatprep.subr.mxu0 0.0
    %768 = vmatpush1.msra.mxu0 0.0
    %769 = vmatprep.subr.mxu0 0.0
    %770 = vmatpush1.msra.mxu0 0.0
    %771 = vmatprep.subr.mxu0 0.0
    %772 = vmatpush1.msra.mxu0 0.0
    %773 = vmatprep.subr.mxu0 0.0
    %774 = vmatpush1.msra.mxu0 0.0
    %775 = vmatprep.subr.mxu0 0.0
    %776 = vmatpush1.msra.mxu0 0.0
    %777 = vmatprep.subr.mxu0 0.0
    %778 = vmatpush1.msra.mxu0 %v742
    %779 = vmatprep.subr.mxu0 0.0
    %780 = vmatpush2.msra.mxu0 0.0
    %781 = vmatprep.subr.mxu0 0.0
    %782 = vmatpush2.msra.mxu0 0.0
    %783 = vmatprep.subr.mxu0 0.0
    %784 = vmatpush2.msra.mxu0 0.0
    %785 = vmatprep.subr.mxu0 0.0
    %786 = vmatpush2.msra.mxu0 0.0
    %787 = vmatprep.subr.mxu0 0.0
    %788 = vmatpush2.msra.mxu0 0.0
    %789 = vmatprep.subr.mxu0 0.0
    %790 = vmatpush2.msra.mxu0 0.0
    %791 = vmatprep.subr.mxu0 0.0
    %792 = vmatpush2.msra.mxu0 0.0
    %793 = vmatprep.subr.mxu0 0.0
    %794 = vmatpush2.msra.mxu0 0.0
    %795 = vmatprep.subr.mxu0 0.0
    %796 = vmatpush2.msra.mxu0 0.0
    %797 = vmatprep.subr.mxu0 0.0
    %798 = vmatpush2.msra.mxu0 0.0
    %799 = vmatprep.subr.mxu0 0.0
    %800 = vmatpush2.msra.mxu0 0.0
    %801 = vmatprep.subr.mxu0 0.0
    %802 = vmatpush2.msra.mxu0 0.0
    %803 = vmatprep.subr.mxu0 0.0
    %804 = vmatpush2.msra.mxu0 0.0
    %805 = vmatprep.subr.mxu0 0.0
    %806 = vmatpush2.msra.mxu0 0.0
    %807 = vmatprep.subr.mxu0 0.0
    %808 = vmatpush2.msra.mxu0 0.0
    %809 = vmatprep.subr.mxu0 0.0
    %810 = vmatpush2.msra.mxu0 0.0
    %811 = vmatprep.mubr.f32.mxu0 0.0
    %812 = vmatmul.mubr.f32.gmra.mxu0 %v745
    %v813 = vpop.f32.mrf.mxu0
    %v814 = vadd.f32 0.0, %v813
    %v815 = vpop.f32.mrf.mxu0
    %816 = vdwg.mxu0
    %818 = vrot.lane.b32.xlu0 %v814, 8
    %v819 = vpop.permute.xlu0 %818
    %vm821 = vcmask 130112
    %822 = vst.msk [vmem:[#allocation2] sm:$0xff] %vm821, %v819
    %823 = vrot.lane.b32.xlu0 %v476, 112
    %v824 = vpop.permute.xlu0 %823
    %825 = vrot.lane.b32.xlu0 %v476, 80
    %v826 = vpop.permute.xlu0 %825
    %v827 = vsel %vm487, %v824, 0
    %v829 = vsel %vm487, %v826, 0
    %831 = vmatprep.subr.mxu0 0.0
    %832 = vmatpush1.xpose.msra.mxu0 0.0
    %833 = vmatprep.subr.mxu0 0.0
    %834 = vmatpush1.xpose.msra.mxu0 0.0
    %835 = vmatprep.subr.mxu0 0.0
    %836 = vmatpush1.xpose.msra.mxu0 0.0
    %837 = vmatprep.subr.mxu0 0.0
    %838 = vmatpush1.xpose.msra.mxu0 0.0
    %839 = vmatprep.subr.mxu0 0.0
    %840 = vmatpush1.xpose.msra.mxu0 0.0
    %841 = vmatprep.subr.mxu0 0.0
    %842 = vmatpush1.xpose.msra.mxu0 0.0
    %843 = vmatprep.subr.mxu0 0.0
    %844 = vmatpush1.xpose.msra.mxu0 0.0
    %845 = vmatprep.subr.mxu0 0.0
    %846 = vmatpush1.xpose.msra.mxu0 0.0
    %847 = vmatprep.subr.mxu0 0.0
    %848 = vmatpush1.xpose.msra.mxu0 0.0
    %849 = vmatprep.subr.mxu0 0.0
    %850 = vmatpush1.xpose.msra.mxu0 0.0
    %851 = vmatprep.subr.mxu0 0.0
    %852 = vmatpush1.xpose.msra.mxu0 0.0
    %853 = vmatprep.subr.mxu0 0.0
    %854 = vmatpush1.xpose.msra.mxu0 0.0
    %855 = vmatprep.subr.mxu0 0.0
    %856 = vmatpush1.xpose.msra.mxu0 0.0
    %857 = vmatprep.subr.mxu0 0.0
    %858 = vmatpush1.xpose.msra.mxu0 0.0
    %859 = vmatprep.subr.mxu0 0.0
    %860 = vmatpush1.xpose.msra.mxu0 0.0
    %861 = vmatprep.subr.mxu0 0.0
    %862 = vmatpush1.xpose.msra.mxu0 %v829
    %863 = vmatprep.subr.mxu0 0.0
    %864 = vmatpush2.xpose.msra.mxu0 0.0
    %865 = vmatprep.subr.mxu0 0.0
    %866 = vmatpush2.xpose.msra.mxu0 0.0
    %867 = vmatprep.subr.mxu0 0.0
    %868 = vmatpush2.xpose.msra.mxu0 0.0
    %869 = vmatprep.subr.mxu0 0.0
    %870 = vmatpush2.xpose.msra.mxu0 0.0
    %871 = vmatprep.subr.mxu0 0.0
    %872 = vmatpush2.xpose.msra.mxu0 0.0
    %873 = vmatprep.subr.mxu0 0.0
    %874 = vmatpush2.xpose.msra.mxu0 0.0
    %875 = vmatprep.subr.mxu0 0.0
    %876 = vmatpush2.xpose.msra.mxu0 0.0
    %877 = vmatprep.subr.mxu0 0.0
    %878 = vmatpush2.xpose.msra.mxu0 0.0
    %879 = vmatprep.subr.mxu0 0.0
    %880 = vmatpush2.xpose.msra.mxu0 0.0
    %881 = vmatprep.subr.mxu0 0.0
    %882 = vmatpush2.xpose.msra.mxu0 0.0
    %883 = vmatprep.subr.mxu0 0.0
    %884 = vmatpush2.xpose.msra.mxu0 0.0
    %885 = vmatprep.subr.mxu0 0.0
    %886 = vmatpush2.xpose.msra.mxu0 0.0
    %887 = vmatprep.subr.mxu0 0.0
    %888 = vmatpush2.xpose.msra.mxu0 0.0
    %889 = vmatprep.subr.mxu0 0.0
    %890 = vmatpush2.xpose.msra.mxu0 0.0
    %891 = vmatprep.subr.mxu0 0.0
    %892 = vmatpush2.xpose.msra.mxu0 0.0
    %893 = vmatprep.subr.mxu0 0.0
    %894 = vmatpush2.xpose.msra.mxu0 0.0
    %895 = vmatprep.mubr.f32.mxu0 0.0
    %896 = vmatmul.mubr.f32.gmra.mxu0 %v827
    %v897 = vpop.f32.mrf.mxu0
    %v898 = vadd.f32 0.0, %v897
    %v899 = vpop.f32.mrf.mxu0
    %900 = vdwg.mxu0
    %v901 = vmul.f32 %v898, 0.35355338
    %v902 = vsel %vm487, %v901, -inf
    %903 = vmax.xlane.f32.xlu0 %v902
    %v904 = vpop.xlane.xlu0 %903
    %v905 = vsub.f32 %v901, %v904
    %v906 = vmul.f32 %v905, 1.442695
    %v907 = vpow.pop %v906
    %v908 = vsel %vm487, %v907, 0.0
    %909 = vadd.xlane.f32.xlu0 %v908
    %v910 = vpop.xlane.xlu0 %909
    %v911 = vrcp.pop %v910
    %v912 = vmul.f32 %v907, %v911
    %913 = vrot.lane.b32.xlu0 %v476, 48
    %v914 = vpop.permute.xlu0 %913
    %v917 = vsel %vm487, %v912, 0
    %919 = vmatprep.subr.mxu0 0.0
    %920 = vmatpush1.msra.mxu0 0.0
    %921 = vmatprep.subr.mxu0 0.0
    %922 = vmatpush1.msra.mxu0 0.0
    %923 = vmatprep.subr.mxu0 0.0
    %924 = vmatpush1.msra.mxu0 0.0
    %925 = vmatprep.subr.mxu0 0.0
    %926 = vmatpush1.msra.mxu0 0.0
    %927 = vmatprep.subr.mxu0 0.0
    %928 = vmatpush1.msra.mxu0 0.0
    %929 = vmatprep.subr.mxu0 0.0
    %930 = vmatpush1.msra.mxu0 0.0
    %931 = vmatprep.subr.mxu0 0.0
    %932 = vmatpush1.msra.mxu0 0.0
    %933 = vmatprep.subr.mxu0 0.0
    %934 = vmatpush1.msra.mxu0 0.0
    %935 = vmatprep.subr.mxu0 0.0
    %936 = vmatpush1.msra.mxu0 0.0
    %937 = vmatprep.subr.mxu0 0.0
    %938 = vmatpush1.msra.mxu0 0.0
    %939 = vmatprep.subr.mxu0 0.0
    %940 = vmatpush1.msra.mxu0 0.0
    %941 = vmatprep.subr.mxu0 0.0
    %942 = vmatpush1.msra.mxu0 0.0
    %943 = vmatprep.subr.mxu0 0.0
    %944 = vmatpush1.msra.mxu0 0.0
    %945 = vmatprep.subr.mxu0 0.0
    %946 = vmatpush1.msra.mxu0 0.0
    %947 = vmatprep.subr.mxu0 0.0
    %948 = vmatpush1.msra.mxu0 0.0
    %949 = vmatprep.subr.mxu0 0.0
    %950 = vmatpush1.msra.mxu0 %v914
    %951 = vmatprep.subr.mxu0 0.0
    %952 = vmatpush2.msra.mxu0 0.0
    %953 = vmatprep.subr.mxu0 0.0
    %954 = vmatpush2.msra.mxu0 0.0
    %955 = vmatprep.subr.mxu0 0.0
    %956 = vmatpush2.msra.mxu0 0.0
    %957 = vmatprep.subr.mxu0 0.0
    %958 = vmatpush2.msra.mxu0 0.0
    %959 = vmatprep.subr.mxu0 0.0
    %960 = vmatpush2.msra.mxu0 0.0
    %961 = vmatprep.subr.mxu0 0.0
    %962 = vmatpush2.msra.mxu0 0.0
    %963 = vmatprep.subr.mxu0 0.0
    %964 = vmatpush2.msra.mxu0 0.0
    %965 = vmatprep.subr.mxu0 0.0
    %966 = vmatpush2.msra.mxu0 0.0
    %967 = vmatprep.subr.mxu0 0.0
    %968 = vmatpush2.msra.mxu0 0.0
    %969 = vmatprep.subr.mxu0 0.0
    %970 = vmatpush2.msra.mxu0 0.0
    %971 = vmatprep.subr.mxu0 0.0
    %972 = vmatpush2.msra.mxu0 0.0
    %973 = vmatprep.subr.mxu0 0.0
    %974 = vmatpush2.msra.mxu0 0.0
    %975 = vmatprep.subr.mxu0 0.0
    %976 = vmatpush2.msra.mxu0 0.0
    %977 = vmatprep.subr.mxu0 0.0
    %978 = vmatpush2.msra.mxu0 0.0
    %979 = vmatprep.subr.mxu0 0.0
    %980 = vmatpush2.msra.mxu0 0.0
    %981 = vmatprep.subr.mxu0 0.0
    %982 = vmatpush2.msra.mxu0 0.0
    %983 = vmatprep.mubr.f32.mxu0 0.0
    %984 = vmatmul.mubr.f32.gmra.mxu0 %v917
    %v985 = vpop.f32.mrf.mxu0
    %v986 = vadd.f32 0.0, %v985
    %v987 = vpop.f32.mrf.mxu0
    %988 = vdwg.mxu0
    %990 = vrot.lane.b32.xlu0 %v986, 16
    %v991 = vpop.permute.xlu0 %990
    %vm993 = vcmask 195712
    %994 = vst.msk [vmem:[#allocation2] sm:$0xff] %vm993, %v991
    %995 = vrot.lane.b32.xlu0 %v476, 104
    %v996 = vpop.permute.xlu0 %995
    %997 = vrot.lane.b32.xlu0 %v476, 72
    %v998 = vpop.permute.xlu0 %997
    %v999 = vsel %vm487, %v996, 0
    %v1001 = vsel %vm487, %v998, 0
    %1003 = vmatprep.subr.mxu0 0.0
    %1004 = vmatpush1.xpose.msra.mxu0 0.0
    %1005 = vmatprep.subr.mxu0 0.0
    %1006 = vmatpush1.xpose.msra.mxu0 0.0
    %1007 = vmatprep.subr.mxu0 0.0
    %1008 = vmatpush1.xpose.msra.mxu0 0.0
    %1009 = vmatprep.subr.mxu0 0.0
    %1010 = vmatpush1.xpose.msra.mxu0 0.0
    %1011 = vmatprep.subr.mxu0 0.0
    %1012 = vmatpush1.xpose.msra.mxu0 0.0
    %1013 = vmatprep.subr.mxu0 0.0
    %1014 = vmatpush1.xpose.msra.mxu0 0.0
    %1015 = vmatprep.subr.mxu0 0.0
    %1016 = vmatpush1.xpose.msra.mxu0 0.0
    %1017 = vmatprep.subr.mxu0 0.0
    %1018 = vmatpush1.xpose.msra.mxu0 0.0
    %1019 = vmatprep.subr.mxu0 0.0
    %1020 = vmatpush1.xpose.msra.mxu0 0.0
    %1021 = vmatprep.subr.mxu0 0.0
    %1022 = vmatpush1.xpose.msra.mxu0 0.0
    %1023 = vmatprep.subr.mxu0 0.0
    %1024 = vmatpush1.xpose.msra.mxu0 0.0
    %1025 = vmatprep.subr.mxu0 0.0
    %1026 = vmatpush1.xpose.msra.mxu0 0.0
    %1027 = vmatprep.subr.mxu0 0.0
    %1028 = vmatpush1.xpose.msra.mxu0 0.0
    %1029 = vmatprep.subr.mxu0 0.0
    %1030 = vmatpush1.xpose.msra.mxu0 0.0
    %1031 = vmatprep.subr.mxu0 0.0
    %1032 = vmatpush1.xpose.msra.mxu0 0.0
    %1033 = vmatprep.subr.mxu0 0.0
    %1034 = vmatpush1.xpose.msra.mxu0 %v1001
    %1035 = vmatprep.subr.mxu0 0.0
    %1036 = vmatpush2.xpose.msra.mxu0 0.0
    %1037 = vmatprep.subr.mxu0 0.0
    %1038 = vmatpush2.xpose.msra.mxu0 0.0
    %1039 = vmatprep.subr.mxu0 0.0
    %1040 = vmatpush2.xpose.msra.mxu0 0.0
    %1041 = vmatprep.subr.mxu0 0.0
    %1042 = vmatpush2.xpose.msra.mxu0 0.0
    %1043 = vmatprep.subr.mxu0 0.0
    %1044 = vmatpush2.xpose.msra.mxu0 0.0
    %1045 = vmatprep.subr.mxu0 0.0
    %1046 = vmatpush2.xpose.msra.mxu0 0.0
    %1047 = vmatprep.subr.mxu0 0.0
    %1048 = vmatpush2.xpose.msra.mxu0 0.0
    %1049 = vmatprep.subr.mxu0 0.0
    %1050 = vmatpush2.xpose.msra.mxu0 0.0
    %1051 = vmatprep.subr.mxu0 0.0
    %1052 = vmatpush2.xpose.msra.mxu0 0.0
    %1053 = vmatprep.subr.mxu0 0.0
    %1054 = vmatpush2.xpose.msra.mxu0 0.0
    %1055 = vmatprep.subr.mxu0 0.0
    %1056 = vmatpush2.xpose.msra.mxu0 0.0
    %1057 = vmatprep.subr.mxu0 0.0
    %1058 = vmatpush2.xpose.msra.mxu0 0.0
    %1059 = vmatprep.subr.mxu0 0.0
    %1060 = vmatpush2.xpose.msra.mxu0 0.0
    %1061 = vmatprep.subr.mxu0 0.0
    %1062 = vmatpush2.xpose.msra.mxu0 0.0
    %1063 = vmatprep.subr.mxu0 0.0
    %1064 = vmatpush2.xpose.msra.mxu0 0.0
    %1065 = vmatprep.subr.mxu0 0.0
    %1066 = vmatpush2.xpose.msra.mxu0 0.0
    %1067 = vmatprep.mubr.f32.mxu0 0.0
    %1068 = vmatmul.mubr.f32.gmra.mxu0 %v999
    %v1069 = vpop.f32.mrf.mxu0
    %v1070 = vadd.f32 0.0, %v1069
    %v1071 = vpop.f32.mrf.mxu0
    %1072 = vdwg.mxu0
    %v1073 = vmul.f32 %v1070, 0.35355338
    %v1074 = vsel %vm487, %v1073, -inf
    %1075 = vmax.xlane.f32.xlu0 %v1074
    %v1076 = vpop.xlane.xlu0 %1075
    %v1077 = vsub.f32 %v1073, %v1076
    %v1078 = vmul.f32 %v1077, 1.442695
    %v1079 = vpow.pop %v1078
    %v1080 = vsel %vm487, %v1079, 0.0
    %1081 = vadd.xlane.f32.xlu0 %v1080
    %v1082 = vpop.xlane.xlu0 %1081
    %v1083 = vrcp.pop %v1082
    %v1084 = vmul.f32 %v1079, %v1083
    %1085 = vrot.lane.b32.xlu0 %v476, 40
    %v1086 = vpop.permute.xlu0 %1085
    %v1089 = vsel %vm487, %v1084, 0
    %1091 = vmatprep.subr.mxu0 0.0
    %1092 = vmatpush1.msra.mxu0 0.0
    %1093 = vmatprep.subr.mxu0 0.0
    %1094 = vmatpush1.msra.mxu0 0.0
    %1095 = vmatprep.subr.mxu0 0.0
    %1096 = vmatpush1.msra.mxu0 0.0
    %1097 = vmatprep.subr.mxu0 0.0
    %1098 = vmatpush1.msra.mxu0 0.0
    %1099 = vmatprep.subr.mxu0 0.0
    %1100 = vmatpush1.msra.mxu0 0.0
    %1101 = vmatprep.subr.mxu0 0.0
    %1102 = vmatpush1.msra.mxu0 0.0
    %1103 = vmatprep.subr.mxu0 0.0
    %1104 = vmatpush1.msra.mxu0 0.0
    %1105 = vmatprep.subr.mxu0 0.0
    %1106 = vmatpush1.msra.mxu0 0.0
    %1107 = vmatprep.subr.mxu0 0.0
    %1108 = vmatpush1.msra.mxu0 0.0
    %1109 = vmatprep.subr.mxu0 0.0
    %1110 = vmatpush1.msra.mxu0 0.0
    %1111 = vmatprep.subr.mxu0 0.0
    %1112 = vmatpush1.msra.mxu0 0.0
    %1113 = vmatprep.subr.mxu0 0.0
    %1114 = vmatpush1.msra.mxu0 0.0
    %1115 = vmatprep.subr.mxu0 0.0
    %1116 = vmatpush1.msra.mxu0 0.0
    %1117 = vmatprep.subr.mxu0 0.0
    %1118 = vmatpush1.msra.mxu0 0.0
    %1119 = vmatprep.subr.mxu0 0.0
    %1120 = vmatpush1.msra.mxu0 0.0
    %1121 = vmatprep.subr.mxu0 0.0
    %1122 = vmatpush1.msra.mxu0 %v1086
    %1123 = vmatprep.subr.mxu0 0.0
    %1124 = vmatpush2.msra.mxu0 0.0
    %1125 = vmatprep.subr.mxu0 0.0
    %1126 = vmatpush2.msra.mxu0 0.0
    %1127 = vmatprep.subr.mxu0 0.0
    %1128 = vmatpush2.msra.mxu0 0.0
    %1129 = vmatprep.subr.mxu0 0.0
    %1130 = vmatpush2.msra.mxu0 0.0
    %1131 = vmatprep.subr.mxu0 0.0
    %1132 = vmatpush2.msra.mxu0 0.0
    %1133 = vmatprep.subr.mxu0 0.0
    %1134 = vmatpush2.msra.mxu0 0.0
    %1135 = vmatprep.subr.mxu0 0.0
    %1136 = vmatpush2.msra.mxu0 0.0
    %1137 = vmatprep.subr.mxu0 0.0
    %1138 = vmatpush2.msra.mxu0 0.0
    %1139 = vmatprep.subr.mxu0 0.0
    %1140 = vmatpush2.msra.mxu0 0.0
    %1141 = vmatprep.subr.mxu0 0.0
    %1142 = vmatpush2.msra.mxu0 0.0
    %1143 = vmatprep.subr.mxu0 0.0
    %1144 = vmatpush2.msra.mxu0 0.0
    %1145 = vmatprep.subr.mxu0 0.0
    %1146 = vmatpush2.msra.mxu0 0.0
    %1147 = vmatprep.subr.mxu0 0.0
    %1148 = vmatpush2.msra.mxu0 0.0
    %1149 = vmatprep.subr.mxu0 0.0
    %1150 = vmatpush2.msra.mxu0 0.0
    %1151 = vmatprep.subr.mxu0 0.0
    %1152 = vmatpush2.msra.mxu0 0.0
    %1153 = vmatprep.subr.mxu0 0.0
    %1154 = vmatpush2.msra.mxu0 0.0
    %1155 = vmatprep.mubr.f32.mxu0 0.0
    %1156 = vmatmul.mubr.f32.gmra.mxu0 %v1089
    %v1157 = vpop.f32.mrf.mxu0
    %v1158 = vadd.f32 0.0, %v1157
    %v1159 = vpop.f32.mrf.mxu0
    %1160 = vdwg.mxu0
    %1162 = vrot.lane.b32.xlu0 %v1158, 24
    %v1163 = vpop.permute.xlu0 %1162
    %vm1165 = vcmask 261312
    %1166 = vst.msk [vmem:[#allocation2] sm:$0xff] %vm1165, %v1163
    %1168 = vrot.lane.b32.xlu0 %v481, 96
    %v1169 = vpop.permute.xlu0 %1168
    %v1170 = vsel %vm487, %v481, 0
    %v1172 = vsel %vm487, %v1169, 0
    %1174 = vmatprep.subr.mxu0 0.0
    %1175 = vmatpush1.xpose.msra.mxu0 0.0
    %1176 = vmatprep.subr.mxu0 0.0
    %1177 = vmatpush1.xpose.msra.mxu0 0.0
    %1178 = vmatprep.subr.mxu0 0.0
    %1179 = vmatpush1.xpose.msra.mxu0 0.0
    %1180 = vmatprep.subr.mxu0 0.0
    %1181 = vmatpush1.xpose.msra.mxu0 0.0
    %1182 = vmatprep.subr.mxu0 0.0
    %1183 = vmatpush1.xpose.msra.mxu0 0.0
    %1184 = vmatprep.subr.mxu0 0.0
    %1185 = vmatpush1.xpose.msra.mxu0 0.0
    %1186 = vmatprep.subr.mxu0 0.0
    %1187 = vmatpush1.xpose.msra.mxu0 0.0
    %1188 = vmatprep.subr.mxu0 0.0
    %1189 = vmatpush1.xpose.msra.mxu0 0.0
    %1190 = vmatprep.subr.mxu0 0.0
    %1191 = vmatpush1.xpose.msra.mxu0 0.0
    %1192 = vmatprep.subr.mxu0 0.0
    %1193 = vmatpush1.xpose.msra.mxu0 0.0
    %1194 = vmatprep.subr.mxu0 0.0
    %1195 = vmatpush1.xpose.msra.mxu0 0.0
    %1196 = vmatprep.subr.mxu0 0.0
    %1197 = vmatpush1.xpose.msra.mxu0 0.0
    %1198 = vmatprep.subr.mxu0 0.0
    %1199 = vmatpush1.xpose.msra.mxu0 0.0
    %1200 = vmatprep.subr.mxu0 0.0
    %1201 = vmatpush1.xpose.msra.mxu0 0.0
    %1202 = vmatprep.subr.mxu0 0.0
    %1203 = vmatpush1.xpose.msra.mxu0 0.0
    %1204 = vmatprep.subr.mxu0 0.0
    %1205 = vmatpush1.xpose.msra.mxu0 %v1172
    %1206 = vmatprep.subr.mxu0 0.0
    %1207 = vmatpush2.xpose.msra.mxu0 0.0
    %1208 = vmatprep.subr.mxu0 0.0
    %1209 = vmatpush2.xpose.msra.mxu0 0.0
    %1210 = vmatprep.subr.mxu0 0.0
    %1211 = vmatpush2.xpose.msra.mxu0 0.0
    %1212 = vmatprep.subr.mxu0 0.0
    %1213 = vmatpush2.xpose.msra.mxu0 0.0
    %1214 = vmatprep.subr.mxu0 0.0
    %1215 = vmatpush2.xpose.msra.mxu0 0.0
    %1216 = vmatprep.subr.mxu0 0.0
    %1217 = vmatpush2.xpose.msra.mxu0 0.0
    %1218 = vmatprep.subr.mxu0 0.0
    %1219 = vmatpush2.xpose.msra.mxu0 0.0
    %1220 = vmatprep.subr.mxu0 0.0
    %1221 = vmatpush2.xpose.msra.mxu0 0.0
    %1222 = vmatprep.subr.mxu0 0.0
    %1223 = vmatpush2.xpose.msra.mxu0 0.0
    %1224 = vmatprep.subr.mxu0 0.0
    %1225 = vmatpush2.xpose.msra.mxu0 0.0
    %1226 = vmatprep.subr.mxu0 0.0
    %1227 = vmatpush2.xpose.msra.mxu0 0.0
    %1228 = vmatprep.subr.mxu0 0.0
    %1229 = vmatpush2.xpose.msra.mxu0 0.0
    %1230 = vmatprep.subr.mxu0 0.0
    %1231 = vmatpush2.xpose.msra.mxu0 0.0
    %1232 = vmatprep.subr.mxu0 0.0
    %1233 = vmatpush2.xpose.msra.mxu0 0.0
    %1234 = vmatprep.subr.mxu0 0.0
    %1235 = vmatpush2.xpose.msra.mxu0 0.0
    %1236 = vmatprep.subr.mxu0 0.0
    %1237 = vmatpush2.xpose.msra.mxu0 0.0
    %1238 = vmatprep.mubr.f32.mxu0 0.0
    %1239 = vmatmul.mubr.f32.gmra.mxu0 %v1170
    %v1240 = vpop.f32.mrf.mxu0
    %v1241 = vadd.f32 0.0, %v1240
    %v1242 = vpop.f32.mrf.mxu0
    %1243 = vdwg.mxu0
    %v1244 = vmul.f32 %v1241, 0.35355338
    %v1245 = vsel %vm487, %v1244, -inf
    %1246 = vmax.xlane.f32.xlu0 %v1245
    %v1247 = vpop.xlane.xlu0 %1246
    %v1248 = vsub.f32 %v1244, %v1247
    %v1249 = vmul.f32 %v1248, 1.442695
    %v1250 = vpow.pop %v1249
    %v1251 = vsel %vm487, %v1250, 0.0
    %1252 = vadd.xlane.f32.xlu0 %v1251
    %v1253 = vpop.xlane.xlu0 %1252
    %v1254 = vrcp.pop %v1253
    %v1255 = vmul.f32 %v1250, %v1254
    %1256 = vrot.lane.b32.xlu0 %v481, 64
    %v1257 = vpop.permute.xlu0 %1256
    %v1260 = vsel %vm487, %v1255, 0
    %1262 = vmatprep.subr.mxu0 0.0
    %1263 = vmatpush1.msra.mxu0 0.0
    %1264 = vmatprep.subr.mxu0 0.0
    %1265 = vmatpush1.msra.mxu0 0.0
    %1266 = vmatprep.subr.mxu0 0.0
    %1267 = vmatpush1.msra.mxu0 0.0
    %1268 = vmatprep.subr.mxu0 0.0
    %1269 = vmatpush1.msra.mxu0 0.0
    %1270 = vmatprep.subr.mxu0 0.0
    %1271 = vmatpush1.msra.mxu0 0.0
    %1272 = vmatprep.subr.mxu0 0.0
    %1273 = vmatpush1.msra.mxu0 0.0
    %1274 = vmatprep.subr.mxu0 0.0
    %1275 = vmatpush1.msra.mxu0 0.0
    %1276 = vmatprep.subr.mxu0 0.0
    %1277 = vmatpush1.msra.mxu0 0.0
    %1278 = vmatprep.subr.mxu0 0.0
    %1279 = vmatpush1.msra.mxu0 0.0
    %1280 = vmatprep.subr.mxu0 0.0
    %1281 = vmatpush1.msra.mxu0 0.0
    %1282 = vmatprep.subr.mxu0 0.0
    %1283 = vmatpush1.msra.mxu0 0.0
    %1284 = vmatprep.subr.mxu0 0.0
    %1285 = vmatpush1.msra.mxu0 0.0
    %1286 = vmatprep.subr.mxu0 0.0
    %1287 = vmatpush1.msra.mxu0 0.0
    %1288 = vmatprep.subr.mxu0 0.0
    %1289 = vmatpush1.msra.mxu0 0.0
    %1290 = vmatprep.subr.mxu0 0.0
    %1291 = vmatpush1.msra.mxu0 0.0
    %1292 = vmatprep.subr.mxu0 0.0
    %1293 = vmatpush1.msra.mxu0 %v1257
    %1294 = vmatprep.subr.mxu0 0.0
    %1295 = vmatpush2.msra.mxu0 0.0
    %1296 = vmatprep.subr.mxu0 0.0
    %1297 = vmatpush2.msra.mxu0 0.0
    %1298 = vmatprep.subr.mxu0 0.0
    %1299 = vmatpush2.msra.mxu0 0.0
    %1300 = vmatprep.subr.mxu0 0.0
    %1301 = vmatpush2.msra.mxu0 0.0
    %1302 = vmatprep.subr.mxu0 0.0
    %1303 = vmatpush2.msra.mxu0 0.0
    %1304 = vmatprep.subr.mxu0 0.0
    %1305 = vmatpush2.msra.mxu0 0.0
    %1306 = vmatprep.subr.mxu0 0.0
    %1307 = vmatpush2.msra.mxu0 0.0
    %1308 = vmatprep.subr.mxu0 0.0
    %1309 = vmatpush2.msra.mxu0 0.0
    %1310 = vmatprep.subr.mxu0 0.0
    %1311 = vmatpush2.msra.mxu0 0.0
    %1312 = vmatprep.subr.mxu0 0.0
    %1313 = vmatpush2.msra.mxu0 0.0
    %1314 = vmatprep.subr.mxu0 0.0
    %1315 = vmatpush2.msra.mxu0 0.0
    %1316 = vmatprep.subr.mxu0 0.0
    %1317 = vmatpush2.msra.mxu0 0.0
    %1318 = vmatprep.subr.mxu0 0.0
    %1319 = vmatpush2.msra.mxu0 0.0
    %1320 = vmatprep.subr.mxu0 0.0
    %1321 = vmatpush2.msra.mxu0 0.0
    %1322 = vmatprep.subr.mxu0 0.0
    %1323 = vmatpush2.msra.mxu0 0.0
    %1324 = vmatprep.subr.mxu0 0.0
    %1325 = vmatpush2.msra.mxu0 0.0
    %1326 = vmatprep.mubr.f32.mxu0 0.0
    %1327 = vmatmul.mubr.f32.gmra.mxu0 %v1260
    %v1328 = vpop.f32.mrf.mxu0
    %v1329 = vadd.f32 0.0, %v1328
    %v1330 = vpop.f32.mrf.mxu0
    %1331 = vdwg.mxu0
    %1332 = vst.msk [vmem:[#allocation2 + $0x8] sm:$0xff] %vm487, %v1329
    %1333 = vrot.lane.b32.xlu0 %v481, 120
    %v1334 = vpop.permute.xlu0 %1333
    %1335 = vrot.lane.b32.xlu0 %v481, 88
    %v1336 = vpop.permute.xlu0 %1335
    %v1337 = vsel %vm487, %v1334, 0
    %v1339 = vsel %vm487, %v1336, 0
    %1341 = vmatprep.subr.mxu0 0.0
    %1342 = vmatpush1.xpose.msra.mxu0 0.0
    %1343 = vmatprep.subr.mxu0 0.0
    %1344 = vmatpush1.xpose.msra.mxu0 0.0
    %1345 = vmatprep.subr.mxu0 0.0
    %1346 = vmatpush1.xpose.msra.mxu0 0.0
    %1347 = vmatprep.subr.mxu0 0.0
    %1348 = vmatpush1.xpose.msra.mxu0 0.0
    %1349 = vmatprep.subr.mxu0 0.0
    %1350 = vmatpush1.xpose.msra.mxu0 0.0
    %1351 = vmatprep.subr.mxu0 0.0
    %1352 = vmatpush1.xpose.msra.mxu0 0.0
    %1353 = vmatprep.subr.mxu0 0.0
    %1354 = vmatpush1.xpose.msra.mxu0 0.0
    %1355 = vmatprep.subr.mxu0 0.0
    %1356 = vmatpush1.xpose.msra.mxu0 0.0
    %1357 = vmatprep.subr.mxu0 0.0
    %1358 = vmatpush1.xpose.msra.mxu0 0.0
    %1359 = vmatprep.subr.mxu0 0.0
    %1360 = vmatpush1.xpose.msra.mxu0 0.0
    %1361 = vmatprep.subr.mxu0 0.0
    %1362 = vmatpush1.xpose.msra.mxu0 0.0
    %1363 = vmatprep.subr.mxu0 0.0
    %1364 = vmatpush1.xpose.msra.mxu0 0.0
    %1365 = vmatprep.subr.mxu0 0.0
    %1366 = vmatpush1.xpose.msra.mxu0 0.0
    %1367 = vmatprep.subr.mxu0 0.0
    %1368 = vmatpush1.xpose.msra.mxu0 0.0
    %1369 = vmatprep.subr.mxu0 0.0
    %1370 = vmatpush1.xpose.msra.mxu0 0.0
    %1371 = vmatprep.subr.mxu0 0.0
    %1372 = vmatpush1.xpose.msra.mxu0 %v1339
    %1373 = vmatprep.subr.mxu0 0.0
    %1374 = vmatpush2.xpose.msra.mxu0 0.0
    %1375 = vmatprep.subr.mxu0 0.0
    %1376 = vmatpush2.xpose.msra.mxu0 0.0
    %1377 = vmatprep.subr.mxu0 0.0
    %1378 = vmatpush2.xpose.msra.mxu0 0.0
    %1379 = vmatprep.subr.mxu0 0.0
    %1380 = vmatpush2.xpose.msra.mxu0 0.0
    %1381 = vmatprep.subr.mxu0 0.0
    %1382 = vmatpush2.xpose.msra.mxu0 0.0
    %1383 = vmatprep.subr.mxu0 0.0
    %1384 = vmatpush2.xpose.msra.mxu0 0.0
    %1385 = vmatprep.subr.mxu0 0.0
    %1386 = vmatpush2.xpose.msra.mxu0 0.0
    %1387 = vmatprep.subr.mxu0 0.0
    %1388 = vmatpush2.xpose.msra.mxu0 0.0
    %1389 = vmatprep.subr.mxu0 0.0
    %1390 = vmatpush2.xpose.msra.mxu0 0.0
    %1391 = vmatprep.subr.mxu0 0.0
    %1392 = vmatpush2.xpose.msra.mxu0 0.0
    %1393 = vmatprep.subr.mxu0 0.0
    %1394 = vmatpush2.xpose.msra.mxu0 0.0
    %1395 = vmatprep.subr.mxu0 0.0
    %1396 = vmatpush2.xpose.msra.mxu0 0.0
    %1397 = vmatprep.subr.mxu0 0.0
    %1398 = vmatpush2.xpose.msra.mxu0 0.0
    %1399 = vmatprep.subr.mxu0 0.0
    %1400 = vmatpush2.xpose.msra.mxu0 0.0
    %1401 = vmatprep.subr.mxu0 0.0
    %1402 = vmatpush2.xpose.msra.mxu0 0.0
    %1403 = vmatprep.subr.mxu0 0.0
    %1404 = vmatpush2.xpose.msra.mxu0 0.0
    %1405 = vmatprep.mubr.f32.mxu0 0.0
    %1406 = vmatmul.mubr.f32.gmra.mxu0 %v1337
    %v1407 = vpop.f32.mrf.mxu0
    %v1408 = vadd.f32 0.0, %v1407
    %v1409 = vpop.f32.mrf.mxu0
    %1410 = vdwg.mxu0
    %v1411 = vmul.f32 %v1408, 0.35355338
    %v1412 = vsel %vm487, %v1411, -inf
    %1413 = vmax.xlane.f32.xlu0 %v1412
    %v1414 = vpop.xlane.xlu0 %1413
    %v1415 = vsub.f32 %v1411, %v1414
    %v1416 = vmul.f32 %v1415, 1.442695
    %v1417 = vpow.pop %v1416
    %v1418 = vsel %vm487, %v1417, 0.0
    %1419 = vadd.xlane.f32.xlu0 %v1418
    %v1420 = vpop.xlane.xlu0 %1419
    %v1421 = vrcp.pop %v1420
    %v1422 = vmul.f32 %v1417, %v1421
    %1423 = vrot.lane.b32.xlu0 %v481, 56
    %v1424 = vpop.permute.xlu0 %1423
    %v1427 = vsel %vm487, %v1422, 0
    %1429 = vmatprep.subr.mxu0 0.0
    %1430 = vmatpush1.msra.mxu0 0.0
    %1431 = vmatprep.subr.mxu0 0.0
    %1432 = vmatpush1.msra.mxu0 0.0
    %1433 = vmatprep.subr.mxu0 0.0
    %1434 = vmatpush1.msra.mxu0 0.0
    %1435 = vmatprep.subr.mxu0 0.0
    %1436 = vmatpush1.msra.mxu0 0.0
    %1437 = vmatprep.subr.mxu0 0.0
    %1438 = vmatpush1.msra.mxu0 0.0
    %1439 = vmatprep.subr.mxu0 0.0
    %1440 = vmatpush1.msra.mxu0 0.0
    %1441 = vmatprep.subr.mxu0 0.0
    %1442 = vmatpush1.msra.mxu0 0.0
    %1443 = vmatprep.subr.mxu0 0.0
    %1444 = vmatpush1.msra.mxu0 0.0
    %1445 = vmatprep.subr.mxu0 0.0
    %1446 = vmatpush1.msra.mxu0 0.0
    %1447 = vmatprep.subr.mxu0 0.0
    %1448 = vmatpush1.msra.mxu0 0.0
    %1449 = vmatprep.subr.mxu0 0.0
    %1450 = vmatpush1.msra.mxu0 0.0
    %1451 = vmatprep.subr.mxu0 0.0
    %1452 = vmatpush1.msra.mxu0 0.0
    %1453 = vmatprep.subr.mxu0 0.0
    %1454 = vmatpush1.msra.mxu0 0.0
    %1455 = vmatprep.subr.mxu0 0.0
    %1456 = vmatpush1.msra.mxu0 0.0
    %1457 = vmatprep.subr.mxu0 0.0
    %1458 = vmatpush1.msra.mxu0 0.0
    %1459 = vmatprep.subr.mxu0 0.0
    %1460 = vmatpush1.msra.mxu0 %v1424
    %1461 = vmatprep.subr.mxu0 0.0
    %1462 = vmatpush2.msra.mxu0 0.0
    %1463 = vmatprep.subr.mxu0 0.0
    %1464 = vmatpush2.msra.mxu0 0.0
    %1465 = vmatprep.subr.mxu0 0.0
    %1466 = vmatpush2.msra.mxu0 0.0
    %1467 = vmatprep.subr.mxu0 0.0
    %1468 = vmatpush2.msra.mxu0 0.0
    %1469 = vmatprep.subr.mxu0 0.0
    %1470 = vmatpush2.msra.mxu0 0.0
    %1471 = vmatprep.subr.mxu0 0.0
    %1472 = vmatpush2.msra.mxu0 0.0
    %1473 = vmatprep.subr.mxu0 0.0
    %1474 = vmatpush2.msra.mxu0 0.0
    %1475 = vmatprep.subr.mxu0 0.0
    %1476 = vmatpush2.msra.mxu0 0.0
    %1477 = vmatprep.subr.mxu0 0.0
    %1478 = vmatpush2.msra.mxu0 0.0
    %1479 = vmatprep.subr.mxu0 0.0
    %1480 = vmatpush2.msra.mxu0 0.0
    %1481 = vmatprep.subr.mxu0 0.0
    %1482 = vmatpush2.msra.mxu0 0.0
    %1483 = vmatprep.subr.mxu0 0.0
    %1484 = vmatpush2.msra.mxu0 0.0
    %1485 = vmatprep.subr.mxu0 0.0
    %1486 = vmatpush2.msra.mxu0 0.0
    %1487 = vmatprep.subr.mxu0 0.0
    %1488 = vmatpush2.msra.mxu0 0.0
    %1489 = vmatprep.subr.mxu0 0.0
    %1490 = vmatpush2.msra.mxu0 0.0
    %1491 = vmatprep.subr.mxu0 0.0
    %1492 = vmatpush2.msra.mxu0 0.0
    %1493 = vmatprep.mubr.f32.mxu0 0.0
    %1494 = vmatmul.mubr.f32.gmra.mxu0 %v1427
    %v1495 = vpop.f32.mrf.mxu0
    %v1496 = vadd.f32 0.0, %v1495
    %v1497 = vpop.f32.mrf.mxu0
    %1498 = vdwg.mxu0
    %1500 = vrot.lane.b32.xlu0 %v1496, 8
    %v1501 = vpop.permute.xlu0 %1500
    %1503 = vst.msk [vmem:[#allocation2 + $0x8] sm:$0xff] %vm821, %v1501
    %1504 = vrot.lane.b32.xlu0 %v481, 112
    %v1505 = vpop.permute.xlu0 %1504
    %1506 = vrot.lane.b32.xlu0 %v481, 80
    %v1507 = vpop.permute.xlu0 %1506
    %v1508 = vsel %vm487, %v1505, 0
    %v1510 = vsel %vm487, %v1507, 0
    %1512 = vmatprep.subr.mxu0 0.0
    %1513 = vmatpush1.xpose.msra.mxu0 0.0
    %1514 = vmatprep.subr.mxu0 0.0
    %1515 = vmatpush1.xpose.msra.mxu0 0.0
    %1516 = vmatprep.subr.mxu0 0.0
    %1517 = vmatpush1.xpose.msra.mxu0 0.0
    %1518 = vmatprep.subr.mxu0 0.0
    %1519 = vmatpush1.xpose.msra.mxu0 0.0
    %1520 = vmatprep.subr.mxu0 0.0
    %1521 = vmatpush1.xpose.msra.mxu0 0.0
    %1522 = vmatprep.subr.mxu0 0.0
    %1523 = vmatpush1.xpose.msra.mxu0 0.0
    %1524 = vmatprep.subr.mxu0 0.0
    %1525 = vmatpush1.xpose.msra.mxu0 0.0
    %1526 = vmatprep.subr.mxu0 0.0
    %1527 = vmatpush1.xpose.msra.mxu0 0.0
    %1528 = vmatprep.subr.mxu0 0.0
    %1529 = vmatpush1.xpose.msra.mxu0 0.0
    %1530 = vmatprep.subr.mxu0 0.0
    %1531 = vmatpush1.xpose.msra.mxu0 0.0
    %1532 = vmatprep.subr.mxu0 0.0
    %1533 = vmatpush1.xpose.msra.mxu0 0.0
    %1534 = vmatprep.subr.mxu0 0.0
    %1535 = vmatpush1.xpose.msra.mxu0 0.0
    %1536 = vmatprep.subr.mxu0 0.0
    %1537 = vmatpush1.xpose.msra.mxu0 0.0
    %1538 = vmatprep.subr.mxu0 0.0
    %1539 = vmatpush1.xpose.msra.mxu0 0.0
    %1540 = vmatprep.subr.mxu0 0.0
    %1541 = vmatpush1.xpose.msra.mxu0 0.0
    %1542 = vmatprep.subr.mxu0 0.0
    %1543 = vmatpush1.xpose.msra.mxu0 %v1510
    %1544 = vmatprep.subr.mxu0 0.0
    %1545 = vmatpush2.xpose.msra.mxu0 0.0
    %1546 = vmatprep.subr.mxu0 0.0
    %1547 = vmatpush2.xpose.msra.mxu0 0.0
    %1548 = vmatprep.subr.mxu0 0.0
    %1549 = vmatpush2.xpose.msra.mxu0 0.0
    %1550 = vmatprep.subr.mxu0 0.0
    %1551 = vmatpush2.xpose.msra.mxu0 0.0
    %1552 = vmatprep.subr.mxu0 0.0
    %1553 = vmatpush2.xpose.msra.mxu0 0.0
    %1554 = vmatprep.subr.mxu0 0.0
    %1555 = vmatpush2.xpose.msra.mxu0 0.0
    %1556 = vmatprep.subr.mxu0 0.0
    %1557 = vmatpush2.xpose.msra.mxu0 0.0
    %1558 = vmatprep.subr.mxu0 0.0
    %1559 = vmatpush2.xpose.msra.mxu0 0.0
    %1560 = vmatprep.subr.mxu0 0.0
    %1561 = vmatpush2.xpose.msra.mxu0 0.0
    %1562 = vmatprep.subr.mxu0 0.0
    %1563 = vmatpush2.xpose.msra.mxu0 0.0
    %1564 = vmatprep.subr.mxu0 0.0
    %1565 = vmatpush2.xpose.msra.mxu0 0.0
    %1566 = vmatprep.subr.mxu0 0.0
    %1567 = vmatpush2.xpose.msra.mxu0 0.0
    %1568 = vmatprep.subr.mxu0 0.0
    %1569 = vmatpush2.xpose.msra.mxu0 0.0
    %1570 = vmatprep.subr.mxu0 0.0
    %1571 = vmatpush2.xpose.msra.mxu0 0.0
    %1572 = vmatprep.subr.mxu0 0.0
    %1573 = vmatpush2.xpose.msra.mxu0 0.0
    %1574 = vmatprep.subr.mxu0 0.0
    %1575 = vmatpush2.xpose.msra.mxu0 0.0
    %1576 = vmatprep.mubr.f32.mxu0 0.0
    %1577 = vmatmul.mubr.f32.gmra.mxu0 %v1508
    %v1578 = vpop.f32.mrf.mxu0
    %v1579 = vadd.f32 0.0, %v1578
    %v1580 = vpop.f32.mrf.mxu0
    %1581 = vdwg.mxu0
    %v1582 = vmul.f32 %v1579, 0.35355338
    %v1583 = vsel %vm487, %v1582, -inf
    %1584 = vmax.xlane.f32.xlu0 %v1583
    %v1585 = vpop.xlane.xlu0 %1584
    %v1586 = vsub.f32 %v1582, %v1585
    %v1587 = vmul.f32 %v1586, 1.442695
    %v1588 = vpow.pop %v1587
    %v1589 = vsel %vm487, %v1588, 0.0
    %1590 = vadd.xlane.f32.xlu0 %v1589
    %v1591 = vpop.xlane.xlu0 %1590
    %v1592 = vrcp.pop %v1591
    %v1593 = vmul.f32 %v1588, %v1592
    %1594 = vrot.lane.b32.xlu0 %v481, 48
    %v1595 = vpop.permute.xlu0 %1594
    %v1598 = vsel %vm487, %v1593, 0
    %1600 = vmatprep.subr.mxu0 0.0
    %1601 = vmatpush1.msra.mxu0 0.0
    %1602 = vmatprep.subr.mxu0 0.0
    %1603 = vmatpush1.msra.mxu0 0.0
    %1604 = vmatprep.subr.mxu0 0.0
    %1605 = vmatpush1.msra.mxu0 0.0
    %1606 = vmatprep.subr.mxu0 0.0
    %1607 = vmatpush1.msra.mxu0 0.0
    %1608 = vmatprep.subr.mxu0 0.0
    %1609 = vmatpush1.msra.mxu0 0.0
    %1610 = vmatprep.subr.mxu0 0.0
    %1611 = vmatpush1.msra.mxu0 0.0
    %1612 = vmatprep.subr.mxu0 0.0
    %1613 = vmatpush1.msra.mxu0 0.0
    %1614 = vmatprep.subr.mxu0 0.0
    %1615 = vmatpush1.msra.mxu0 0.0
    %1616 = vmatprep.subr.mxu0 0.0
    %1617 = vmatpush1.msra.mxu0 0.0
    %1618 = vmatprep.subr.mxu0 0.0
    %1619 = vmatpush1.msra.mxu0 0.0
    %1620 = vmatprep.subr.mxu0 0.0
    %1621 = vmatpush1.msra.mxu0 0.0
    %1622 = vmatprep.subr.mxu0 0.0
    %1623 = vmatpush1.msra.mxu0 0.0
    %1624 = vmatprep.subr.mxu0 0.0
    %1625 = vmatpush1.msra.mxu0 0.0
    %1626 = vmatprep.subr.mxu0 0.0
    %1627 = vmatpush1.msra.mxu0 0.0
    %1628 = vmatprep.subr.mxu0 0.0
    %1629 = vmatpush1.msra.mxu0 0.0
    %1630 = vmatprep.subr.mxu0 0.0
    %1631 = vmatpush1.msra.mxu0 %v1595
    %1632 = vmatprep.subr.mxu0 0.0
    %1633 = vmatpush2.msra.mxu0 0.0
    %1634 = vmatprep.subr.mxu0 0.0
    %1635 = vmatpush2.msra.mxu0 0.0
    %1636 = vmatprep.subr.mxu0 0.0
    %1637 = vmatpush2.msra.mxu0 0.0
    %1638 = vmatprep.subr.mxu0 0.0
    %1639 = vmatpush2.msra.mxu0 0.0
    %1640 = vmatprep.subr.mxu0 0.0
    %1641 = vmatpush2.msra.mxu0 0.0
    %1642 = vmatprep.subr.mxu0 0.0
    %1643 = vmatpush2.msra.mxu0 0.0
    %1644 = vmatprep.subr.mxu0 0.0
    %1645 = vmatpush2.msra.mxu0 0.0
    %1646 = vmatprep.subr.mxu0 0.0
    %1647 = vmatpush2.msra.mxu0 0.0
    %1648 = vmatprep.subr.mxu0 0.0
    %1649 = vmatpush2.msra.mxu0 0.0
    %1650 = vmatprep.subr.mxu0 0.0
    %1651 = vmatpush2.msra.mxu0 0.0
    %1652 = vmatprep.subr.mxu0 0.0
    %1653 = vmatpush2.msra.mxu0 0.0
    %1654 = vmatprep.subr.mxu0 0.0
    %1655 = vmatpush2.msra.mxu0 0.0
    %1656 = vmatprep.subr.mxu0 0.0
    %1657 = vmatpush2.msra.mxu0 0.0
    %1658 = vmatprep.subr.mxu0 0.0
    %1659 = vmatpush2.msra.mxu0 0.0
    %1660 = vmatprep.subr.mxu0 0.0
    %1661 = vmatpush2.msra.mxu0 0.0
    %1662 = vmatprep.subr.mxu0 0.0
    %1663 = vmatpush2.msra.mxu0 0.0
    %1664 = vmatprep.mubr.f32.mxu0 0.0
    %1665 = vmatmul.mubr.f32.gmra.mxu0 %v1598
    %v1666 = vpop.f32.mrf.mxu0
    %v1667 = vadd.f32 0.0, %v1666
    %v1668 = vpop.f32.mrf.mxu0
    %1669 = vdwg.mxu0
    %1671 = vrot.lane.b32.xlu0 %v1667, 16
    %v1672 = vpop.permute.xlu0 %1671
    %1674 = vst.msk [vmem:[#allocation2 + $0x8] sm:$0xff] %vm993, %v1672
    %1675 = vrot.lane.b32.xlu0 %v481, 104
    %v1676 = vpop.permute.xlu0 %1675
    %1677 = vrot.lane.b32.xlu0 %v481, 72
    %v1678 = vpop.permute.xlu0 %1677
    %v1679 = vsel %vm487, %v1676, 0
    %v1681 = vsel %vm487, %v1678, 0
    %1683 = vmatprep.subr.mxu0 0.0
    %1684 = vmatpush1.xpose.msra.mxu0 0.0
    %1685 = vmatprep.subr.mxu0 0.0
    %1686 = vmatpush1.xpose.msra.mxu0 0.0
    %1687 = vmatprep.subr.mxu0 0.0
    %1688 = vmatpush1.xpose.msra.mxu0 0.0
    %1689 = vmatprep.subr.mxu0 0.0
    %1690 = vmatpush1.xpose.msra.mxu0 0.0
    %1691 = vmatprep.subr.mxu0 0.0
    %1692 = vmatpush1.xpose.msra.mxu0 0.0
    %1693 = vmatprep.subr.mxu0 0.0
    %1694 = vmatpush1.xpose.msra.mxu0 0.0
    %1695 = vmatprep.subr.mxu0 0.0
    %1696 = vmatpush1.xpose.msra.mxu0 0.0
    %1697 = vmatprep.subr.mxu0 0.0
    %1698 = vmatpush1.xpose.msra.mxu0 0.0
    %1699 = vmatprep.subr.mxu0 0.0
    %1700 = vmatpush1.xpose.msra.mxu0 0.0
    %1701 = vmatprep.subr.mxu0 0.0
    %1702 = vmatpush1.xpose.msra.mxu0 0.0
    %1703 = vmatprep.subr.mxu0 0.0
    %1704 = vmatpush1.xpose.msra.mxu0 0.0
    %1705 = vmatprep.subr.mxu0 0.0
    %1706 = vmatpush1.xpose.msra.mxu0 0.0
    %1707 = vmatprep.subr.mxu0 0.0
    %1708 = vmatpush1.xpose.msra.mxu0 0.0
    %1709 = vmatprep.subr.mxu0 0.0
    %1710 = vmatpush1.xpose.msra.mxu0 0.0
    %1711 = vmatprep.subr.mxu0 0.0
    %1712 = vmatpush1.xpose.msra.mxu0 0.0
    %1713 = vmatprep.subr.mxu0 0.0
    %1714 = vmatpush1.xpose.msra.mxu0 %v1681
    %1715 = vmatprep.subr.mxu0 0.0
    %1716 = vmatpush2.xpose.msra.mxu0 0.0
    %1717 = vmatprep.subr.mxu0 0.0
    %1718 = vmatpush2.xpose.msra.mxu0 0.0
    %1719 = vmatprep.subr.mxu0 0.0
    %1720 = vmatpush2.xpose.msra.mxu0 0.0
    %1721 = vmatprep.subr.mxu0 0.0
    %1722 = vmatpush2.xpose.msra.mxu0 0.0
    %1723 = vmatprep.subr.mxu0 0.0
    %1724 = vmatpush2.xpose.msra.mxu0 0.0
    %1725 = vmatprep.subr.mxu0 0.0
    %1726 = vmatpush2.xpose.msra.mxu0 0.0
    %1727 = vmatprep.subr.mxu0 0.0
    %1728 = vmatpush2.xpose.msra.mxu0 0.0
    %1729 = vmatprep.subr.mxu0 0.0
    %1730 = vmatpush2.xpose.msra.mxu0 0.0
    %1731 = vmatprep.subr.mxu0 0.0
    %1732 = vmatpush2.xpose.msra.mxu0 0.0
    %1733 = vmatprep.subr.mxu0 0.0
    %1734 = vmatpush2.xpose.msra.mxu0 0.0
    %1735 = vmatprep.subr.mxu0 0.0
    %1736 = vmatpush2.xpose.msra.mxu0 0.0
    %1737 = vmatprep.subr.mxu0 0.0
    %1738 = vmatpush2.xpose.msra.mxu0 0.0
    %1739 = vmatprep.subr.mxu0 0.0
    %1740 = vmatpush2.xpose.msra.mxu0 0.0
    %1741 = vmatprep.subr.mxu0 0.0
    %1742 = vmatpush2.xpose.msra.mxu0 0.0
    %1743 = vmatprep.subr.mxu0 0.0
    %1744 = vmatpush2.xpose.msra.mxu0 0.0
    %1745 = vmatprep.subr.mxu0 0.0
    %1746 = vmatpush2.xpose.msra.mxu0 0.0
    %1747 = vmatprep.mubr.f32.mxu0 0.0
    %1748 = vmatmul.mubr.f32.gmra.mxu0 %v1679
    %v1749 = vpop.f32.mrf.mxu0
    %v1750 = vadd.f32 0.0, %v1749
    %v1751 = vpop.f32.mrf.mxu0
    %1752 = vdwg.mxu0
    %v1753 = vmul.f32 %v1750, 0.35355338
    %v1754 = vsel %vm487, %v1753, -inf
    %1755 = vmax.xlane.f32.xlu0 %v1754
    %v1756 = vpop.xlane.xlu0 %1755
    %v1757 = vsub.f32 %v1753, %v1756
    %v1758 = vmul.f32 %v1757, 1.442695
    %v1759 = vpow.pop %v1758
    %v1760 = vsel %vm487, %v1759, 0.0
    %1761 = vadd.xlane.f32.xlu0 %v1760
    %v1762 = vpop.xlane.xlu0 %1761
    %v1763 = vrcp.pop %v1762
    %v1764 = vmul.f32 %v1759, %v1763
    %1765 = vrot.lane.b32.xlu0 %v481, 40
    %v1766 = vpop.permute.xlu0 %1765
    %v1769 = vsel %vm487, %v1764, 0
    %1771 = vmatprep.subr.mxu0 0.0
    %1772 = vmatpush1.msra.mxu0 0.0
    %1773 = vmatprep.subr.mxu0 0.0
    %1774 = vmatpush1.msra.mxu0 0.0
    %1775 = vmatprep.subr.mxu0 0.0
    %1776 = vmatpush1.msra.mxu0 0.0
    %1777 = vmatprep.subr.mxu0 0.0
    %1778 = vmatpush1.msra.mxu0 0.0
    %1779 = vmatprep.subr.mxu0 0.0
    %1780 = vmatpush1.msra.mxu0 0.0
    %1781 = vmatprep.subr.mxu0 0.0
    %1782 = vmatpush1.msra.mxu0 0.0
    %1783 = vmatprep.subr.mxu0 0.0
    %1784 = vmatpush1.msra.mxu0 0.0
    %1785 = vmatprep.subr.mxu0 0.0
    %1786 = vmatpush1.msra.mxu0 0.0
    %1787 = vmatprep.subr.mxu0 0.0
    %1788 = vmatpush1.msra.mxu0 0.0
    %1789 = vmatprep.subr.mxu0 0.0
    %1790 = vmatpush1.msra.mxu0 0.0
    %1791 = vmatprep.subr.mxu0 0.0
    %1792 = vmatpush1.msra.mxu0 0.0
    %1793 = vmatprep.subr.mxu0 0.0
    %1794 = vmatpush1.msra.mxu0 0.0
    %1795 = vmatprep.subr.mxu0 0.0
    %1796 = vmatpush1.msra.mxu0 0.0
    %1797 = vmatprep.subr.mxu0 0.0
    %1798 = vmatpush1.msra.mxu0 0.0
    %1799 = vmatprep.subr.mxu0 0.0
    %1800 = vmatpush1.msra.mxu0 0.0
    %1801 = vmatprep.subr.mxu0 0.0
    %1802 = vmatpush1.msra.mxu0 %v1766
    %1803 = vmatprep.subr.mxu0 0.0
    %1804 = vmatpush2.msra.mxu0 0.0
    %1805 = vmatprep.subr.mxu0 0.0
    %1806 = vmatpush2.msra.mxu0 0.0
    %1807 = vmatprep.subr.mxu0 0.0
    %1808 = vmatpush2.msra.mxu0 0.0
    %1809 = vmatprep.subr.mxu0 0.0
    %1810 = vmatpush2.msra.mxu0 0.0
    %1811 = vmatprep.subr.mxu0 0.0
    %1812 = vmatpush2.msra.mxu0 0.0
    %1813 = vmatprep.subr.mxu0 0.0
    %1814 = vmatpush2.msra.mxu0 0.0
    %1815 = vmatprep.subr.mxu0 0.0
    %1816 = vmatpush2.msra.mxu0 0.0
    %1817 = vmatprep.subr.mxu0 0.0
    %1818 = vmatpush2.msra.mxu0 0.0
    %1819 = vmatprep.subr.mxu0 0.0
    %1820 = vmatpush2.msra.mxu0 0.0
    %1821 = vmatprep.subr.mxu0 0.0
    %1822 = vmatpush2.msra.mxu0 0.0
    %1823 = vmatprep.subr.mxu0 0.0
    %1824 = vmatpush2.msra.mxu0 0.0
    %1825 = vmatprep.subr.mxu0 0.0
    %1826 = vmatpush2.msra.mxu0 0.0
    %1827 = vmatprep.subr.mxu0 0.0
    %1828 = vmatpush2.msra.mxu0 0.0
    %1829 = vmatprep.subr.mxu0 0.0
    %1830 = vmatpush2.msra.mxu0 0.0
    %1831 = vmatprep.subr.mxu0 0.0
    %1832 = vmatpush2.msra.mxu0 0.0
    %1833 = vmatprep.subr.mxu0 0.0
    %1834 = vmatpush2.msra.mxu0 0.0
    %1835 = vmatprep.mubr.f32.mxu0 0.0
    %1836 = vmatmul.mubr.f32.gmra.mxu0 %v1769
    %v1837 = vpop.f32.mrf.mxu0
    %v1838 = vadd.f32 0.0, %v1837
    %v1839 = vpop.f32.mrf.mxu0
    %1840 = vdwg.mxu0
    %1842 = vrot.lane.b32.xlu0 %v1838, 24
    %v1843 = vpop.permute.xlu0 %1842
    %1845 = vst.msk [vmem:[#allocation2 + $0x8] sm:$0xff] %vm1165, %v1843
    %v1846 = vld [vmem:[#allocation2] sm:$0xff]
    %v1847 = vld [vmem:[#allocation2 + $0x8] sm:$0xff]
    %v1848 = vld [vmem:[%s7] sm:$0xff]
    %v1849 = vld [vmem:[%s7 + $0x8] sm:$0xff]
    %v1850 = vld [vmem:[%s7 + $0x10] sm:$0xff]
    %v1851 = vld [vmem:[%s7 + $0x18] sm:$0xff]
    %v1852 = vlaneseq
    %v1853 = vshrl.u32 %v1852, 7
    %v1854 = vsub.s32 0, %v1853
    %v1855 = vrot.slane %v391, %v1854
    %v1857 = vsel %vm167, %v1846, 0
    %v1860 = vsel %vm167, %v1847, 0
    %1862 = vmatprep.subr.mxu0 0.0
    %1863 = vmatpush1.msra.mxu0 0.0
    %1864 = vmatprep.subr.mxu0 0.0
    %1865 = vmatpush1.msra.mxu0 0.0
    %1866 = vmatprep.subr.mxu0 0.0
    %1867 = vmatpush1.msra.mxu0 0.0
    %1868 = vmatprep.subr.mxu0 0.0
    %1869 = vmatpush1.msra.mxu0 0.0
    %1870 = vmatprep.subr.mxu0 0.0
    %1871 = vmatpush1.msra.mxu0 0.0
    %1872 = vmatprep.subr.mxu0 0.0
    %1873 = vmatpush1.msra.mxu0 0.0
    %1874 = vmatprep.subr.mxu0 0.0
    %1875 = vmatpush1.msra.mxu0 0.0
    %1876 = vmatprep.subr.mxu0 0.0
    %1877 = vmatpush1.msra.mxu0 0.0
    %1878 = vmatprep.subr.mxu0 0.0
    %1879 = vmatpush1.msra.mxu0 0.0
    %1880 = vmatprep.subr.mxu0 0.0
    %1881 = vmatpush1.msra.mxu0 0.0
    %1882 = vmatprep.subr.mxu0 0.0
    %1883 = vmatpush1.msra.mxu0 0.0
    %1884 = vmatprep.subr.mxu0 0.0
    %1885 = vmatpush1.msra.mxu0 0.0
    %1886 = vmatprep.subr.mxu0 0.0
    %1887 = vmatpush1.msra.mxu0 %v1851
    %1888 = vmatprep.subr.mxu0 0.0
    %1889 = vmatpush1.msra.mxu0 %v1850
    %1890 = vmatprep.subr.mxu0 0.0
    %1891 = vmatpush1.msra.mxu0 %v1849
    %1892 = vmatprep.subr.mxu0 0.0
    %1893 = vmatpush1.msra.mxu0 %v1848
    %1894 = vmatprep.subr.mxu0 0.0
    %1895 = vmatpush2.msra.mxu0 0.0
    %1896 = vmatprep.subr.mxu0 0.0
    %1897 = vmatpush2.msra.mxu0 0.0
    %1898 = vmatprep.subr.mxu0 0.0
    %1899 = vmatpush2.msra.mxu0 0.0
    %1900 = vmatprep.subr.mxu0 0.0
    %1901 = vmatpush2.msra.mxu0 0.0
    %1902 = vmatprep.subr.mxu0 0.0
    %1903 = vmatpush2.msra.mxu0 0.0
    %1904 = vmatprep.subr.mxu0 0.0
    %1905 = vmatpush2.msra.mxu0 0.0
    %1906 = vmatprep.subr.mxu0 0.0
    %1907 = vmatpush2.msra.mxu0 0.0
    %1908 = vmatprep.subr.mxu0 0.0
    %1909 = vmatpush2.msra.mxu0 0.0
    %1910 = vmatprep.subr.mxu0 0.0
    %1911 = vmatpush2.msra.mxu0 0.0
    %1912 = vmatprep.subr.mxu0 0.0
    %1913 = vmatpush2.msra.mxu0 0.0
    %1914 = vmatprep.subr.mxu0 0.0
    %1915 = vmatpush2.msra.mxu0 0.0
    %1916 = vmatprep.subr.mxu0 0.0
    %1917 = vmatpush2.msra.mxu0 0.0
    %1918 = vmatprep.subr.mxu0 0.0
    %1919 = vmatpush2.msra.mxu0 0.0
    %1920 = vmatprep.subr.mxu0 0.0
    %1921 = vmatpush2.msra.mxu0 0.0
    %1922 = vmatprep.subr.mxu0 0.0
    %1923 = vmatpush2.msra.mxu0 0.0
    %1924 = vmatprep.subr.mxu0 0.0
    %1925 = vmatpush2.msra.mxu0 0.0
    %1926 = vmatprep.mubr.f32.mxu0 0.0
    %1927 = vmatmul.mubr.f32.gmra.mxu0 %v1857
    %v1928 = vpop.f32.mrf.mxu0
    %v1929 = vadd.f32 %v1855, %v1928
    %v1930 = vpop.f32.mrf.mxu0
    %1931 = vmatprep.mubr.f32.mxu0 0.0
    %1932 = vmatmul.mubr.f32.gmra.mxu0 %v1860
    %v1933 = vpop.f32.mrf.mxu0
    %v1934 = vadd.f32 %v1855, %v1933
    %v1935 = vpop.f32.mrf.mxu0
    %1936 = vdwg.mxu0
    %v1937 = vadd.f32 %v383, %v1929
    %v1938 = vadd.f32 %v388, %v1934
    %v1939 = vsel %vm167, %v1937, 0.0
    %1940 = vadd.xlane.f32.xlu0 %v1939
    %v1941 = vpop.xlane.xlu0 %1940
    %v1942 = vsel %vm167, %v1938, 0.0
    %1943 = vadd.xlane.f32.xlu0 %v1942
    %v1944 = vpop.xlane.xlu0 %1943
    %v1945 = vrcp.pop 32.0
    %v1946 = vmul.f32 %v1941, %v1945
    %v1947 = vmul.f32 %v1944, %v1945
    %v1948 = vsub.f32 %v1937, %v1946
    %v1949 = vsub.f32 %v1938, %v1947
    %v1950 = vmul.f32 %v1948, %v1948
    %v1951 = vmul.f32 %v1949, %v1949
    %v1952 = vsel %vm167, %v1950, 0.0
    %1953 = vadd.xlane.f32.xlu0 %v1952
    %v1954 = vpop.xlane.xlu0 %1953
    %v1955 = vsel %vm167, %v1951, 0.0
    %1956 = vadd.xlane.f32.xlu0 %v1955
    %v1957 = vpop.xlane.xlu0 %1956
    %v1958 = vmul.f32 %v1954, %v1945
    %v1959 = vmul.f32 %v1957, %v1945
    %v1960 = vadd.f32 %v1958, 1e-05
    %v1961 = vadd.f32 %v1959, 1e-05
    %v1962 = vrsqrt.pop %v1960
    %v1963 = vrsqrt.pop %v1961
    %v1964 = vmul.f32 %v1948, %v1962
    %v1965 = vmul.f32 %v1949, %v1963
    %v1966 = vlaneseq
    %v1967 = vshrl.u32 %v1966, 7
    %v1968 = vsub.s32 1, %v1967
    %v1969 = vrot.slane %v391, %v1968
    %v1970 = vmul.f32 %v1964, %v1969
    %v1971 = vmul.f32 %v1965, %v1969
    %v1972 = vlaneseq
    %v1973 = vshrl.u32 %v1972, 7
    %v1974 = vsub.s32 2, %v1973
    %v1975 = vrot.slane %v391, %v1974
    %v1976 = vadd.f32 %v1970, %v1975
    %v1977 = vadd.f32 %v1971, %v1975
    %v1978 = vld [vmem:[%s8] sm:$0xff]
    %v1979 = vld [vmem:[%s8 + $0x8] sm:$0xff]
    %v1980 = vld [vmem:[%s8 + $0x10] sm:$0xff]
    %v1981 = vld [vmem:[%s8 + $0x18] sm:$0xff]
    %v1982 = vld [vmem:[#allocation9] sm:$0x1]
    %v1984 = vlaneseq
    %v1985 = vshrl.u32 %v1984, 7
    %v1986 = vsub.s32 0, %v1985
    %v1987 = vrot.slane %v1982, %v1986
    %v1990 = vsel %vm167, %v1976, 0
    %v1993 = vsel %vm167, %v1977, 0
    %1995 = vmatprep.subr.mxu0 0.0
    %1996 = vmatpush1.msra.mxu0 0.0
    %1997 = vmatprep.subr.mxu0 0.0
    %1998 = vmatpush1.msra.mxu0 0.0
    %1999 = vmatprep.subr.mxu0 0.0
    %2000 = vmatpush1.msra.mxu0 0.0
    %2001 = vmatprep.subr.mxu0 0.0
    %2002 = vmatpush1.msra.mxu0 0.0
    %2003 = vmatprep.subr.mxu0 0.0
    %2004 = vmatpush1.msra.mxu0 0.0
    %2005 = vmatprep.subr.mxu0 0.0
    %2006 = vmatpush1.msra.mxu0 0.0
    %2007 = vmatprep.subr.mxu0 0.0
    %2008 = vmatpush1.msra.mxu0 0.0
    %2009 = vmatprep.subr.mxu0 0.0
    %2010 = vmatpush1.msra.mxu0 0.0
    %2011 = vmatprep.subr.mxu0 0.0
    %2012 = vmatpush1.msra.mxu0 0.0
    %2013 = vmatprep.subr.mxu0 0.0
    %2014 = vmatpush1.msra.mxu0 0.0
    %2015 = vmatprep.subr.mxu0 0.0
    %2016 = vmatpush1.msra.mxu0 0.0
    %2017 = vmatprep.subr.mxu0 0.0
    %2018 = vmatpush1.msra.mxu0 0.0
    %2019 = vmatprep.subr.mxu0 0.0
    %2020 = vmatpush1.msra.mxu0 %v1981
    %2021 = vmatprep.subr.mxu0 0.0
    %2022 = vmatpush1.msra.mxu0 %v1980
    %2023 = vmatprep.subr.mxu0 0.0
    %2024 = vmatpush1.msra.mxu0 %v1979
    %2025 = vmatprep.subr.mxu0 0.0
    %2026 = vmatpush1.msra.mxu0 %v1978
    %2027 = vmatprep.subr.mxu0 0.0
    %2028 = vmatpush2.msra.mxu0 0.0
    %2029 = vmatprep.subr.mxu0 0.0
    %2030 = vmatpush2.msra.mxu0 0.0
    %2031 = vmatprep.subr.mxu0 0.0
    %2032 = vmatpush2.msra.mxu0 0.0
    %2033 = vmatprep.subr.mxu0 0.0
    %2034 = vmatpush2.msra.mxu0 0.0
    %2035 = vmatprep.subr.mxu0 0.0
    %2036 = vmatpush2.msra.mxu0 0.0
    %2037 = vmatprep.subr.mxu0 0.0
    %2038 = vmatpush2.msra.mxu0 0.0
    %2039 = vmatprep.subr.mxu0 0.0
    %2040 = vmatpush2.msra.mxu0 0.0
    %2041 = vmatprep.subr.mxu0 0.0
    %2042 = vmatpush2.msra.mxu0 0.0
    %2043 = vmatprep.subr.mxu0 0.0
    %2044 = vmatpush2.msra.mxu0 0.0
    %2045 = vmatprep.subr.mxu0 0.0
    %2046 = vmatpush2.msra.mxu0 0.0
    %2047 = vmatprep.subr.mxu0 0.0
    %2048 = vmatpush2.msra.mxu0 0.0
    %2049 = vmatprep.subr.mxu0 0.0
    %2050 = vmatpush2.msra.mxu0 0.0
    %2051 = vmatprep.subr.mxu0 0.0
    %2052 = vmatpush2.msra.mxu0 0.0
    %2053 = vmatprep.subr.mxu0 0.0
    %2054 = vmatpush2.msra.mxu0 0.0
    %2055 = vmatprep.subr.mxu0 0.0
    %2056 = vmatpush2.msra.mxu0 0.0
    %2057 = vmatprep.subr.mxu0 0.0
    %2058 = vmatpush2.msra.mxu0 0.0
    %2059 = vmatprep.mubr.f32.mxu0 0.0
    %2060 = vmatmul.mubr.f32.gmra.mxu0 %v1990
    %v2061 = vpop.f32.mrf.mxu0
    %v2062 = vadd.f32 %v1987, %v2061
    %v2063 = vpop.f32.mrf.mxu0
    %2064 = vmatprep.mubr.f32.mxu0 0.0
    %2065 = vmatmul.mubr.f32.gmra.mxu0 %v1993
    %v2066 = vpop.f32.mrf.mxu0
    %v2067 = vadd.f32 %v1987, %v2066
    %v2068 = vpop.f32.mrf.mxu0
    %2069 = vdwg.mxu0
    %v2070 = vmax.f32 %v2062, 0.0
    %v2071 = vmax.f32 %v2067, 0.0
    %v2072 = vld [vmem:[%s10] sm:$0xff]
    %v2073 = vld [vmem:[%s10 + $0x8] sm:$0xff]
    %v2074 = vld [vmem:[%s10 + $0x10] sm:$0xff]
    %v2075 = vld [vmem:[%s10 + $0x18] sm:$0xff]
    %v2076 = vld [vmem:[%s10 + $0x20] sm:$0xff]
    %v2077 = vld [vmem:[%s10 + $0x28] sm:$0xff]
    %v2078 = vld [vmem:[%s10 + $0x30] sm:$0xff]
    %v2079 = vld [vmem:[%s10 + $0x38] sm:$0xff]
    %v2080 = vlaneseq
    %v2081 = vshrl.u32 %v2080, 7
    %v2082 = vsub.s32 3, %v2081
    %v2083 = vrot.slane %v391, %v2082
    %vm2084 = vcmask 523264
    %v2086 = vsel %vm2084, %v2070, 0
    %v2089 = vsel %vm2084, %v2071, 0
    %2091 = vmatprep.subr.mxu0 0.0
    %2092 = vmatpush1.msra.mxu0 0.0
    %2093 = vmatprep.subr.mxu0 0.0
    %2094 = vmatpush1.msra.mxu0 0.0
    %2095 = vmatprep.subr.mxu0 0.0
    %2096 = vmatpush1.msra.mxu0 0.0
    %2097 = vmatprep.subr.mxu0 0.0
    %2098 = vmatpush1.msra.mxu0 0.0
    %2099 = vmatprep.subr.mxu0 0.0
    %2100 = vmatpush1.msra.mxu0 0.0
    %2101 = vmatprep.subr.mxu0 0.0
    %2102 = vmatpush1.msra.mxu0 0.0
    %2103 = vmatprep.subr.mxu0 0.0
    %2104 = vmatpush1.msra.mxu0 0.0
    %2105 = vmatprep.subr.mxu0 0.0
    %2106 = vmatpush1.msra.mxu0 0.0
    %2107 = vmatprep.subr.mxu0 0.0
    %2108 = vmatpush1.msra.mxu0 %v2079
    %2109 = vmatprep.subr.mxu0 0.0
    %2110 = vmatpush1.msra.mxu0 %v2078
    %2111 = vmatprep.subr.mxu0 0.0
    %2112 = vmatpush1.msra.mxu0 %v2077
    %2113 = vmatprep.subr.mxu0 0.0
    %2114 = vmatpush1.msra.mxu0 %v2076
    %2115 = vmatprep.subr.mxu0 0.0
    %2116 = vmatpush1.msra.mxu0 %v2075
    %2117 = vmatprep.subr.mxu0 0.0
    %2118 = vmatpush1.msra.mxu0 %v2074
    %2119 = vmatprep.subr.mxu0 0.0
    %2120 = vmatpush1.msra.mxu0 %v2073
    %2121 = vmatprep.subr.mxu0 0.0
    %2122 = vmatpush1.msra.mxu0 %v2072
    %2123 = vmatprep.subr.mxu0 0.0
    %2124 = vmatpush2.msra.mxu0 0.0
    %2125 = vmatprep.subr.mxu0 0.0
    %2126 = vmatpush2.msra.mxu0 0.0
    %2127 = vmatprep.subr.mxu0 0.0
    %2128 = vmatpush2.msra.mxu0 0.0
    %2129 = vmatprep.subr.mxu0 0.0
    %2130 = vmatpush2.msra.mxu0 0.0
    %2131 = vmatprep.subr.mxu0 0.0
    %2132 = vmatpush2.msra.mxu0 0.0
    %2133 = vmatprep.subr.mxu0 0.0
    %2134 = vmatpush2.msra.mxu0 0.0
    %2135 = vmatprep.subr.mxu0 0.0
    %2136 = vmatpush2.msra.mxu0 0.0
    %2137 = vmatprep.subr.mxu0 0.0
    %2138 = vmatpush2.msra.mxu0 0.0
    %2139 = vmatprep.subr.mxu0 0.0
    %2140 = vmatpush2.msra.mxu0 0.0
    %2141 = vmatprep.subr.mxu0 0.0
    %2142 = vmatpush2.msra.mxu0 0.0
    %2143 = vmatprep.subr.mxu0 0.0
    %2144 = vmatpush2.msra.mxu0 0.0
    %2145 = vmatprep.subr.mxu0 0.0
    %2146 = vmatpush2.msra.mxu0 0.0
    %2147 = vmatprep.subr.mxu0 0.0
    %2148 = vmatpush2.msra.mxu0 0.0
    %2149 = vmatprep.subr.mxu0 0.0
    %2150 = vmatpush2.msra.mxu0 0.0
    %2151 = vmatprep.subr.mxu0 0.0
    %2152 = vmatpush2.msra.mxu0 0.0
    %2153 = vmatprep.subr.mxu0 0.0
    %2154 = vmatpush2.msra.mxu0 0.0
    %2155 = vmatprep.mubr.f32.mxu0 0.0
    %2156 = vmatmul.mubr.f32.gmra.mxu0 %v2086
    %v2157 = vpop.f32.mrf.mxu0
    %v2158 = vadd.f32 %v2083, %v2157
    %v2159 = vpop.f32.mrf.mxu0
    %2160 = vmatprep.mubr.f32.mxu0 0.0
    %2161 = vmatmul.mubr.f32.gmra.mxu0 %v2089
    %v2162 = vpop.f32.mrf.mxu0
    %v2163 = vadd.f32 %v2083, %v2162
    %v2164 = vpop.f32.mrf.mxu0
    %2165 = vdwg.mxu0
    %v2166 = vadd.f32 %v1976, %v2158
    %v2167 = vadd.f32 %v1977, %v2163
    %v2168 = vsel %vm167, %v2166, 0.0
    %2169 = vadd.xlane.f32.xlu0 %v2168
    %v2170 = vpop.xlane.xlu0 %2169
    %v2171 = vsel %vm167, %v2167, 0.0
    %2172 = vadd.xlane.f32.xlu0 %v2171
    %v2173 = vpop.xlane.xlu0 %2172
    %v2174 = vmul.f32 %v2170, %v1945
    %v2175 = vmul.f32 %v2173, %v1945
    %v2176 = vsub.f32 %v2166, %v2174
    %v2177 = vsub.f32 %v2167, %v2175
    %v2178 = vmul.f32 %v2176, %v2176
    %v2179 = vmul.f32 %v2177, %v2177
    %v2180 = vsel %vm167, %v2178, 0.0
    %2181 = vadd.xlane.f32.xlu0 %v2180
    %v2182 = vpop.xlane.xlu0 %2181
    %v2183 = vsel %vm167, %v2179, 0.0
    %2184 = vadd.xlane.f32.xlu0 %v2183
    %v2185 = vpop.xlane.xlu0 %2184
    %v2186 = vmul.f32 %v2182, %v1945
    %v2187 = vmul.f32 %v2185, %v1945
    %v2188 = vadd.f32 %v2186, 1e-05
    %v2189 = vadd.f32 %v2187, 1e-05
    %v2190 = vrsqrt.pop %v2188
    %v2191 = vrsqrt.pop %v2189
    %v2192 = vmul.f32 %v2176, %v2190
    %v2193 = vmul.f32 %v2177, %v2191
    %v2194 = vlaneseq
    %v2195 = vshrl.u32 %v2194, 7
    %v2196 = vsub.s32 4, %v2195
    %v2197 = vrot.slane %v391, %v2196
    %v2198 = vmul.f32 %v2192, %v2197
    %v2199 = vmul.f32 %v2193, %v2197
    %v2200 = vlaneseq
    %v2201 = vshrl.u32 %v2200, 7
    %v2202 = vsub.s32 5, %v2201
    %v2203 = vrot.slane %v391, %v2202
    %v2204 = vadd.f32 %v2198, %v2203
    %v2205 = vadd.f32 %v2199, %v2203
    %v2206 = vld [vmem:[%s18] sm:$0x3f]
    %v2207 = vld [vmem:[%s12] sm:$0xff]
    %v2208 = vld [vmem:[%s12 + $0x8] sm:$0xff]
    %v2209 = vld [vmem:[%s12 + $0x10] sm:$0xff]
    %v2210 = vld [vmem:[%s12 + $0x18] sm:$0xff]
    %v2211 = vld [vmem:[%s13] sm:$0x1]
    %v2213 = vlaneseq
    %v2214 = vshrl.u32 %v2213, 7
    %v2215 = vsub.s32 0, %v2214
    %v2216 = vrot.slane %v2211, %v2215
    %v2219 = vsel %vm167, %v2204, 0
    %v2222 = vsel %vm167, %v2205, 0
    %2224 = vmatprep.subr.mxu0 0.0
    %2225 = vmatpush1.msra.mxu0 0.0
    %2226 = vmatprep.subr.mxu0 0.0
    %2227 = vmatpush1.msra.mxu0 0.0
    %2228 = vmatprep.subr.mxu0 0.0
    %2229 = vmatpush1.msra.mxu0 0.0
    %2230 = vmatprep.subr.mxu0 0.0
    %2231 = vmatpush1.msra.mxu0 0.0
    %2232 = vmatprep.subr.mxu0 0.0
    %2233 = vmatpush1.msra.mxu0 0.0
    %2234 = vmatprep.subr.mxu0 0.0
    %2235 = vmatpush1.msra.mxu0 0.0
    %2236 = vmatprep.subr.mxu0 0.0
    %2237 = vmatpush1.msra.mxu0 0.0
    %2238 = vmatprep.subr.mxu0 0.0
    %2239 = vmatpush1.msra.mxu0 0.0
    %2240 = vmatprep.subr.mxu0 0.0
    %2241 = vmatpush1.msra.mxu0 0.0
    %2242 = vmatprep.subr.mxu0 0.0
    %2243 = vmatpush1.msra.mxu0 0.0
    %2244 = vmatprep.subr.mxu0 0.0
    %2245 = vmatpush1.msra.mxu0 0.0
    %2246 = vmatprep.subr.mxu0 0.0
    %2247 = vmatpush1.msra.mxu0 0.0
    %2248 = vmatprep.subr.mxu0 0.0
    %2249 = vmatpush1.msra.mxu0 %v2210
    %2250 = vmatprep.subr.mxu0 0.0
    %2251 = vmatpush1.msra.mxu0 %v2209
    %2252 = vmatprep.subr.mxu0 0.0
    %2253 = vmatpush1.msra.mxu0 %v2208
    %2254 = vmatprep.subr.mxu0 0.0
    %2255 = vmatpush1.msra.mxu0 %v2207
    %2256 = vmatprep.subr.mxu0 0.0
    %2257 = vmatpush2.msra.mxu0 0.0
    %2258 = vmatprep.subr.mxu0 0.0
    %2259 = vmatpush2.msra.mxu0 0.0
    %2260 = vmatprep.subr.mxu0 0.0
    %2261 = vmatpush2.msra.mxu0 0.0
    %2262 = vmatprep.subr.mxu0 0.0
    %2263 = vmatpush2.msra.mxu0 0.0
    %2264 = vmatprep.subr.mxu0 0.0
    %2265 = vmatpush2.msra.mxu0 0.0
    %2266 = vmatprep.subr.mxu0 0.0
    %2267 = vmatpush2.msra.mxu0 0.0
    %2268 = vmatprep.subr.mxu0 0.0
    %2269 = vmatpush2.msra.mxu0 0.0
    %2270 = vmatprep.subr.mxu0 0.0
    %2271 = vmatpush2.msra.mxu0 0.0
    %2272 = vmatprep.subr.mxu0 0.0
    %2273 = vmatpush2.msra.mxu0 0.0
    %2274 = vmatprep.subr.mxu0 0.0
    %2275 = vmatpush2.msra.mxu0 0.0
    %2276 = vmatprep.subr.mxu0 0.0
    %2277 = vmatpush2.msra.mxu0 0.0
    %2278 = vmatprep.subr.mxu0 0.0
    %2279 = vmatpush2.msra.mxu0 0.0
    %2280 = vmatprep.subr.mxu0 0.0
    %2281 = vmatpush2.msra.mxu0 0.0
    %2282 = vmatprep.subr.mxu0 0.0
    %2283 = vmatpush2.msra.mxu0 0.0
    %2284 = vmatprep.subr.mxu0 0.0
    %2285 = vmatpush2.msra.mxu0 0.0
    %2286 = vmatprep.subr.mxu0 0.0
    %2287 = vmatpush2.msra.mxu0 0.0
    %2288 = vmatprep.mubr.f32.mxu0 0.0
    %2289 = vmatmul.mubr.f32.gmra.mxu0 %v2219
    %v2290 = vpop.f32.mrf.mxu0
    %v2291 = vadd.f32 %v2216, %v2290
    %v2292 = vpop.f32.mrf.mxu0
    %2293 = vmatprep.mubr.f32.mxu0 0.0
    %2294 = vmatmul.mubr.f32.gmra.mxu0 %v2222
    %v2295 = vpop.f32.mrf.mxu0
    %v2296 = vadd.f32 %v2216, %v2295
    %v2297 = vpop.f32.mrf.mxu0
    %2298 = vdwg.mxu0
    %2300 = vrot.lane.b32.xlu0 %v2291, 96
    %v2301 = vpop.permute.xlu0 %2300
    %v2302 = vsel %vm487, %v2291, 0
    %v2304 = vsel %vm487, %v2301, 0
    %2306 = vmatprep.subr.mxu0 0.0
    %2307 = vmatpush1.xpose.msra.mxu0 0.0
    %2308 = vmatprep.subr.mxu0 0.0
    %2309 = vmatpush1.xpose.msra.mxu0 0.0
    %2310 = vmatprep.subr.mxu0 0.0
    %2311 = vmatpush1.xpose.msra.mxu0 0.0
    %2312 = vmatprep.subr.mxu0 0.0
    %2313 = vmatpush1.xpose.msra.mxu0 0.0
    %2314 = vmatprep.subr.mxu0 0.0
    %2315 = vmatpush1.xpose.msra.mxu0 0.0
    %2316 = vmatprep.subr.mxu0 0.0
    %2317 = vmatpush1.xpose.msra.mxu0 0.0
    %2318 = vmatprep.subr.mxu0 0.0
    %2319 = vmatpush1.xpose.msra.mxu0 0.0
    %2320 = vmatprep.subr.mxu0 0.0
    %2321 = vmatpush1.xpose.msra.mxu0 0.0
    %2322 = vmatprep.subr.mxu0 0.0
    %2323 = vmatpush1.xpose.msra.mxu0 0.0
    %2324 = vmatprep.subr.mxu0 0.0
    %2325 = vmatpush1.xpose.msra.mxu0 0.0
    %2326 = vmatprep.subr.mxu0 0.0
    %2327 = vmatpush1.xpose.msra.mxu0 0.0
    %2328 = vmatprep.subr.mxu0 0.0
    %2329 = vmatpush1.xpose.msra.mxu0 0.0
    %2330 = vmatprep.subr.mxu0 0.0
    %2331 = vmatpush1.xpose.msra.mxu0 0.0
    %2332 = vmatprep.subr.mxu0 0.0
    %2333 = vmatpush1.xpose.msra.mxu0 0.0
    %2334 = vmatprep.subr.mxu0 0.0
    %2335 = vmatpush1.xpose.msra.mxu0 0.0
    %2336 = vmatprep.subr.mxu0 0.0
    %2337 = vmatpush1.xpose.msra.mxu0 %v2304
    %2338 = vmatprep.subr.mxu0 0.0
    %2339 = vmatpush2.xpose.msra.mxu0 0.0
    %2340 = vmatprep.subr.mxu0 0.0
    %2341 = vmatpush2.xpose.msra.mxu0 0.0
    %2342 = vmatprep.subr.mxu0 0.0
    %2343 = vmatpush2.xpose.msra.mxu0 0.0
    %2344 = vmatprep.subr.mxu0 0.0
    %2345 = vmatpush2.xpose.msra.mxu0 0.0
    %2346 = vmatprep.subr.mxu0 0.0
    %2347 = vmatpush2.xpose.msra.mxu0 0.0
    %2348 = vmatprep.subr.mxu0 0.0
    %2349 = vmatpush2.xpose.msra.mxu0 0.0
    %2350 = vmatprep.subr.mxu0 0.0
    %2351 = vmatpush2.xpose.msra.mxu0 0.0
    %2352 = vmatprep.subr.mxu0 0.0
    %2353 = vmatpush2.xpose.msra.mxu0 0.0
    %2354 = vmatprep.subr.mxu0 0.0
    %2355 = vmatpush2.xpose.msra.mxu0 0.0
    %2356 = vmatprep.subr.mxu0 0.0
    %2357 = vmatpush2.xpose.msra.mxu0 0.0
    %2358 = vmatprep.subr.mxu0 0.0
    %2359 = vmatpush2.xpose.msra.mxu0 0.0
    %2360 = vmatprep.subr.mxu0 0.0
    %2361 = vmatpush2.xpose.msra.mxu0 0.0
    %2362 = vmatprep.subr.mxu0 0.0
    %2363 = vmatpush2.xpose.msra.mxu0 0.0
    %2364 = vmatprep.subr.mxu0 0.0
    %2365 = vmatpush2.xpose.msra.mxu0 0.0
    %2366 = vmatprep.subr.mxu0 0.0
    %2367 = vmatpush2.xpose.msra.mxu0 0.0
    %2368 = vmatprep.subr.mxu0 0.0
    %2369 = vmatpush2.xpose.msra.mxu0 0.0
    %2370 = vmatprep.mubr.f32.mxu0 0.0
    %2371 = vmatmul.mubr.f32.gmra.mxu0 %v2302
    %v2372 = vpop.f32.mrf.mxu0
    %v2373 = vadd.f32 0.0, %v2372
    %v2374 = vpop.f32.mrf.mxu0
    %2375 = vdwg.mxu0
    %v2376 = vmul.f32 %v2373, 0.35355338
    %v2377 = vsel %vm487, %v2376, -inf
    %2378 = vmax.xlane.f32.xlu0 %v2377
    %v2379 = vpop.xlane.xlu0 %2378
    %v2380 = vsub.f32 %v2376, %v2379
    %v2381 = vmul.f32 %v2380, 1.442695
    %v2382 = vpow.pop %v2381
    %v2383 = vsel %vm487, %v2382, 0.0
    %2384 = vadd.xlane.f32.xlu0 %v2383
    %v2385 = vpop.xlane.xlu0 %2384
    %v2386 = vrcp.pop %v2385
    %v2387 = vmul.f32 %v2382, %v2386
    %2388 = vrot.lane.b32.xlu0 %v2291, 64
    %v2389 = vpop.permute.xlu0 %2388
    %v2392 = vsel %vm487, %v2387, 0
    %2394 = vmatprep.subr.mxu0 0.0
    %2395 = vmatpush1.msra.mxu0 0.0
    %2396 = vmatprep.subr.mxu0 0.0
    %2397 = vmatpush1.msra.mxu0 0.0
    %2398 = vmatprep.subr.mxu0 0.0
    %2399 = vmatpush1.msra.mxu0 0.0
    %2400 = vmatprep.subr.mxu0 0.0
    %2401 = vmatpush1.msra.mxu0 0.0
    %2402 = vmatprep.subr.mxu0 0.0
    %2403 = vmatpush1.msra.mxu0 0.0
    %2404 = vmatprep.subr.mxu0 0.0
    %2405 = vmatpush1.msra.mxu0 0.0
    %2406 = vmatprep.subr.mxu0 0.0
    %2407 = vmatpush1.msra.mxu0 0.0
    %2408 = vmatprep.subr.mxu0 0.0
    %2409 = vmatpush1.msra.mxu0 0.0
    %2410 = vmatprep.subr.mxu0 0.0
    %2411 = vmatpush1.msra.mxu0 0.0
    %2412 = vmatprep.subr.mxu0 0.0
    %2413 = vmatpush1.msra.mxu0 0.0
    %2414 = vmatprep.subr.mxu0 0.0
    %2415 = vmatpush1.msra.mxu0 0.0
    %2416 = vmatprep.subr.mxu0 0.0
    %2417 = vmatpush1.msra.mxu0 0.0
    %2418 = vmatprep.subr.mxu0 0.0
    %2419 = vmatpush1.msra.mxu0 0.0
    %2420 = vmatprep.subr.mxu0 0.0
    %2421 = vmatpush1.msra.mxu0 0.0
    %2422 = vmatprep.subr.mxu0 0.0
    %2423 = vmatpush1.msra.mxu0 0.0
    %2424 = vmatprep.subr.mxu0 0.0
    %2425 = vmatpush1.msra.mxu0 %v2389
    %2426 = vmatprep.subr.mxu0 0.0
    %2427 = vmatpush2.msra.mxu0 0.0
    %2428 = vmatprep.subr.mxu0 0.0
    %2429 = vmatpush2.msra.mxu0 0.0
    %2430 = vmatprep.subr.mxu0 0.0
    %2431 = vmatpush2.msra.mxu0 0.0
    %2432 = vmatprep.subr.mxu0 0.0
    %2433 = vmatpush2.msra.mxu0 0.0
    %2434 = vmatprep.subr.mxu0 0.0
    %2435 = vmatpush2.msra.mxu0 0.0
    %2436 = vmatprep.subr.mxu0 0.0
    %2437 = vmatpush2.msra.mxu0 0.0
    %2438 = vmatprep.subr.mxu0 0.0
    %2439 = vmatpush2.msra.mxu0 0.0
    %2440 = vmatprep.subr.mxu0 0.0
    %2441 = vmatpush2.msra.mxu0 0.0
    %2442 = vmatprep.subr.mxu0 0.0
    %2443 = vmatpush2.msra.mxu0 0.0
    %2444 = vmatprep.subr.mxu0 0.0
    %2445 = vmatpush2.msra.mxu0 0.0
    %2446 = vmatprep.subr.mxu0 0.0
    %2447 = vmatpush2.msra.mxu0 0.0
    %2448 = vmatprep.subr.mxu0 0.0
    %2449 = vmatpush2.msra.mxu0 0.0
    %2450 = vmatprep.subr.mxu0 0.0
    %2451 = vmatpush2.msra.mxu0 0.0
    %2452 = vmatprep.subr.mxu0 0.0
    %2453 = vmatpush2.msra.mxu0 0.0
    %2454 = vmatprep.subr.mxu0 0.0
    %2455 = vmatpush2.msra.mxu0 0.0
    %2456 = vmatprep.subr.mxu0 0.0
    %2457 = vmatpush2.msra.mxu0 0.0
    %2458 = vmatprep.mubr.f32.mxu0 0.0
    %2459 = vmatmul.mubr.f32.gmra.mxu0 %v2392
    %v2460 = vpop.f32.mrf.mxu0
    %v2461 = vadd.f32 0.0, %v2460
    %v2462 = vpop.f32.mrf.mxu0
    %2463 = vdwg.mxu0
    %2464 = vst.msk [vmem:[#allocation2] sm:$0xff] %vm487, %v2461
    %2465 = vrot.lane.b32.xlu0 %v2291, 120
    %v2466 = vpop.permute.xlu0 %2465
    %2467 = vrot.lane.b32.xlu0 %v2291, 88
    %v2468 = vpop.permute.xlu0 %2467
    %v2469 = vsel %vm487, %v2466, 0
    %v2471 = vsel %vm487, %v2468, 0
    %2473 = vmatprep.subr.mxu0 0.0
    %2474 = vmatpush1.xpose.msra.mxu0 0.0
    %2475 = vmatprep.subr.mxu0 0.0
    %2476 = vmatpush1.xpose.msra.mxu0 0.0
    %2477 = vmatprep.subr.mxu0 0.0
    %2478 = vmatpush1.xpose.msra.mxu0 0.0
    %2479 = vmatprep.subr.mxu0 0.0
    %2480 = vmatpush1.xpose.msra.mxu0 0.0
    %2481 = vmatprep.subr.mxu0 0.0
    %2482 = vmatpush1.xpose.msra.mxu0 0.0
    %2483 = vmatprep.subr.mxu0 0.0
    %2484 = vmatpush1.xpose.msra.mxu0 0.0
    %2485 = vmatprep.subr.mxu0 0.0
    %2486 = vmatpush1.xpose.msra.mxu0 0.0
    %2487 = vmatprep.subr.mxu0 0.0
    %2488 = vmatpush1.xpose.msra.mxu0 0.0
    %2489 = vmatprep.subr.mxu0 0.0
    %2490 = vmatpush1.xpose.msra.mxu0 0.0
    %2491 = vmatprep.subr.mxu0 0.0
    %2492 = vmatpush1.xpose.msra.mxu0 0.0
    %2493 = vmatprep.subr.mxu0 0.0
    %2494 = vmatpush1.xpose.msra.mxu0 0.0
    %2495 = vmatprep.subr.mxu0 0.0
    %2496 = vmatpush1.xpose.msra.mxu0 0.0
    %2497 = vmatprep.subr.mxu0 0.0
    %2498 = vmatpush1.xpose.msra.mxu0 0.0
    %2499 = vmatprep.subr.mxu0 0.0
    %2500 = vmatpush1.xpose.msra.mxu0 0.0
    %2501 = vmatprep.subr.mxu0 0.0
    %2502 = vmatpush1.xpose.msra.mxu0 0.0
    %2503 = vmatprep.subr.mxu0 0.0
    %2504 = vmatpush1.xpose.msra.mxu0 %v2471
    %2505 = vmatprep.subr.mxu0 0.0
    %2506 = vmatpush2.xpose.msra.mxu0 0.0
    %2507 = vmatprep.subr.mxu0 0.0
    %2508 = vmatpush2.xpose.msra.mxu0 0.0
    %2509 = vmatprep.subr.mxu0 0.0
    %2510 = vmatpush2.xpose.msra.mxu0 0.0
    %2511 = vmatprep.subr.mxu0 0.0
    %2512 = vmatpush2.xpose.msra.mxu0 0.0
    %2513 = vmatprep.subr.mxu0 0.0
    %2514 = vmatpush2.xpose.msra.mxu0 0.0
    %2515 = vmatprep.subr.mxu0 0.0
    %2516 = vmatpush2.xpose.msra.mxu0 0.0
    %2517 = vmatprep.subr.mxu0 0.0
    %2518 = vmatpush2.xpose.msra.mxu0 0.0
    %2519 = vmatprep.subr.mxu0 0.0
    %2520 = vmatpush2.xpose.msra.mxu0 0.0
    %2521 = vmatprep.subr.mxu0 0.0
    %2522 = vmatpush2.xpose.msra.mxu0 0.0
    %2523 = vmatprep.subr.mxu0 0.0
    %2524 = vmatpush2.xpose.msra.mxu0 0.0
    %2525 = vmatprep.subr.mxu0 0.0
    %2526 = vmatpush2.xpose.msra.mxu0 0.0
    %2527 = vmatprep.subr.mxu0 0.0
    %2528 = vmatpush2.xpose.msra.mxu0 0.0
    %2529 = vmatprep.subr.mxu0 0.0
    %2530 = vmatpush2.xpose.msra.mxu0 0.0
    %2531 = vmatprep.subr.mxu0 0.0
    %2532 = vmatpush2.xpose.msra.mxu0 0.0
    %2533 = vmatprep.subr.mxu0 0.0
    %2534 = vmatpush2.xpose.msra.mxu0 0.0
    %2535 = vmatprep.subr.mxu0 0.0
    %2536 = vmatpush2.xpose.msra.mxu0 0.0
    %2537 = vmatprep.mubr.f32.mxu0 0.0
    %2538 = vmatmul.mubr.f32.gmra.mxu0 %v2469
    %v2539 = vpop.f32.mrf.mxu0
    %v2540 = vadd.f32 0.0, %v2539
    %v2541 = vpop.f32.mrf.mxu0
    %2542 = vdwg.mxu0
    %v2543 = vmul.f32 %v2540, 0.35355338
    %v2544 = vsel %vm487, %v2543, -inf
    %2545 = vmax.xlane.f32.xlu0 %v2544
    %v2546 = vpop.xlane.xlu0 %2545
    %v2547 = vsub.f32 %v2543, %v2546
    %v2548 = vmul.f32 %v2547, 1.442695
    %v2549 = vpow.pop %v2548
    %v2550 = vsel %vm487, %v2549, 0.0
    %2551 = vadd.xlane.f32.xlu0 %v2550
    %v2552 = vpop.xlane.xlu0 %2551
    %v2553 = vrcp.pop %v2552
    %v2554 = vmul.f32 %v2549, %v2553
    %2555 = vrot.lane.b32.xlu0 %v2291, 56
    %v2556 = vpop.permute.xlu0 %2555
    %v2559 = vsel %vm487, %v2554, 0
    %2561 = vmatprep.subr.mxu0 0.0
    %2562 = vmatpush1.msra.mxu0 0.0
    %2563 = vmatprep.subr.mxu0 0.0
    %2564 = vmatpush1.msra.mxu0 0.0
    %2565 = vmatprep.subr.mxu0 0.0
    %2566 = vmatpush1.msra.mxu0 0.0
    %2567 = vmatprep.subr.mxu0 0.0
    %2568 = vmatpush1.msra.mxu0 0.0
    %2569 = vmatprep.subr.mxu0 0.0
    %2570 = vmatpush1.msra.mxu0 0.0
    %2571 = vmatprep.subr.mxu0 0.0
    %2572 = vmatpush1.msra.mxu0 0.0
    %2573 = vmatprep.subr.mxu0 0.0
    %2574 = vmatpush1.msra.mxu0 0.0
    %2575 = vmatprep.subr.mxu0 0.0
    %2576 = vmatpush1.msra.mxu0 0.0
    %2577 = vmatprep.subr.mxu0 0.0
    %2578 = vmatpush1.msra.mxu0 0.0
    %2579 = vmatprep.subr.mxu0 0.0
    %2580 = vmatpush1.msra.mxu0 0.0
    %2581 = vmatprep.subr.mxu0 0.0
    %2582 = vmatpush1.msra.mxu0 0.0
    %2583 = vmatprep.subr.mxu0 0.0
    %2584 = vmatpush1.msra.mxu0 0.0
    %2585 = vmatprep.subr.mxu0 0.0
    %2586 = vmatpush1.msra.mxu0 0.0
    %2587 = vmatprep.subr.mxu0 0.0
    %2588 = vmatpush1.msra.mxu0 0.0
    %2589 = vmatprep.subr.mxu0 0.0
    %2590 = vmatpush1.msra.mxu0 0.0
    %2591 = vmatprep.subr.mxu0 0.0
    %2592 = vmatpush1.msra.mxu0 %v2556
    %2593 = vmatprep.subr.mxu0 0.0
    %2594 = vmatpush2.msra.mxu0 0.0
    %2595 = vmatprep.subr.mxu0 0.0
    %2596 = vmatpush2.msra.mxu0 0.0
    %2597 = vmatprep.subr.mxu0 0.0
    %2598 = vmatpush2.msra.mxu0 0.0
    %2599 = vmatprep.subr.mxu0 0.0
    %2600 = vmatpush2.msra.mxu0 0.0
    %2601 = vmatprep.subr.mxu0 0.0
    %2602 = vmatpush2.msra.mxu0 0.0
    %2603 = vmatprep.subr.mxu0 0.0
    %2604 = vmatpush2.msra.mxu0 0.0
    %2605 = vmatprep.subr.mxu0 0.0
    %2606 = vmatpush2.msra.mxu0 0.0
    %2607 = vmatprep.subr.mxu0 0.0
    %2608 = vmatpush2.msra.mxu0 0.0
    %2609 = vmatprep.subr.mxu0 0.0
    %2610 = vmatpush2.msra.mxu0 0.0
    %2611 = vmatprep.subr.mxu0 0.0
    %2612 = vmatpush2.msra.mxu0 0.0
    %2613 = vmatprep.subr.mxu0 0.0
    %2614 = vmatpush2.msra.mxu0 0.0
    %2615 = vmatprep.subr.mxu0 0.0
    %2616 = vmatpush2.msra.mxu0 0.0
    %2617 = vmatprep.subr.mxu0 0.0
    %2618 = vmatpush2.msra.mxu0 0.0
    %2619 = vmatprep.subr.mxu0 0.0
    %2620 = vmatpush2.msra.mxu0 0.0
    %2621 = vmatprep.subr.mxu0 0.0
    %2622 = vmatpush2.msra.mxu0 0.0
    %2623 = vmatprep.subr.mxu0 0.0
    %2624 = vmatpush2.msra.mxu0 0.0
    %2625 = vmatprep.mubr.f32.mxu0 0.0
    %2626 = vmatmul.mubr.f32.gmra.mxu0 %v2559
    %v2627 = vpop.f32.mrf.mxu0
    %v2628 = vadd.f32 0.0, %v2627
    %v2629 = vpop.f32.mrf.mxu0
    %2630 = vdwg.mxu0
    %2632 = vrot.lane.b32.xlu0 %v2628, 8
    %v2633 = vpop.permute.xlu0 %2632
    %2635 = vst.msk [vmem:[#allocation2] sm:$0xff] %vm821, %v2633
    %2636 = vrot.lane.b32.xlu0 %v2291, 112
    %v2637 = vpop.permute.xlu0 %2636
    %2638 = vrot.lane.b32.xlu0 %v2291, 80
    %v2639 = vpop.permute.xlu0 %2638
    %v2640 = vsel %vm487, %v2637, 0
    %v2642 = vsel %vm487, %v2639, 0
    %2644 = vmatprep.subr.mxu0 0.0
    %2645 = vmatpush1.xpose.msra.mxu0 0.0
    %2646 = vmatprep.subr.mxu0 0.0
    %2647 = vmatpush1.xpose.msra.mxu0 0.0
    %2648 = vmatprep.subr.mxu0 0.0
    %2649 = vmatpush1.xpose.msra.mxu0 0.0
    %2650 = vmatprep.subr.mxu0 0.0
    %2651 = vmatpush1.xpose.msra.mxu0 0.0
    %2652 = vmatprep.subr.mxu0 0.0
    %2653 = vmatpush1.xpose.msra.mxu0 0.0
    %2654 = vmatprep.subr.mxu0 0.0
    %2655 = vmatpush1.xpose.msra.mxu0 0.0
    %2656 = vmatprep.subr.mxu0 0.0
    %2657 = vmatpush1.xpose.msra.mxu0 0.0
    %2658 = vmatprep.subr.mxu0 0.0
    %2659 = vmatpush1.xpose.msra.mxu0 0.0
    %2660 = vmatprep.subr.mxu0 0.0
    %2661 = vmatpush1.xpose.msra.mxu0 0.0
    %2662 = vmatprep.subr.mxu0 0.0
    %2663 = vmatpush1.xpose.msra.mxu0 0.0
    %2664 = vmatprep.subr.mxu0 0.0
    %2665 = vmatpush1.xpose.msra.mxu0 0.0
    %2666 = vmatprep.subr.mxu0 0.0
    %2667 = vmatpush1.xpose.msra.mxu0 0.0
    %2668 = vmatprep.subr.mxu0 0.0
    %2669 = vmatpush1.xpose.msra.mxu0 0.0
    %2670 = vmatprep.subr.mxu0 0.0
    %2671 = vmatpush1.xpose.msra.mxu0 0.0
    %2672 = vmatprep.subr.mxu0 0.0
    %2673 = vmatpush1.xpose.msra.mxu0 0.0
    %2674 = vmatprep.subr.mxu0 0.0
    %2675 = vmatpush1.xpose.msra.mxu0 %v2642
    %2676 = vmatprep.subr.mxu0 0.0
    %2677 = vmatpush2.xpose.msra.mxu0 0.0
    %2678 = vmatprep.subr.mxu0 0.0
    %2679 = vmatpush2.xpose.msra.mxu0 0.0
    %2680 = vmatprep.subr.mxu0 0.0
    %2681 = vmatpush2.xpose.msra.mxu0 0.0
    %2682 = vmatprep.subr.mxu0 0.0
    %2683 = vmatpush2.xpose.msra.mxu0 0.0
    %2684 = vmatprep.subr.mxu0 0.0
    %2685 = vmatpush2.xpose.msra.mxu0 0.0
    %2686 = vmatprep.subr.mxu0 0.0
    %2687 = vmatpush2.xpose.msra.mxu0 0.0
    %2688 = vmatprep.subr.mxu0 0.0
    %2689 = vmatpush2.xpose.msra.mxu0 0.0
    %2690 = vmatprep.subr.mxu0 0.0
    %2691 = vmatpush2.xpose.msra.mxu0 0.0
    %2692 = vmatprep.subr.mxu0 0.0
    %2693 = vmatpush2.xpose.msra.mxu0 0.0
    %2694 = vmatprep.subr.mxu0 0.0
    %2695 = vmatpush2.xpose.msra.mxu0 0.0
    %2696 = vmatprep.subr.mxu0 0.0
    %2697 = vmatpush2.xpose.msra.mxu0 0.0
    %2698 = vmatprep.subr.mxu0 0.0
    %2699 = vmatpush2.xpose.msra.mxu0 0.0
    %2700 = vmatprep.subr.mxu0 0.0
    %2701 = vmatpush2.xpose.msra.mxu0 0.0
    %2702 = vmatprep.subr.mxu0 0.0
    %2703 = vmatpush2.xpose.msra.mxu0 0.0
    %2704 = vmatprep.subr.mxu0 0.0
    %2705 = vmatpush2.xpose.msra.mxu0 0.0
    %2706 = vmatprep.subr.mxu0 0.0
    %2707 = vmatpush2.xpose.msra.mxu0 0.0
    %2708 = vmatprep.mubr.f32.mxu0 0.0
    %2709 = vmatmul.mubr.f32.gmra.mxu0 %v2640
    %v2710 = vpop.f32.mrf.mxu0
    %v2711 = vadd.f32 0.0, %v2710
    %v2712 = vpop.f32.mrf.mxu0
    %2713 = vdwg.mxu0
    %v2714 = vmul.f32 %v2711, 0.35355338
    %v2715 = vsel %vm487, %v2714, -inf
    %2716 = vmax.xlane.f32.xlu0 %v2715
    %v2717 = vpop.xlane.xlu0 %2716
    %v2718 = vsub.f32 %v2714, %v2717
    %v2719 = vmul.f32 %v2718, 1.442695
    %v2720 = vpow.pop %v2719
    %v2721 = vsel %vm487, %v2720, 0.0
    %2722 = vadd.xlane.f32.xlu0 %v2721
    %v2723 = vpop.xlane.xlu0 %2722
    %v2724 = vrcp.pop %v2723
    %v2725 = vmul.f32 %v2720, %v2724
    %2726 = vrot.lane.b32.xlu0 %v2291, 48
    %v2727 = vpop.permute.xlu0 %2726
    %v2730 = vsel %vm487, %v2725, 0
    %2732 = vmatprep.subr.mxu0 0.0
    %2733 = vmatpush1.msra.mxu0 0.0
    %2734 = vmatprep.subr.mxu0 0.0
    %2735 = vmatpush1.msra.mxu0 0.0
    %2736 = vmatprep.subr.mxu0 0.0
    %2737 = vmatpush1.msra.mxu0 0.0
    %2738 = vmatprep.subr.mxu0 0.0
    %2739 = vmatpush1.msra.mxu0 0.0
    %2740 = vmatprep.subr.mxu0 0.0
    %2741 = vmatpush1.msra.mxu0 0.0
    %2742 = vmatprep.subr.mxu0 0.0
    %2743 = vmatpush1.msra.mxu0 0.0
    %2744 = vmatprep.subr.mxu0 0.0
    %2745 = vmatpush1.msra.mxu0 0.0
    %2746 = vmatprep.subr.mxu0 0.0
    %2747 = vmatpush1.msra.mxu0 0.0
    %2748 = vmatprep.subr.mxu0 0.0
    %2749 = vmatpush1.msra.mxu0 0.0
    %2750 = vmatprep.subr.mxu0 0.0
    %2751 = vmatpush1.msra.mxu0 0.0
    %2752 = vmatprep.subr.mxu0 0.0
    %2753 = vmatpush1.msra.mxu0 0.0
    %2754 = vmatprep.subr.mxu0 0.0
    %2755 = vmatpush1.msra.mxu0 0.0
    %2756 = vmatprep.subr.mxu0 0.0
    %2757 = vmatpush1.msra.mxu0 0.0
    %2758 = vmatprep.subr.mxu0 0.0
    %2759 = vmatpush1.msra.mxu0 0.0
    %2760 = vmatprep.subr.mxu0 0.0
    %2761 = vmatpush1.msra.mxu0 0.0
    %2762 = vmatprep.subr.mxu0 0.0
    %2763 = vmatpush1.msra.mxu0 %v2727
    %2764 = vmatprep.subr.mxu0 0.0
    %2765 = vmatpush2.msra.mxu0 0.0
    %2766 = vmatprep.subr.mxu0 0.0
    %2767 = vmatpush2.msra.mxu0 0.0
    %2768 = vmatprep.subr.mxu0 0.0
    %2769 = vmatpush2.msra.mxu0 0.0
    %2770 = vmatprep.subr.mxu0 0.0
    %2771 = vmatpush2.msra.mxu0 0.0
    %2772 = vmatprep.subr.mxu0 0.0
    %2773 = vmatpush2.msra.mxu0 0.0
    %2774 = vmatprep.subr.mxu0 0.0
    %2775 = vmatpush2.msra.mxu0 0.0
    %2776 = vmatprep.subr.mxu0 0.0
    %2777 = vmatpush2.msra.mxu0 0.0
    %2778 = vmatprep.subr.mxu0 0.0
    %2779 = vmatpush2.msra.mxu0 0.0
    %2780 = vmatprep.subr.mxu0 0.0
    %2781 = vmatpush2.msra.mxu0 0.0
    %2782 = vmatprep.subr.mxu0 0.0
    %2783 = vmatpush2.msra.mxu0 0.0
    %2784 = vmatprep.subr.mxu0 0.0
    %2785 = vmatpush2.msra.mxu0 0.0
    %2786 = vmatprep.subr.mxu0 0.0
    %2787 = vmatpush2.msra.mxu0 0.0
    %2788 = vmatprep.subr.mxu0 0.0
    %2789 = vmatpush2.msra.mxu0 0.0
    %2790 = vmatprep.subr.mxu0 0.0
    %2791 = vmatpush2.msra.mxu0 0.0
    %2792 = vmatprep.subr.mxu0 0.0
    %2793 = vmatpush2.msra.mxu0 0.0
    %2794 = vmatprep.subr.mxu0 0.0
    %2795 = vmatpush2.msra.mxu0 0.0
    %2796 = vmatprep.mubr.f32.mxu0 0.0
    %2797 = vmatmul.mubr.f32.gmra.mxu0 %v2730
    %v2798 = vpop.f32.mrf.mxu0
    %v2799 = vadd.f32 0.0, %v2798
    %v2800 = vpop.f32.mrf.mxu0
    %2801 = vdwg.mxu0
    %2803 = vrot.lane.b32.xlu0 %v2799, 16
    %v2804 = vpop.permute.xlu0 %2803
    %2806 = vst.msk [vmem:[#allocation2] sm:$0xff] %vm993, %v2804
    %2807 = vrot.lane.b32.xlu0 %v2291, 104
    %v2808 = vpop.permute.xlu0 %2807
    %2809 = vrot.lane.b32.xlu0 %v2291, 72
    %v2810 = vpop.permute.xlu0 %2809
    %v2811 = vsel %vm487, %v2808, 0
    %v2813 = vsel %vm487, %v2810, 0
    %2815 = vmatprep.subr.mxu0 0.0
    %2816 = vmatpush1.xpose.msra.mxu0 0.0
    %2817 = vmatprep.subr.mxu0 0.0
    %2818 = vmatpush1.xpose.msra.mxu0 0.0
    %2819 = vmatprep.subr.mxu0 0.0
    %2820 = vmatpush1.xpose.msra.mxu0 0.0
    %2821 = vmatprep.subr.mxu0 0.0
    %2822 = vmatpush1.xpose.msra.mxu0 0.0
    %2823 = vmatprep.subr.mxu0 0.0
    %2824 = vmatpush1.xpose.msra.mxu0 0.0
    %2825 = vmatprep.subr.mxu0 0.0
    %2826 = vmatpush1.xpose.msra.mxu0 0.0
    %2827 = vmatprep.subr.mxu0 0.0
    %2828 = vmatpush1.xpose.msra.mxu0 0.0
    %2829 = vmatprep.subr.mxu0 0.0
    %2830 = vmatpush1.xpose.msra.mxu0 0.0
    %2831 = vmatprep.subr.mxu0 0.0
    %2832 = vmatpush1.xpose.msra.mxu0 0.0
    %2833 = vmatprep.subr.mxu0 0.0
    %2834 = vmatpush1.xpose.msra.mxu0 0.0
    %2835 = vmatprep.subr.mxu0 0.0
    %2836 = vmatpush1.xpose.msra.mxu0 0.0
    %2837 = vmatprep.subr.mxu0 0.0
    %2838 = vmatpush1.xpose.msra.mxu0 0.0
    %2839 = vmatprep.subr.mxu0 0.0
    %2840 = vmatpush1.xpose.msra.mxu0 0.0
    %2841 = vmatprep.subr.mxu0 0.0
    %2842 = vmatpush1.xpose.msra.mxu0 0.0
    %2843 = vmatprep.subr.mxu0 0.0
    %2844 = vmatpush1.xpose.msra.mxu0 0.0
    %2845 = vmatprep.subr.mxu0 0.0
    %2846 = vmatpush1.xpose.msra.mxu0 %v2813
    %2847 = vmatprep.subr.mxu0 0.0
    %2848 = vmatpush2.xpose.msra.mxu0 0.0
    %2849 = vmatprep.subr.mxu0 0.0
    %2850 = vmatpush2.xpose.msra.mxu0 0.0
    %2851 = vmatprep.subr.mxu0 0.0
    %2852 = vmatpush2.xpose.msra.mxu0 0.0
    %2853 = vmatprep.subr.mxu0 0.0
    %2854 = vmatpush2.xpose.msra.mxu0 0.0
    %2855 = vmatprep.subr.mxu0 0.0
    %2856 = vmatpush2.xpose.msra.mxu0 0.0
    %2857 = vmatprep.subr.mxu0 0.0
    %2858 = vmatpush2.xpose.msra.mxu0 0.0
    %2859 = vmatprep.subr.mxu0 0.0
    %2860 = vmatpush2.xpose.msra.mxu0 0.0
    %2861 = vmatprep.subr.mxu0 0.0
    %2862 = vmatpush2.xpose.msra.mxu0 0.0
    %2863 = vmatprep.subr.mxu0 0.0
    %2864 = vmatpush2.xpose.msra.mxu0 0.0
    %2865 = vmatprep.subr.mxu0 0.0
    %2866 = vmatpush2.xpose.msra.mxu0 0.0
    %2867 = vmatprep.subr.mxu0 0.0
    %2868 = vmatpush2.xpose.msra.mxu0 0.0
    %2869 = vmatprep.subr.mxu0 0.0
    %2870 = vmatpush2.xpose.msra.mxu0 0.0
    %2871 = vmatprep.subr.mxu0 0.0
    %2872 = vmatpush2.xpose.msra.mxu0 0.0
    %2873 = vmatprep.subr.mxu0 0.0
    %2874 = vmatpush2.xpose.msra.mxu0 0.0
    %2875 = vmatprep.subr.mxu0 0.0
    %2876 = vmatpush2.xpose.msra.mxu0 0.0
    %2877 = vmatprep.subr.mxu0 0.0
    %2878 = vmatpush2.xpose.msra.mxu0 0.0
    %2879 = vmatprep.mubr.f32.mxu0 0.0
    %2880 = vmatmul.mubr.f32.gmra.mxu0 %v2811
    %v2881 = vpop.f32.mrf.mxu0
    %v2882 = vadd.f32 0.0, %v2881
    %v2883 = vpop.f32.mrf.mxu0
    %2884 = vdwg.mxu0
    %v2885 = vmul.f32 %v2882, 0.35355338
    %v2886 = vsel %vm487, %v2885, -inf
    %2887 = vmax.xlane.f32.xlu0 %v2886
    %v2888 = vpop.xlane.xlu0 %2887
    %v2889 = vsub.f32 %v2885, %v2888
    %v2890 = vmul.f32 %v2889, 1.442695
    %v2891 = vpow.pop %v2890
    %v2892 = vsel %vm487, %v2891, 0.0
    %2893 = vadd.xlane.f32.xlu0 %v2892
    %v2894 = vpop.xlane.xlu0 %2893
    %v2895 = vrcp.pop %v2894
    %v2896 = vmul.f32 %v2891, %v2895
    %2897 = vrot.lane.b32.xlu0 %v2291, 40
    %v2898 = vpop.permute.xlu0 %2897
    %v2901 = vsel %vm487, %v2896, 0
    %2903 = vmatprep.subr.mxu0 0.0
    %2904 = vmatpush1.msra.mxu0 0.0
    %2905 = vmatprep.subr.mxu0 0.0
    %2906 = vmatpush1.msra.mxu0 0.0
    %2907 = vmatprep.subr.mxu0 0.0
    %2908 = vmatpush1.msra.mxu0 0.0
    %2909 = vmatprep.subr.mxu0 0.0
    %2910 = vmatpush1.msra.mxu0 0.0
    %2911 = vmatprep.subr.mxu0 0.0
    %2912 = vmatpush1.msra.mxu0 0.0
    %2913 = vmatprep.subr.mxu0 0.0
    %2914 = vmatpush1.msra.mxu0 0.0
    %2915 = vmatprep.subr.mxu0 0.0
    %2916 = vmatpush1.msra.mxu0 0.0
    %2917 = vmatprep.subr.mxu0 0.0
    %2918 = vmatpush1.msra.mxu0 0.0
    %2919 = vmatprep.subr.mxu0 0.0
    %2920 = vmatpush1.msra.mxu0 0.0
    %2921 = vmatprep.subr.mxu0 0.0
    %2922 = vmatpush1.msra.mxu0 0.0
    %2923 = vmatprep.subr.mxu0 0.0
    %2924 = vmatpush1.msra.mxu0 0.0
    %2925 = vmatprep.subr.mxu0 0.0
    %2926 = vmatpush1.msra.mxu0 0.0
    %2927 = vmatprep.subr.mxu0 0.0
    %2928 = vmatpush1.msra.mxu0 0.0
    %2929 = vmatprep.subr.mxu0 0.0
    %2930 = vmatpush1.msra.mxu0 0.0
    %2931 = vmatprep.subr.mxu0 0.0
    %2932 = vmatpush1.msra.mxu0 0.0
    %2933 = vmatprep.subr.mxu0 0.0
    %2934 = vmatpush1.msra.mxu0 %v2898
    %2935 = vmatprep.subr.mxu0 0.0
    %2936 = vmatpush2.msra.mxu0 0.0
    %2937 = vmatprep.subr.mxu0 0.0
    %2938 = vmatpush2.msra.mxu0 0.0
    %2939 = vmatprep.subr.mxu0 0.0
    %2940 = vmatpush2.msra.mxu0 0.0
    %2941 = vmatprep.subr.mxu0 0.0
    %2942 = vmatpush2.msra.mxu0 0.0
    %2943 = vmatprep.subr.mxu0 0.0
    %2944 = vmatpush2.msra.mxu0 0.0
    %2945 = vmatprep.subr.mxu0 0.0
    %2946 = vmatpush2.msra.mxu0 0.0
    %2947 = vmatprep.subr.mxu0 0.0
    %2948 = vmatpush2.msra.mxu0 0.0
    %2949 = vmatprep.subr.mxu0 0.0
    %2950 = vmatpush2.msra.mxu0 0.0
    %2951 = vmatprep.subr.mxu0 0.0
    %2952 = vmatpush2.msra.mxu0 0.0
    %2953 = vmatprep.subr.mxu0 0.0
    %2954 = vmatpush2.msra.mxu0 0.0
    %2955 = vmatprep.subr.mxu0 0.0
    %2956 = vmatpush2.msra.mxu0 0.0
    %2957 = vmatprep.subr.mxu0 0.0
    %2958 = vmatpush2.msra.mxu0 0.0
    %2959 = vmatprep.subr.mxu0 0.0
    %2960 = vmatpush2.msra.mxu0 0.0
    %2961 = vmatprep.subr.mxu0 0.0
    %2962 = vmatpush2.msra.mxu0 0.0
    %2963 = vmatprep.subr.mxu0 0.0
    %2964 = vmatpush2.msra.mxu0 0.0
    %2965 = vmatprep.subr.mxu0 0.0
    %2966 = vmatpush2.msra.mxu0 0.0
    %2967 = vmatprep.mubr.f32.mxu0 0.0
    %2968 = vmatmul.mubr.f32.gmra.mxu0 %v2901
    %v2969 = vpop.f32.mrf.mxu0
    %v2970 = vadd.f32 0.0, %v2969
    %v2971 = vpop.f32.mrf.mxu0
    %2972 = vdwg.mxu0
    %2974 = vrot.lane.b32.xlu0 %v2970, 24
    %v2975 = vpop.permute.xlu0 %2974
    %2977 = vst.msk [vmem:[#allocation2] sm:$0xff] %vm1165, %v2975
    %2979 = vrot.lane.b32.xlu0 %v2296, 96
    %v2980 = vpop.permute.xlu0 %2979
    %v2981 = vsel %vm487, %v2296, 0
    %v2983 = vsel %vm487, %v2980, 0
    %2985 = vmatprep.subr.mxu0 0.0
    %2986 = vmatpush1.xpose.msra.mxu0 0.0
    %2987 = vmatprep.subr.mxu0 0.0
    %2988 = vmatpush1.xpose.msra.mxu0 0.0
    %2989 = vmatprep.subr.mxu0 0.0
    %2990 = vmatpush1.xpose.msra.mxu0 0.0
    %2991 = vmatprep.subr.mxu0 0.0
    %2992 = vmatpush1.xpose.msra.mxu0 0.0
    %2993 = vmatprep.subr.mxu0 0.0
    %2994 = vmatpush1.xpose.msra.mxu0 0.0
    %2995 = vmatprep.subr.mxu0 0.0
    %2996 = vmatpush1.xpose.msra.mxu0 0.0
    %2997 = vmatprep.subr.mxu0 0.0
    %2998 = vmatpush1.xpose.msra.mxu0 0.0
    %2999 = vmatprep.subr.mxu0 0.0
    %3000 = vmatpush1.xpose.msra.mxu0 0.0
    %3001 = vmatprep.subr.mxu0 0.0
    %3002 = vmatpush1.xpose.msra.mxu0 0.0
    %3003 = vmatprep.subr.mxu0 0.0
    %3004 = vmatpush1.xpose.msra.mxu0 0.0
    %3005 = vmatprep.subr.mxu0 0.0
    %3006 = vmatpush1.xpose.msra.mxu0 0.0
    %3007 = vmatprep.subr.mxu0 0.0
    %3008 = vmatpush1.xpose.msra.mxu0 0.0
    %3009 = vmatprep.subr.mxu0 0.0
    %3010 = vmatpush1.xpose.msra.mxu0 0.0
    %3011 = vmatprep.subr.mxu0 0.0
    %3012 = vmatpush1.xpose.msra.mxu0 0.0
    %3013 = vmatprep.subr.mxu0 0.0
    %3014 = vmatpush1.xpose.msra.mxu0 0.0
    %3015 = vmatprep.subr.mxu0 0.0
    %3016 = vmatpush1.xpose.msra.mxu0 %v2983
    %3017 = vmatprep.subr.mxu0 0.0
    %3018 = vmatpush2.xpose.msra.mxu0 0.0
    %3019 = vmatprep.subr.mxu0 0.0
    %3020 = vmatpush2.xpose.msra.mxu0 0.0
    %3021 = vmatprep.subr.mxu0 0.0
    %3022 = vmatpush2.xpose.msra.mxu0 0.0
    %3023 = vmatprep.subr.mxu0 0.0
    %3024 = vmatpush2.xpose.msra.mxu0 0.0
    %3025 = vmatprep.subr.mxu0 0.0
    %3026 = vmatpush2.xpose.msra.mxu0 0.0
    %3027 = vmatprep.subr.mxu0 0.0
    %3028 = vmatpush2.xpose.msra.mxu0 0.0
    %3029 = vmatprep.subr.mxu0 0.0
    %3030 = vmatpush2.xpose.msra.mxu0 0.0
    %3031 = vmatprep.subr.mxu0 0.0
    %3032 = vmatpush2.xpose.msra.mxu0 0.0
    %3033 = vmatprep.subr.mxu0 0.0
    %3034 = vmatpush2.xpose.msra.mxu0 0.0
    %3035 = vmatprep.subr.mxu0 0.0
    %3036 = vmatpush2.xpose.msra.mxu0 0.0
    %3037 = vmatprep.subr.mxu0 0.0
    %3038 = vmatpush2.xpose.msra.mxu0 0.0
    %3039 = vmatprep.subr.mxu0 0.0
    %3040 = vmatpush2.xpose.msra.mxu0 0.0
    %3041 = vmatprep.subr.mxu0 0.0
    %3042 = vmatpush2.xpose.msra.mxu0 0.0
    %3043 = vmatprep.subr.mxu0 0.0
    %3044 = vmatpush2.xpose.msra.mxu0 0.0
    %3045 = vmatprep.subr.mxu0 0.0
    %3046 = vmatpush2.xpose.msra.mxu0 0.0
    %3047 = vmatprep.subr.mxu0 0.0
    %3048 = vmatpush2.xpose.msra.mxu0 0.0
    %3049 = vmatprep.mubr.f32.mxu0 0.0
    %3050 = vmatmul.mubr.f32.gmra.mxu0 %v2981
    %v3051 = vpop.f32.mrf.mxu0
    %v3052 = vadd.f32 0.0, %v3051
    %v3053 = vpop.f32.mrf.mxu0
    %3054 = vdwg.mxu0
    %v3055 = vmul.f32 %v3052, 0.35355338
    %v3056 = vsel %vm487, %v3055, -inf
    %3057 = vmax.xlane.f32.xlu0 %v3056
    %v3058 = vpop.xlane.xlu0 %3057
    %v3059 = vsub.f32 %v3055, %v3058
    %v3060 = vmul.f32 %v3059, 1.442695
    %v3061 = vpow.pop %v3060
    %v3062 = vsel %vm487, %v3061, 0.0
    %3063 = vadd.xlane.f32.xlu0 %v3062
    %v3064 = vpop.xlane.xlu0 %3063
    %v3065 = vrcp.pop %v3064
    %v3066 = vmul.f32 %v3061, %v3065
    %3067 = vrot.lane.b32.xlu0 %v2296, 64
    %v3068 = vpop.permute.xlu0 %3067
    %v3071 = vsel %vm487, %v3066, 0
    %3073 = vmatprep.subr.mxu0 0.0
    %3074 = vmatpush1.msra.mxu0 0.0
    %3075 = vmatprep.subr.mxu0 0.0
    %3076 = vmatpush1.msra.mxu0 0.0
    %3077 = vmatprep.subr.mxu0 0.0
    %3078 = vmatpush1.msra.mxu0 0.0
    %3079 = vmatprep.subr.mxu0 0.0
    %3080 = vmatpush1.msra.mxu0 0.0
    %3081 = vmatprep.subr.mxu0 0.0
    %3082 = vmatpush1.msra.mxu0 0.0
    %3083 = vmatprep.subr.mxu0 0.0
    %3084 = vmatpush1.msra.mxu0 0.0
    %3085 = vmatprep.subr.mxu0 0.0
    %3086 = vmatpush1.msra.mxu0 0.0
    %3087 = vmatprep.subr.mxu0 0.0
    %3088 = vmatpush1.msra.mxu0 0.0
    %3089 = vmatprep.subr.mxu0 0.0
    %3090 = vmatpush1.msra.mxu0 0.0
    %3091 = vmatprep.subr.mxu0 0.0
    %3092 = vmatpush1.msra.mxu0 0.0
    %3093 = vmatprep.subr.mxu0 0.0
    %3094 = vmatpush1.msra.mxu0 0.0
    %3095 = vmatprep.subr.mxu0 0.0
    %3096 = vmatpush1.msra.mxu0 0.0
    %3097 = vmatprep.subr.mxu0 0.0
    %3098 = vmatpush1.msra.mxu0 0.0
    %3099 = vmatprep.subr.mxu0 0.0
    %3100 = vmatpush1.msra.mxu0 0.0
    %3101 = vmatprep.subr.mxu0 0.0
    %3102 = vmatpush1.msra.mxu0 0.0
    %3103 = vmatprep.subr.mxu0 0.0
    %3104 = vmatpush1.msra.mxu0 %v3068
    %3105 = vmatprep.subr.mxu0 0.0
    %3106 = vmatpush2.msra.mxu0 0.0
    %3107 = vmatprep.subr.mxu0 0.0
    %3108 = vmatpush2.msra.mxu0 0.0
    %3109 = vmatprep.subr.mxu0 0.0
    %3110 = vmatpush2.msra.mxu0 0.0
    %3111 = vmatprep.subr.mxu0 0.0
    %3112 = vmatpush2.msra.mxu0 0.0
    %3113 = vmatprep.subr.mxu0 0.0
    %3114 = vmatpush2.msra.mxu0 0.0
    %3115 = vmatprep.subr.mxu0 0.0
    %3116 = vmatpush2.msra.mxu0 0.0
    %3117 = vmatprep.subr.mxu0 0.0
    %3118 = vmatpush2.msra.mxu0 0.0
    %3119 = vmatprep.subr.mxu0 0.0
    %3120 = vmatpush2.msra.mxu0 0.0
    %3121 = vmatprep.subr.mxu0 0.0
    %3122 = vmatpush2.msra.mxu0 0.0
    %3123 = vmatprep.subr.mxu0 0.0
    %3124 = vmatpush2.msra.mxu0 0.0
    %3125 = vmatprep.subr.mxu0 0.0
    %3126 = vmatpush2.msra.mxu0 0.0
    %3127 = vmatprep.subr.mxu0 0.0
    %3128 = vmatpush2.msra.mxu0 0.0
    %3129 = vmatprep.subr.mxu0 0.0
    %3130 = vmatpush2.msra.mxu0 0.0
    %3131 = vmatprep.subr.mxu0 0.0
    %3132 = vmatpush2.msra.mxu0 0.0
    %3133 = vmatprep.subr.mxu0 0.0
    %3134 = vmatpush2.msra.mxu0 0.0
    %3135 = vmatprep.subr.mxu0 0.0
    %3136 = vmatpush2.msra.mxu0 0.0
    %3137 = vmatprep.mubr.f32.mxu0 0.0
    %3138 = vmatmul.mubr.f32.gmra.mxu0 %v3071
    %v3139 = vpop.f32.mrf.mxu0
    %v3140 = vadd.f32 0.0, %v3139
    %v3141 = vpop.f32.mrf.mxu0
    %3142 = vdwg.mxu0
    %3143 = vst.msk [vmem:[#allocation2 + $0x8] sm:$0xff] %vm487, %v3140
    %3144 = vrot.lane.b32.xlu0 %v2296, 120
    %v3145 = vpop.permute.xlu0 %3144
    %3146 = vrot.lane.b32.xlu0 %v2296, 88
    %v3147 = vpop.permute.xlu0 %3146
    %v3148 = vsel %vm487, %v3145, 0
    %v3150 = vsel %vm487, %v3147, 0
    %3152 = vmatprep.subr.mxu0 0.0
    %3153 = vmatpush1.xpose.msra.mxu0 0.0
    %3154 = vmatprep.subr.mxu0 0.0
    %3155 = vmatpush1.xpose.msra.mxu0 0.0
    %3156 = vmatprep.subr.mxu0 0.0
    %3157 = vmatpush1.xpose.msra.mxu0 0.0
    %3158 = vmatprep.subr.mxu0 0.0
    %3159 = vmatpush1.xpose.msra.mxu0 0.0
    %3160 = vmatprep.subr.mxu0 0.0
    %3161 = vmatpush1.xpose.msra.mxu0 0.0
    %3162 = vmatprep.subr.mxu0 0.0
    %3163 = vmatpush1.xpose.msra.mxu0 0.0
    %3164 = vmatprep.subr.mxu0 0.0
    %3165 = vmatpush1.xpose.msra.mxu0 0.0
    %3166 = vmatprep.subr.mxu0 0.0
    %3167 = vmatpush1.xpose.msra.mxu0 0.0
    %3168 = vmatprep.subr.mxu0 0.0
    %3169 = vmatpush1.xpose.msra.mxu0 0.0
    %3170 = vmatprep.subr.mxu0 0.0
    %3171 = vmatpush1.xpose.msra.mxu0 0.0
    %3172 = vmatprep.subr.mxu0 0.0
    %3173 = vmatpush1.xpose.msra.mxu0 0.0
    %3174 = vmatprep.subr.mxu0 0.0
    %3175 = vmatpush1.xpose.msra.mxu0 0.0
    %3176 = vmatprep.subr.mxu0 0.0
    %3177 = vmatpush1.xpose.msra.mxu0 0.0
    %3178 = vmatprep.subr.mxu0 0.0
    %3179 = vmatpush1.xpose.msra.mxu0 0.0
    %3180 = vmatprep.subr.mxu0 0.0
    %3181 = vmatpush1.xpose.msra.mxu0 0.0
    %3182 = vmatprep.subr.mxu0 0.0
    %3183 = vmatpush1.xpose.msra.mxu0 %v3150
    %3184 = vmatprep.subr.mxu0 0.0
    %3185 = vmatpush2.xpose.msra.mxu0 0.0
    %3186 = vmatprep.subr.mxu0 0.0
    %3187 = vmatpush2.xpose.msra.mxu0 0.0
    %3188 = vmatprep.subr.mxu0 0.0
    %3189 = vmatpush2.xpose.msra.mxu0 0.0
    %3190 = vmatprep.subr.mxu0 0.0
    %3191 = vmatpush2.xpose.msra.mxu0 0.0
    %3192 = vmatprep.subr.mxu0 0.0
    %3193 = vmatpush2.xpose.msra.mxu0 0.0
    %3194 = vmatprep.subr.mxu0 0.0
    %3195 = vmatpush2.xpose.msra.mxu0 0.0
    %3196 = vmatprep.subr.mxu0 0.0
    %3197 = vmatpush2.xpose.msra.mxu0 0.0
    %3198 = vmatprep.subr.mxu0 0.0
    %3199 = vmatpush2.xpose.msra.mxu0 0.0
    %3200 = vmatprep.subr.mxu0 0.0
    %3201 = vmatpush2.xpose.msra.mxu0 0.0
    %3202 = vmatprep.subr.mxu0 0.0
    %3203 = vmatpush2.xpose.msra.mxu0 0.0
    %3204 = vmatprep.subr.mxu0 0.0
    %3205 = vmatpush2.xpose.msra.mxu0 0.0
    %3206 = vmatprep.subr.mxu0 0.0
    %3207 = vmatpush2.xpose.msra.mxu0 0.0
    %3208 = vmatprep.subr.mxu0 0.0
    %3209 = vmatpush2.xpose.msra.mxu0 0.0
    %3210 = vmatprep.subr.mxu0 0.0
    %3211 = vmatpush2.xpose.msra.mxu0 0.0
    %3212 = vmatprep.subr.mxu0 0.0
    %3213 = vmatpush2.xpose.msra.mxu0 0.0
    %3214 = vmatprep.subr.mxu0 0.0
    %3215 = vmatpush2.xpose.msra.mxu0 0.0
    %3216 = vmatprep.mubr.f32.mxu0 0.0
    %3217 = vmatmul.mubr.f32.gmra.mxu0 %v3148
    %v3218 = vpop.f32.mrf.mxu0
    %v3219 = vadd.f32 0.0, %v3218
    %v3220 = vpop.f32.mrf.mxu0
    %3221 = vdwg.mxu0
    %v3222 = vmul.f32 %v3219, 0.35355338
    %v3223 = vsel %vm487, %v3222, -inf
    %3224 = vmax.xlane.f32.xlu0 %v3223
    %v3225 = vpop.xlane.xlu0 %3224
    %v3226 = vsub.f32 %v3222, %v3225
    %v3227 = vmul.f32 %v3226, 1.442695
    %v3228 = vpow.pop %v3227
    %v3229 = vsel %vm487, %v3228, 0.0
    %3230 = vadd.xlane.f32.xlu0 %v3229
    %v3231 = vpop.xlane.xlu0 %3230
    %v3232 = vrcp.pop %v3231
    %v3233 = vmul.f32 %v3228, %v3232
    %3234 = vrot.lane.b32.xlu0 %v2296, 56
    %v3235 = vpop.permute.xlu0 %3234
    %v3238 = vsel %vm487, %v3233, 0
    %3240 = vmatprep.subr.mxu0 0.0
    %3241 = vmatpush1.msra.mxu0 0.0
    %3242 = vmatprep.subr.mxu0 0.0
    %3243 = vmatpush1.msra.mxu0 0.0
    %3244 = vmatprep.subr.mxu0 0.0
    %3245 = vmatpush1.msra.mxu0 0.0
    %3246 = vmatprep.subr.mxu0 0.0
    %3247 = vmatpush1.msra.mxu0 0.0
    %3248 = vmatprep.subr.mxu0 0.0
    %3249 = vmatpush1.msra.mxu0 0.0
    %3250 = vmatprep.subr.mxu0 0.0
    %3251 = vmatpush1.msra.mxu0 0.0
    %3252 = vmatprep.subr.mxu0 0.0
    %3253 = vmatpush1.msra.mxu0 0.0
    %3254 = vmatprep.subr.mxu0 0.0
    %3255 = vmatpush1.msra.mxu0 0.0
    %3256 = vmatprep.subr.mxu0 0.0
    %3257 = vmatpush1.msra.mxu0 0.0
    %3258 = vmatprep.subr.mxu0 0.0
    %3259 = vmatpush1.msra.mxu0 0.0
    %3260 = vmatprep.subr.mxu0 0.0
    %3261 = vmatpush1.msra.mxu0 0.0
    %3262 = vmatprep.subr.mxu0 0.0
    %3263 = vmatpush1.msra.mxu0 0.0
    %3264 = vmatprep.subr.mxu0 0.0
    %3265 = vmatpush1.msra.mxu0 0.0
    %3266 = vmatprep.subr.mxu0 0.0
    %3267 = vmatpush1.msra.mxu0 0.0
    %3268 = vmatprep.subr.mxu0 0.0
    %3269 = vmatpush1.msra.mxu0 0.0
    %3270 = vmatprep.subr.mxu0 0.0
    %3271 = vmatpush1.msra.mxu0 %v3235
    %3272 = vmatprep.subr.mxu0 0.0
    %3273 = vmatpush2.msra.mxu0 0.0
    %3274 = vmatprep.subr.mxu0 0.0
    %3275 = vmatpush2.msra.mxu0 0.0
    %3276 = vmatprep.subr.mxu0 0.0
    %3277 = vmatpush2.msra.mxu0 0.0
    %3278 = vmatprep.subr.mxu0 0.0
    %3279 = vmatpush2.msra.mxu0 0.0
    %3280 = vmatprep.subr.mxu0 0.0
    %3281 = vmatpush2.msra.mxu0 0.0
    %3282 = vmatprep.subr.mxu0 0.0
    %3283 = vmatpush2.msra.mxu0 0.0
    %3284 = vmatprep.subr.mxu0 0.0
    %3285 = vmatpush2.msra.mxu0 0.0
    %3286 = vmatprep.subr.mxu0 0.0
    %3287 = vmatpush2.msra.mxu0 0.0
    %3288 = vmatprep.subr.mxu0 0.0
    %3289 = vmatpush2.msra.mxu0 0.0
    %3290 = vmatprep.subr.mxu0 0.0
    %3291 = vmatpush2.msra.mxu0 0.0
    %3292 = vmatprep.subr.mxu0 0.0
    %3293 = vmatpush2.msra.mxu0 0.0
    %3294 = vmatprep.subr.mxu0 0.0
    %3295 = vmatpush2.msra.mxu0 0.0
    %3296 = vmatprep.subr.mxu0 0.0
    %3297 = vmatpush2.msra.mxu0 0.0
    %3298 = vmatprep.subr.mxu0 0.0
    %3299 = vmatpush2.msra.mxu0 0.0
    %3300 = vmatprep.subr.mxu0 0.0
    %3301 = vmatpush2.msra.mxu0 0.0
    %3302 = vmatprep.subr.mxu0 0.0
    %3303 = vmatpush2.msra.mxu0 0.0
    %3304 = vmatprep.mubr.f32.mxu0 0.0
    %3305 = vmatmul.mubr.f32.gmra.mxu0 %v3238
    %v3306 = vpop.f32.mrf.mxu0
    %v3307 = vadd.f32 0.0, %v3306
    %v3308 = vpop.f32.mrf.mxu0
    %3309 = vdwg.mxu0
    %3311 = vrot.lane.b32.xlu0 %v3307, 8
    %v3312 = vpop.permute.xlu0 %3311
    %3314 = vst.msk [vmem:[#allocation2 + $0x8] sm:$0xff] %vm821, %v3312
    %3315 = vrot.lane.b32.xlu0 %v2296, 112
    %v3316 = vpop.permute.xlu0 %3315
    %3317 = vrot.lane.b32.xlu0 %v2296, 80
    %v3318 = vpop.permute.xlu0 %3317
    %v3319 = vsel %vm487, %v3316, 0
    %v3321 = vsel %vm487, %v3318, 0
    %3323 = vmatprep.subr.mxu0 0.0
    %3324 = vmatpush1.xpose.msra.mxu0 0.0
    %3325 = vmatprep.subr.mxu0 0.0
    %3326 = vmatpush1.xpose.msra.mxu0 0.0
    %3327 = vmatprep.subr.mxu0 0.0
    %3328 = vmatpush1.xpose.msra.mxu0 0.0
    %3329 = vmatprep.subr.mxu0 0.0
    %3330 = vmatpush1.xpose.msra.mxu0 0.0
    %3331 = vmatprep.subr.mxu0 0.0
    %3332 = vmatpush1.xpose.msra.mxu0 0.0
    %3333 = vmatprep.subr.mxu0 0.0
    %3334 = vmatpush1.xpose.msra.mxu0 0.0
    %3335 = vmatprep.subr.mxu0 0.0
    %3336 = vmatpush1.xpose.msra.mxu0 0.0
    %3337 = vmatprep.subr.mxu0 0.0
    %3338 = vmatpush1.xpose.msra.mxu0 0.0
    %3339 = vmatprep.subr.mxu0 0.0
    %3340 = vmatpush1.xpose.msra.mxu0 0.0
    %3341 = vmatprep.subr.mxu0 0.0
    %3342 = vmatpush1.xpose.msra.mxu0 0.0
    %3343 = vmatprep.subr.mxu0 0.0
    %3344 = vmatpush1.xpose.msra.mxu0 0.0
    %3345 = vmatprep.subr.mxu0 0.0
    %3346 = vmatpush1.xpose.msra.mxu0 0.0
    %3347 = vmatprep.subr.mxu0 0.0
    %3348 = vmatpush1.xpose.msra.mxu0 0.0
    %3349 = vmatprep.subr.mxu0 0.0
    %3350 = vmatpush1.xpose.msra.mxu0 0.0
    %3351 = vmatprep.subr.mxu0 0.0
    %3352 = vmatpush1.xpose.msra.mxu0 0.0
    %3353 = vmatprep.subr.mxu0 0.0
    %3354 = vmatpush1.xpose.msra.mxu0 %v3321
    %3355 = vmatprep.subr.mxu0 0.0
    %3356 = vmatpush2.xpose.msra.mxu0 0.0
    %3357 = vmatprep.subr.mxu0 0.0
    %3358 = vmatpush2.xpose.msra.mxu0 0.0
    %3359 = vmatprep.subr.mxu0 0.0
    %3360 = vmatpush2.xpose.msra.mxu0 0.0
    %3361 = vmatprep.subr.mxu0 0.0
    %3362 = vmatpush2.xpose.msra.mxu0 0.0
    %3363 = vmatprep.subr.mxu0 0.0
    %3364 = vmatpush2.xpose.msra.mxu0 0.0
    %3365 = vmatprep.subr.mxu0 0.0
    %3366 = vmatpush2.xpose.msra.mxu0 0.0
    %3367 = vmatprep.subr.mxu0 0.0
    %3368 = vmatpush2.xpose.msra.mxu0 0.0
    %3369 = vmatprep.subr.mxu0 0.0
    %3370 = vmatpush2.xpose.msra.mxu0 0.0
    %3371 = vmatprep.subr.mxu0 0.0
    %3372 = vmatpush2.xpose.msra.mxu0 0.0
    %3373 = vmatprep.subr.mxu0 0.0
    %3374 = vmatpush2.xpose.msra.mxu0 0.0
    %3375 = vmatprep.subr.mxu0 0.0
    %3376 = vmatpush2.xpose.msra.mxu0 0.0
    %3377 = vmatprep.subr.mxu0 0.0
    %3378 = vmatpush2.xpose.msra.mxu0 0.0
    %3379 = vmatprep.subr.mxu0 0.0
    %3380 = vmatpush2.xpose.msra.mxu0 0.0
    %3381 = vmatprep.subr.mxu0 0.0
    %3382 = vmatpush2.xpose.msra.mxu0 0.0
    %3383 = vmatprep.subr.mxu0 0.0
    %3384 = vmatpush2.xpose.msra.mxu0 0.0
    %3385 = vmatprep.subr.mxu0 0.0
    %3386 = vmatpush2.xpose.msra.mxu0 0.0
    %3387 = vmatprep.mubr.f32.mxu0 0.0
    %3388 = vmatmul.mubr.f32.gmra.mxu0 %v3319
    %v3389 = vpop.f32.mrf.mxu0
    %v3390 = vadd.f32 0.0, %v3389
    %v3391 = vpop.f32.mrf.mxu0
    %3392 = vdwg.mxu0
    %v3393 = vmul.f32 %v3390, 0.35355338
    %v3394 = vsel %vm487, %v3393, -inf
    %3395 = vmax.xlane.f32.xlu0 %v3394
    %v3396 = vpop.xlane.xlu0 %3395
    %v3397 = vsub.f32 %v3393, %v3396
    %v3398 = vmul.f32 %v3397, 1.442695
    %v3399 = vpow.pop %v3398
    %v3400 = vsel %vm487, %v3399, 0.0
    %3401 = vadd.xlane.f32.xlu0 %v3400
    %v3402 = vpop.xlane.xlu0 %3401
    %v3403 = vrcp.pop %v3402
    %v3404 = vmul.f32 %v3399, %v3403
    %3405 = vrot.lane.b32.xlu0 %v2296, 48
    %v3406 = vpop.permute.xlu0 %3405
    %v3409 = vsel %vm487, %v3404, 0
    %3411 = vmatprep.subr.mxu0 0.0
    %3412 = vmatpush1.msra.mxu0 0.0
    %3413 = vmatprep.subr.mxu0 0.0
    %3414 = vmatpush1.msra.mxu0 0.0
    %3415 = vmatprep.subr.mxu0 0.0
    %3416 = vmatpush1.msra.mxu0 0.0
    %3417 = vmatprep.subr.mxu0 0.0
    %3418 = vmatpush1.msra.mxu0 0.0
    %3419 = vmatprep.subr.mxu0 0.0
    %3420 = vmatpush1.msra.mxu0 0.0
    %3421 = vmatprep.subr.mxu0 0.0
    %3422 = vmatpush1.msra.mxu0 0.0
    %3423 = vmatprep.subr.mxu0 0.0
    %3424 = vmatpush1.msra.mxu0 0.0
    %3425 = vmatprep.subr.mxu0 0.0
    %3426 = vmatpush1.msra.mxu0 0.0
    %3427 = vmatprep.subr.mxu0 0.0
    %3428 = vmatpush1.msra.mxu0 0.0
    %3429 = vmatprep.subr.mxu0 0.0
    %3430 = vmatpush1.msra.mxu0 0.0
    %3431 = vmatprep.subr.mxu0 0.0
    %3432 = vmatpush1.msra.mxu0 0.0
    %3433 = vmatprep.subr.mxu0 0.0
    %3434 = vmatpush1.msra.mxu0 0.0
    %3435 = vmatprep.subr.mxu0 0.0
    %3436 = vmatpush1.msra.mxu0 0.0
    %3437 = vmatprep.subr.mxu0 0.0
    %3438 = vmatpush1.msra.mxu0 0.0
    %3439 = vmatprep.subr.mxu0 0.0
    %3440 = vmatpush1.msra.mxu0 0.0
    %3441 = vmatprep.subr.mxu0 0.0
    %3442 = vmatpush1.msra.mxu0 %v3406
    %3443 = vmatprep.subr.mxu0 0.0
    %3444 = vmatpush2.msra.mxu0 0.0
    %3445 = vmatprep.subr.mxu0 0.0
    %3446 = vmatpush2.msra.mxu0 0.0
    %3447 = vmatprep.subr.mxu0 0.0
    %3448 = vmatpush2.msra.mxu0 0.0
    %3449 = vmatprep.subr.mxu0 0.0
    %3450 = vmatpush2.msra.mxu0 0.0
    %3451 = vmatprep.subr.mxu0 0.0
    %3452 = vmatpush2.msra.mxu0 0.0
    %3453 = vmatprep.subr.mxu0 0.0
    %3454 = vmatpush2.msra.mxu0 0.0
    %3455 = vmatprep.subr.mxu0 0.0
    %3456 = vmatpush2.msra.mxu0 0.0
    %3457 = vmatprep.subr.mxu0 0.0
    %3458 = vmatpush2.msra.mxu0 0.0
    %3459 = vmatprep.subr.mxu0 0.0
    %3460 = vmatpush2.msra.mxu0 0.0
    %3461 = vmatprep.subr.mxu0 0.0
    %3462 = vmatpush2.msra.mxu0 0.0
    %3463 = vmatprep.subr.mxu0 0.0
    %3464 = vmatpush2.msra.mxu0 0.0
    %3465 = vmatprep.subr.mxu0 0.0
    %3466 = vmatpush2.msra.mxu0 0.0
    %3467 = vmatprep.subr.mxu0 0.0
    %3468 = vmatpush2.msra.mxu0 0.0
    %3469 = vmatprep.subr.mxu0 0.0
    %3470 = vmatpush2.msra.mxu0 0.0
    %3471 = vmatprep.subr.mxu0 0.0
    %3472 = vmatpush2.msra.mxu0 0.0
    %3473 = vmatprep.subr.mxu0 0.0
    %3474 = vmatpush2.msra.mxu0 0.0
    %3475 = vmatprep.mubr.f32.mxu0 0.0
    %3476 = vmatmul.mubr.f32.gmra.mxu0 %v3409
    %v3477 = vpop.f32.mrf.mxu0
    %v3478 = vadd.f32 0.0, %v3477
    %v3479 = vpop.f32.mrf.mxu0
    %3480 = vdwg.mxu0
    %3482 = vrot.lane.b32.xlu0 %v3478, 16
    %v3483 = vpop.permute.xlu0 %3482
    %3485 = vst.msk [vmem:[#allocation2 + $0x8] sm:$0xff] %vm993, %v3483
    %3486 = vrot.lane.b32.xlu0 %v2296, 104
    %v3487 = vpop.permute.xlu0 %3486
    %3488 = vrot.lane.b32.xlu0 %v2296, 72
    %v3489 = vpop.permute.xlu0 %3488
    %v3490 = vsel %vm487, %v3487, 0
    %v3492 = vsel %vm487, %v3489, 0
    %3494 = vmatprep.subr.mxu0 0.0
    %3495 = vmatpush1.xpose.msra.mxu0 0.0
    %3496 = vmatprep.subr.mxu0 0.0
    %3497 = vmatpush1.xpose.msra.mxu0 0.0
    %3498 = vmatprep.subr.mxu0 0.0
    %3499 = vmatpush1.xpose.msra.mxu0 0.0
    %3500 = vmatprep.subr.mxu0 0.0
    %3501 = vmatpush1.xpose.msra.mxu0 0.0
    %3502 = vmatprep.subr.mxu0 0.0
    %3503 = vmatpush1.xpose.msra.mxu0 0.0
    %3504 = vmatprep.subr.mxu0 0.0
    %3505 = vmatpush1.xpose.msra.mxu0 0.0
    %3506 = vmatprep.subr.mxu0 0.0
    %3507 = vmatpush1.xpose.msra.mxu0 0.0
    %3508 = vmatprep.subr.mxu0 0.0
    %3509 = vmatpush1.xpose.msra.mxu0 0.0
    %3510 = vmatprep.subr.mxu0 0.0
    %3511 = vmatpush1.xpose.msra.mxu0 0.0
    %3512 = vmatprep.subr.mxu0 0.0
    %3513 = vmatpush1.xpose.msra.mxu0 0.0
    %3514 = vmatprep.subr.mxu0 0.0
    %3515 = vmatpush1.xpose.msra.mxu0 0.0
    %3516 = vmatprep.subr.mxu0 0.0
    %3517 = vmatpush1.xpose.msra.mxu0 0.0
    %3518 = vmatprep.subr.mxu0 0.0
    %3519 = vmatpush1.xpose.msra.mxu0 0.0
    %3520 = vmatprep.subr.mxu0 0.0
    %3521 = vmatpush1.xpose.msra.mxu0 0.0
    %3522 = vmatprep.subr.mxu0 0.0
    %3523 = vmatpush1.xpose.msra.mxu0 0.0
    %3524 = vmatprep.subr.mxu0 0.0
    %3525 = vmatpush1.xpose.msra.mxu0 %v3492
    %3526 = vmatprep.subr.mxu0 0.0
    %3527 = vmatpush2.xpose.msra.mxu0 0.0
    %3528 = vmatprep.subr.mxu0 0.0
    %3529 = vmatpush2.xpose.msra.mxu0 0.0
    %3530 = vmatprep.subr.mxu0 0.0
    %3531 = vmatpush2.xpose.msra.mxu0 0.0
    %3532 = vmatprep.subr.mxu0 0.0
    %3533 = vmatpush2.xpose.msra.mxu0 0.0
    %3534 = vmatprep.subr.mxu0 0.0
    %3535 = vmatpush2.xpose.msra.mxu0 0.0
    %3536 = vmatprep.subr.mxu0 0.0
    %3537 = vmatpush2.xpose.msra.mxu0 0.0
    %3538 = vmatprep.subr.mxu0 0.0
    %3539 = vmatpush2.xpose.msra.mxu0 0.0
    %3540 = vmatprep.subr.mxu0 0.0
    %3541 = vmatpush2.xpose.msra.mxu0 0.0
    %3542 = vmatprep.subr.mxu0 0.0
    %3543 = vmatpush2.xpose.msra.mxu0 0.0
    %3544 = vmatprep.subr.mxu0 0.0
    %3545 = vmatpush2.xpose.msra.mxu0 0.0
    %3546 = vmatprep.subr.mxu0 0.0
    %3547 = vmatpush2.xpose.msra.mxu0 0.0
    %3548 = vmatprep.subr.mxu0 0.0
    %3549 = vmatpush2.xpose.msra.mxu0 0.0
    %3550 = vmatprep.subr.mxu0 0.0
    %3551 = vmatpush2.xpose.msra.mxu0 0.0
    %3552 = vmatprep.subr.mxu0 0.0
    %3553 = vmatpush2.xpose.msra.mxu0 0.0
    %3554 = vmatprep.subr.mxu0 0.0
    %3555 = vmatpush2.xpose.msra.mxu0 0.0
    %3556 = vmatprep.subr.mxu0 0.0
    %3557 = vmatpush2.xpose.msra.mxu0 0.0
    %3558 = vmatprep.mubr.f32.mxu0 0.0
    %3559 = vmatmul.mubr.f32.gmra.mxu0 %v3490
    %v3560 = vpop.f32.mrf.mxu0
    %v3561 = vadd.f32 0.0, %v3560
    %v3562 = vpop.f32.mrf.mxu0
    %3563 = vdwg.mxu0
    %v3564 = vmul.f32 %v3561, 0.35355338
    %v3565 = vsel %vm487, %v3564, -inf
    %3566 = vmax.xlane.f32.xlu0 %v3565
    %v3567 = vpop.xlane.xlu0 %3566
    %v3568 = vsub.f32 %v3564, %v3567
    %v3569 = vmul.f32 %v3568, 1.442695
    %v3570 = vpow.pop %v3569
    %v3571 = vsel %vm487, %v3570, 0.0
    %3572 = vadd.xlane.f32.xlu0 %v3571
    %v3573 = vpop.xlane.xlu0 %3572
    %v3574 = vrcp.pop %v3573
    %v3575 = vmul.f32 %v3570, %v3574
    %3576 = vrot.lane.b32.xlu0 %v2296, 40
    %v3577 = vpop.permute.xlu0 %3576
    %v3580 = vsel %vm487, %v3575, 0
    %3582 = vmatprep.subr.mxu0 0.0
    %3583 = vmatpush1.msra.mxu0 0.0
    %3584 = vmatprep.subr.mxu0 0.0
    %3585 = vmatpush1.msra.mxu0 0.0
    %3586 = vmatprep.subr.mxu0 0.0
    %3587 = vmatpush1.msra.mxu0 0.0
    %3588 = vmatprep.subr.mxu0 0.0
    %3589 = vmatpush1.msra.mxu0 0.0
    %3590 = vmatprep.subr.mxu0 0.0
    %3591 = vmatpush1.msra.mxu0 0.0
    %3592 = vmatprep.subr.mxu0 0.0
    %3593 = vmatpush1.msra.mxu0 0.0
    %3594 = vmatprep.subr.mxu0 0.0
    %3595 = vmatpush1.msra.mxu0 0.0
    %3596 = vmatprep.subr.mxu0 0.0
    %3597 = vmatpush1.msra.mxu0 0.0
    %3598 = vmatprep.subr.mxu0 0.0
    %3599 = vmatpush1.msra.mxu0 0.0
    %3600 = vmatprep.subr.mxu0 0.0
    %3601 = vmatpush1.msra.mxu0 0.0
    %3602 = vmatprep.subr.mxu0 0.0
    %3603 = vmatpush1.msra.mxu0 0.0
    %3604 = vmatprep.subr.mxu0 0.0
    %3605 = vmatpush1.msra.mxu0 0.0
    %3606 = vmatprep.subr.mxu0 0.0
    %3607 = vmatpush1.msra.mxu0 0.0
    %3608 = vmatprep.subr.mxu0 0.0
    %3609 = vmatpush1.msra.mxu0 0.0
    %3610 = vmatprep.subr.mxu0 0.0
    %3611 = vmatpush1.msra.mxu0 0.0
    %3612 = vmatprep.subr.mxu0 0.0
    %3613 = vmatpush1.msra.mxu0 %v3577
    %3614 = vmatprep.subr.mxu0 0.0
    %3615 = vmatpush2.msra.mxu0 0.0
    %3616 = vmatprep.subr.mxu0 0.0
    %3617 = vmatpush2.msra.mxu0 0.0
    %3618 = vmatprep.subr.mxu0 0.0
    %3619 = vmatpush2.msra.mxu0 0.0
    %3620 = vmatprep.subr.mxu0 0.0
    %3621 = vmatpush2.msra.mxu0 0.0
    %3622 = vmatprep.subr.mxu0 0.0
    %3623 = vmatpush2.msra.mxu0 0.0
    %3624 = vmatprep.subr.mxu0 0.0
    %3625 = vmatpush2.msra.mxu0 0.0
    %3626 = vmatprep.subr.mxu0 0.0
    %3627 = vmatpush2.msra.mxu0 0.0
    %3628 = vmatprep.subr.mxu0 0.0
    %3629 = vmatpush2.msra.mxu0 0.0
    %3630 = vmatprep.subr.mxu0 0.0
    %3631 = vmatpush2.msra.mxu0 0.0
    %3632 = vmatprep.subr.mxu0 0.0
    %3633 = vmatpush2.msra.mxu0 0.0
    %3634 = vmatprep.subr.mxu0 0.0
    %3635 = vmatpush2.msra.mxu0 0.0
    %3636 = vmatprep.subr.mxu0 0.0
    %3637 = vmatpush2.msra.mxu0 0.0
    %3638 = vmatprep.subr.mxu0 0.0
    %3639 = vmatpush2.msra.mxu0 0.0
    %3640 = vmatprep.subr.mxu0 0.0
    %3641 = vmatpush2.msra.mxu0 0.0
    %3642 = vmatprep.subr.mxu0 0.0
    %3643 = vmatpush2.msra.mxu0 0.0
    %3644 = vmatprep.subr.mxu0 0.0
    %3645 = vmatpush2.msra.mxu0 0.0
    %3646 = vmatprep.mubr.f32.mxu0 0.0
    %3647 = vmatmul.mubr.f32.gmra.mxu0 %v3580
    %v3648 = vpop.f32.mrf.mxu0
    %v3649 = vadd.f32 0.0, %v3648
    %v3650 = vpop.f32.mrf.mxu0
    %3651 = vdwg.mxu0
    %3653 = vrot.lane.b32.xlu0 %v3649, 24
    %v3654 = vpop.permute.xlu0 %3653
    %3656 = vst.msk [vmem:[#allocation2 + $0x8] sm:$0xff] %vm1165, %v3654
    %v3657 = vld [vmem:[#allocation2] sm:$0xff]
    %v3658 = vld [vmem:[#allocation2 + $0x8] sm:$0xff]
    %v3659 = vld [vmem:[%s14] sm:$0xff]
    %v3660 = vld [vmem:[%s14 + $0x8] sm:$0xff]
    %v3661 = vld [vmem:[%s14 + $0x10] sm:$0xff]
    %v3662 = vld [vmem:[%s14 + $0x18] sm:$0xff]
    %v3663 = vlaneseq
    %v3664 = vshrl.u32 %v3663, 7
    %v3665 = vsub.s32 0, %v3664
    %v3666 = vrot.slane %v2206, %v3665
    %v3668 = vsel %vm167, %v3657, 0
    %v3671 = vsel %vm167, %v3658, 0
    %3673 = vmatprep.subr.mxu0 0.0
    %3674 = vmatpush1.msra.mxu0 0.0
    %3675 = vmatprep.subr.mxu0 0.0
    %3676 = vmatpush1.msra.mxu0 0.0
    %3677 = vmatprep.subr.mxu0 0.0
    %3678 = vmatpush1.msra.mxu0 0.0
    %3679 = vmatprep.subr.mxu0 0.0
    %3680 = vmatpush1.msra.mxu0 0.0
    %3681 = vmatprep.subr.mxu0 0.0
    %3682 = vmatpush1.msra.mxu0 0.0
    %3683 = vmatprep.subr.mxu0 0.0
    %3684 = vmatpush1.msra.mxu0 0.0
    %3685 = vmatprep.subr.mxu0 0.0
    %3686 = vmatpush1.msra.mxu0 0.0
    %3687 = vmatprep.subr.mxu0 0.0
    %3688 = vmatpush1.msra.mxu0 0.0
    %3689 = vmatprep.subr.mxu0 0.0
    %3690 = vmatpush1.msra.mxu0 0.0
    %3691 = vmatprep.subr.mxu0 0.0
    %3692 = vmatpush1.msra.mxu0 0.0
    %3693 = vmatprep.subr.mxu0 0.0
    %3694 = vmatpush1.msra.mxu0 0.0
    %3695 = vmatprep.subr.mxu0 0.0
    %3696 = vmatpush1.msra.mxu0 0.0
    %3697 = vmatprep.subr.mxu0 0.0
    %3698 = vmatpush1.msra.mxu0 %v3662
    %3699 = vmatprep.subr.mxu0 0.0
    %3700 = vmatpush1.msra.mxu0 %v3661
    %3701 = vmatprep.subr.mxu0 0.0
    %3702 = vmatpush1.msra.mxu0 %v3660
    %3703 = vmatprep.subr.mxu0 0.0
    %3704 = vmatpush1.msra.mxu0 %v3659
    %3705 = vmatprep.subr.mxu0 0.0
    %3706 = vmatpush2.msra.mxu0 0.0
    %3707 = vmatprep.subr.mxu0 0.0
    %3708 = vmatpush2.msra.mxu0 0.0
    %3709 = vmatprep.subr.mxu0 0.0
    %3710 = vmatpush2.msra.mxu0 0.0
    %3711 = vmatprep.subr.mxu0 0.0
    %3712 = vmatpush2.msra.mxu0 0.0
    %3713 = vmatprep.subr.mxu0 0.0
    %3714 = vmatpush2.msra.mxu0 0.0
    %3715 = vmatprep.subr.mxu0 0.0
    %3716 = vmatpush2.msra.mxu0 0.0
    %3717 = vmatprep.subr.mxu0 0.0
    %3718 = vmatpush2.msra.mxu0 0.0
    %3719 = vmatprep.subr.mxu0 0.0
    %3720 = vmatpush2.msra.mxu0 0.0
    %3721 = vmatprep.subr.mxu0 0.0
    %3722 = vmatpush2.msra.mxu0 0.0
    %3723 = vmatprep.subr.mxu0 0.0
    %3724 = vmatpush2.msra.mxu0 0.0
    %3725 = vmatprep.subr.mxu0 0.0
    %3726 = vmatpush2.msra.mxu0 0.0
    %3727 = vmatprep.subr.mxu0 0.0
    %3728 = vmatpush2.msra.mxu0 0.0
    %3729 = vmatprep.subr.mxu0 0.0
    %3730 = vmatpush2.msra.mxu0 0.0
    %3731 = vmatprep.subr.mxu0 0.0
    %3732 = vmatpush2.msra.mxu0 0.0
    %3733 = vmatprep.subr.mxu0 0.0
    %3734 = vmatpush2.msra.mxu0 0.0
    %3735 = vmatprep.subr.mxu0 0.0
    %3736 = vmatpush2.msra.mxu0 0.0
    %3737 = vmatprep.mubr.f32.mxu0 0.0
    %3738 = vmatmul.mubr.f32.gmra.mxu0 %v3668
    %v3739 = vpop.f32.mrf.mxu0
    %v3740 = vadd.f32 %v3666, %v3739
    %v3741 = vpop.f32.mrf.mxu0
    %3742 = vmatprep.mubr.f32.mxu0 0.0
    %3743 = vmatmul.mubr.f32.gmra.mxu0 %v3671
    %v3744 = vpop.f32.mrf.mxu0
    %v3745 = vadd.f32 %v3666, %v3744
    %v3746 = vpop.f32.mrf.mxu0
    %3747 = vdwg.mxu0
    %v3748 = vadd.f32 %v2204, %v3740
    %v3749 = vadd.f32 %v2205, %v3745
    %v3750 = vsel %vm167, %v3748, 0.0
    %3751 = vadd.xlane.f32.xlu0 %v3750
    %v3752 = vpop.xlane.xlu0 %3751
    %v3753 = vsel %vm167, %v3749, 0.0
    %3754 = vadd.xlane.f32.xlu0 %v3753
    %v3755 = vpop.xlane.xlu0 %3754
    %v3756 = vmul.f32 %v3752, %v1945
    %v3757 = vmul.f32 %v3755, %v1945
    %v3758 = vsub.f32 %v3748, %v3756
    %v3759 = vsub.f32 %v3749, %v3757
    %v3760 = vmul.f32 %v3758, %v3758
    %v3761 = vmul.f32 %v3759, %v3759
    %v3762 = vsel %vm167, %v3760, 0.0
    %3763 = vadd.xlane.f32.xlu0 %v3762
    %v3764 = vpop.xlane.xlu0 %3763
    %v3765 = vsel %vm167, %v3761, 0.0
    %3766 = vadd.xlane.f32.xlu0 %v3765
    %v3767 = vpop.xlane.xlu0 %3766
    %v3768 = vmul.f32 %v3764, %v1945
    %v3769 = vmul.f32 %v3767, %v1945
    %v3770 = vadd.f32 %v3768, 1e-05
    %v3771 = vadd.f32 %v3769, 1e-05
    %v3772 = vrsqrt.pop %v3770
    %v3773 = vrsqrt.pop %v3771
    %v3774 = vmul.f32 %v3758, %v3772
    %v3775 = vmul.f32 %v3759, %v3773
    %v3776 = vlaneseq
    %v3777 = vshrl.u32 %v3776, 7
    %v3778 = vsub.s32 1, %v3777
    %v3779 = vrot.slane %v2206, %v3778
    %v3780 = vmul.f32 %v3774, %v3779
    %v3781 = vmul.f32 %v3775, %v3779
    %v3782 = vlaneseq
    %v3783 = vshrl.u32 %v3782, 7
    %v3784 = vsub.s32 2, %v3783
    %v3785 = vrot.slane %v2206, %v3784
    %v3786 = vadd.f32 %v3780, %v3785
    %v3787 = vadd.f32 %v3781, %v3785
    %v3788 = vld [vmem:[%s15] sm:$0xff]
    %v3789 = vld [vmem:[%s15 + $0x8] sm:$0xff]
    %v3790 = vld [vmem:[%s15 + $0x10] sm:$0xff]
    %v3791 = vld [vmem:[%s15 + $0x18] sm:$0xff]
    %v3792 = vld [vmem:[%s16] sm:$0x1]
    %v3794 = vlaneseq
    %v3795 = vshrl.u32 %v3794, 7
    %v3796 = vsub.s32 0, %v3795
    %v3797 = vrot.slane %v3792, %v3796
    %v3800 = vsel %vm167, %v3786, 0
    %v3803 = vsel %vm167, %v3787, 0
    %3805 = vmatprep.subr.mxu0 0.0
    %3806 = vmatpush1.msra.mxu0 0.0
    %3807 = vmatprep.subr.mxu0 0.0
    %3808 = vmatpush1.msra.mxu0 0.0
    %3809 = vmatprep.subr.mxu0 0.0
    %3810 = vmatpush1.msra.mxu0 0.0
    %3811 = vmatprep.subr.mxu0 0.0
    %3812 = vmatpush1.msra.mxu0 0.0
    %3813 = vmatprep.subr.mxu0 0.0
    %3814 = vmatpush1.msra.mxu0 0.0
    %3815 = vmatprep.subr.mxu0 0.0
    %3816 = vmatpush1.msra.mxu0 0.0
    %3817 = vmatprep.subr.mxu0 0.0
    %3818 = vmatpush1.msra.mxu0 0.0
    %3819 = vmatprep.subr.mxu0 0.0
    %3820 = vmatpush1.msra.mxu0 0.0
    %3821 = vmatprep.subr.mxu0 0.0
    %3822 = vmatpush1.msra.mxu0 0.0
    %3823 = vmatprep.subr.mxu0 0.0
    %3824 = vmatpush1.msra.mxu0 0.0
    %3825 = vmatprep.subr.mxu0 0.0
    %3826 = vmatpush1.msra.mxu0 0.0
    %3827 = vmatprep.subr.mxu0 0.0
    %3828 = vmatpush1.msra.mxu0 0.0
    %3829 = vmatprep.subr.mxu0 0.0
    %3830 = vmatpush1.msra.mxu0 %v3791
    %3831 = vmatprep.subr.mxu0 0.0
    %3832 = vmatpush1.msra.mxu0 %v3790
    %3833 = vmatprep.subr.mxu0 0.0
    %3834 = vmatpush1.msra.mxu0 %v3789
    %3835 = vmatprep.subr.mxu0 0.0
    %3836 = vmatpush1.msra.mxu0 %v3788
    %3837 = vmatprep.subr.mxu0 0.0
    %3838 = vmatpush2.msra.mxu0 0.0
    %3839 = vmatprep.subr.mxu0 0.0
    %3840 = vmatpush2.msra.mxu0 0.0
    %3841 = vmatprep.subr.mxu0 0.0
    %3842 = vmatpush2.msra.mxu0 0.0
    %3843 = vmatprep.subr.mxu0 0.0
    %3844 = vmatpush2.msra.mxu0 0.0
    %3845 = vmatprep.subr.mxu0 0.0
    %3846 = vmatpush2.msra.mxu0 0.0
    %3847 = vmatprep.subr.mxu0 0.0
    %3848 = vmatpush2.msra.mxu0 0.0
    %3849 = vmatprep.subr.mxu0 0.0
    %3850 = vmatpush2.msra.mxu0 0.0
    %3851 = vmatprep.subr.mxu0 0.0
    %3852 = vmatpush2.msra.mxu0 0.0
    %3853 = vmatprep.subr.mxu0 0.0
    %3854 = vmatpush2.msra.mxu0 0.0
    %3855 = vmatprep.subr.mxu0 0.0
    %3856 = vmatpush2.msra.mxu0 0.0
    %3857 = vmatprep.subr.mxu0 0.0
    %3858 = vmatpush2.msra.mxu0 0.0
    %3859 = vmatprep.subr.mxu0 0.0
    %3860 = vmatpush2.msra.mxu0 0.0
    %3861 = vmatprep.subr.mxu0 0.0
    %3862 = vmatpush2.msra.mxu0 0.0
    %3863 = vmatprep.subr.mxu0 0.0
    %3864 = vmatpush2.msra.mxu0 0.0
    %3865 = vmatprep.subr.mxu0 0.0
    %3866 = vmatpush2.msra.mxu0 0.0
    %3867 = vmatprep.subr.mxu0 0.0
    %3868 = vmatpush2.msra.mxu0 0.0
    %3869 = vmatprep.mubr.f32.mxu0 0.0
    %3870 = vmatmul.mubr.f32.gmra.mxu0 %v3800
    %v3871 = vpop.f32.mrf.mxu0
    %v3872 = vadd.f32 %v3797, %v3871
    %v3873 = vpop.f32.mrf.mxu0
    %3874 = vmatprep.mubr.f32.mxu0 0.0
    %3875 = vmatmul.mubr.f32.gmra.mxu0 %v3803
    %v3876 = vpop.f32.mrf.mxu0
    %v3877 = vadd.f32 %v3797, %v3876
    %v3878 = vpop.f32.mrf.mxu0
    %3879 = vdwg.mxu0
    %v3880 = vmax.f32 %v3872, 0.0
    %v3881 = vmax.f32 %v3877, 0.0
    %v3882 = vld [vmem:[%s17] sm:$0xff]
    %v3883 = vld [vmem:[%s17 + $0x8] sm:$0xff]
    %v3884 = vld [vmem:[%s17 + $0x10] sm:$0xff]
    %v3885 = vld [vmem:[%s17 + $0x18] sm:$0xff]
    %v3886 = vld [vmem:[%s17 + $0x20] sm:$0xff]
    %v3887 = vld [vmem:[%s17 + $0x28] sm:$0xff]
    %v3888 = vld [vmem:[%s17 + $0x30] sm:$0xff]
    %v3889 = vld [vmem:[%s17 + $0x38] sm:$0xff]
    %v3890 = vlaneseq
    %v3891 = vshrl.u32 %v3890, 7
    %v3892 = vsub.s32 3, %v3891
    %v3893 = vrot.slane %v2206, %v3892
    %v3895 = vsel %vm2084, %v3880, 0
    %v3898 = vsel %vm2084, %v3881, 0
    %3900 = vmatprep.subr.mxu0 0.0
    %3901 = vmatpush1.msra.mxu0 0.0
    %3902 = vmatprep.subr.mxu0 0.0
    %3903 = vmatpush1.msra.mxu0 0.0
    %3904 = vmatprep.subr.mxu0 0.0
    %3905 = vmatpush1.msra.mxu0 0.0
    %3906 = vmatprep.subr.mxu0 0.0
    %3907 = vmatpush1.msra.mxu0 0.0
    %3908 = vmatprep.subr.mxu0 0.0
    %3909 = vmatpush1.msra.mxu0 0.0
    %3910 = vmatprep.subr.mxu0 0.0
    %3911 = vmatpush1.msra.mxu0 0.0
    %3912 = vmatprep.subr.mxu0 0.0
    %3913 = vmatpush1.msra.mxu0 0.0
    %3914 = vmatprep.subr.mxu0 0.0
    %3915 = vmatpush1.msra.mxu0 0.0
    %3916 = vmatprep.subr.mxu0 0.0
    %3917 = vmatpush1.msra.mxu0 %v3889
    %3918 = vmatprep.subr.mxu0 0.0
    %3919 = vmatpush1.msra.mxu0 %v3888
    %3920 = vmatprep.subr.mxu0 0.0
    %3921 = vmatpush1.msra.mxu0 %v3887
    %3922 = vmatprep.subr.mxu0 0.0
    %3923 = vmatpush1.msra.mxu0 %v3886
    %3924 = vmatprep.subr.mxu0 0.0
    %3925 = vmatpush1.msra.mxu0 %v3885
    %3926 = vmatprep.subr.mxu0 0.0
    %3927 = vmatpush1.msra.mxu0 %v3884
    %3928 = vmatprep.subr.mxu0 0.0
    %3929 = vmatpush1.msra.mxu0 %v3883
    %3930 = vmatprep.subr.mxu0 0.0
    %3931 = vmatpush1.msra.mxu0 %v3882
    %3932 = vmatprep.subr.mxu0 0.0
    %3933 = vmatpush2.msra.mxu0 0.0
    %3934 = vmatprep.subr.mxu0 0.0
    %3935 = vmatpush2.msra.mxu0 0.0
    %3936 = vmatprep.subr.mxu0 0.0
    %3937 = vmatpush2.msra.mxu0 0.0
    %3938 = vmatprep.subr.mxu0 0.0
    %3939 = vmatpush2.msra.mxu0 0.0
    %3940 = vmatprep.subr.mxu0 0.0
    %3941 = vmatpush2.msra.mxu0 0.0
    %3942 = vmatprep.subr.mxu0 0.0
    %3943 = vmatpush2.msra.mxu0 0.0
    %3944 = vmatprep.subr.mxu0 0.0
    %3945 = vmatpush2.msra.mxu0 0.0
    %3946 = vmatprep.subr.mxu0 0.0
    %3947 = vmatpush2.msra.mxu0 0.0
    %3948 = vmatprep.subr.mxu0 0.0
    %3949 = vmatpush2.msra.mxu0 0.0
    %3950 = vmatprep.subr.mxu0 0.0
    %3951 = vmatpush2.msra.mxu0 0.0
    %3952 = vmatprep.subr.mxu0 0.0
    %3953 = vmatpush2.msra.mxu0 0.0
    %3954 = vmatprep.subr.mxu0 0.0
    %3955 = vmatpush2.msra.mxu0 0.0
    %3956 = vmatprep.subr.mxu0 0.0
    %3957 = vmatpush2.msra.mxu0 0.0
    %3958 = vmatprep.subr.mxu0 0.0
    %3959 = vmatpush2.msra.mxu0 0.0
    %3960 = vmatprep.subr.mxu0 0.0
    %3961 = vmatpush2.msra.mxu0 0.0
    %3962 = vmatprep.subr.mxu0 0.0
    %3963 = vmatpush2.msra.mxu0 0.0
    %3964 = vmatprep.mubr.f32.mxu0 0.0
    %3965 = vmatmul.mubr.f32.gmra.mxu0 %v3895
    %v3966 = vpop.f32.mrf.mxu0
    %v3967 = vadd.f32 %v3893, %v3966
    %v3968 = vpop.f32.mrf.mxu0
    %3969 = vmatprep.mubr.f32.mxu0 0.0
    %3970 = vmatmul.mubr.f32.gmra.mxu0 %v3898
    %v3971 = vpop.f32.mrf.mxu0
    %v3972 = vadd.f32 %v3893, %v3971
    %v3973 = vpop.f32.mrf.mxu0
    %3974 = vdwg.mxu0
    %v3975 = vadd.f32 %v3786, %v3967
    %v3976 = vadd.f32 %v3787, %v3972
    %v3977 = vsel %vm167, %v3975, 0.0
    %3978 = vadd.xlane.f32.xlu0 %v3977
    %v3979 = vpop.xlane.xlu0 %3978
    %v3980 = vsel %vm167, %v3976, 0.0
    %3981 = vadd.xlane.f32.xlu0 %v3980
    %v3982 = vpop.xlane.xlu0 %3981
    %v3983 = vmul.f32 %v3979, %v1945
    %v3984 = vmul.f32 %v3982, %v1945
    %v3985 = vsub.f32 %v3975, %v3983
    %v3986 = vsub.f32 %v3976, %v3984
    %v3987 = vmul.f32 %v3985, %v3985
    %v3988 = vmul.f32 %v3986, %v3986
    %v3989 = vsel %vm167, %v3987, 0.0
    %3990 = vadd.xlane.f32.xlu0 %v3989
    %v3991 = vpop.xlane.xlu0 %3990
    %v3992 = vsel %vm167, %v3988, 0.0
    %3993 = vadd.xlane.f32.xlu0 %v3992
    %v3994 = vpop.xlane.xlu0 %3993
    %v3995 = vmul.f32 %v3991, %v1945
    %v3996 = vmul.f32 %v3994, %v1945
    %v3997 = vadd.f32 %v3995, 1e-05
    %v3998 = vadd.f32 %v3996, 1e-05
    %v3999 = vrsqrt.pop %v3997
    %v4000 = vrsqrt.pop %v3998
    %v4001 = vmul.f32 %v3985, %v3999
    %v4002 = vmul.f32 %v3986, %v4000
    %v4003 = vlaneseq
    %v4004 = vshrl.u32 %v4003, 7
    %v4005 = vsub.s32 4, %v4004
    %v4006 = vrot.slane %v2206, %v4005
    %v4007 = vmul.f32 %v4001, %v4006
    %v4008 = vmul.f32 %v4002, %v4006
    %v4009 = vlaneseq
    %v4010 = vshrl.u32 %v4009, 7
    %v4011 = vsub.s32 5, %v4010
    %v4012 = vrot.slane %v2206, %v4011
    %v4013 = vadd.f32 %v4007, %v4012
    %v4014 = vadd.f32 %v4008, %v4012
    %v4015 = vld [vmem:[#allocation14] sm:$0x7]
    %v4016 = vld [vmem:[%s4] sm:$0xff]
    %v4017 = vld [vmem:[%s4 + $0x8] sm:$0xff]
    %v4018 = vadd.f32 %v4013, %v4016
    %v4019 = vadd.f32 %v4014, %v4017
    %v4020 = vld [vmem:[%s19] sm:$0xff]
    %v4021 = vld [vmem:[%s19 + $0x8] sm:$0xff]
    %v4022 = vld [vmem:[%s19 + $0x10] sm:$0xff]
    %v4023 = vld [vmem:[%s19 + $0x18] sm:$0xff]
    %v4024 = vlaneseq
    %v4025 = vshrl.u32 %v4024, 7
    %v4026 = vsub.s32 0, %v4025
    %v4027 = vrot.slane %v4015, %v4026
    %v4029 = vsel %vm167, %v4018, 0
    %v4032 = vsel %vm167, %v4019, 0
    %4034 = vmatprep.subr.mxu0 0.0
    %4035 = vmatpush1.msra.mxu0 0.0
    %4036 = vmatprep.subr.mxu0 0.0
    %4037 = vmatpush1.msra.mxu0 0.0
    %4038 = vmatprep.subr.mxu0 0.0
    %4039 = vmatpush1.msra.mxu0 0.0
    %4040 = vmatprep.subr.mxu0 0.0
    %4041 = vmatpush1.msra.mxu0 0.0
    %4042 = vmatprep.subr.mxu0 0.0
    %4043 = vmatpush1.msra.mxu0 0.0
    %4044 = vmatprep.subr.mxu0 0.0
    %4045 = vmatpush1.msra.mxu0 0.0
    %4046 = vmatprep.subr.mxu0 0.0
    %4047 = vmatpush1.msra.mxu0 0.0
    %4048 = vmatprep.subr.mxu0 0.0
    %4049 = vmatpush1.msra.mxu0 0.0
    %4050 = vmatprep.subr.mxu0 0.0
    %4051 = vmatpush1.msra.mxu0 0.0
    %4052 = vmatprep.subr.mxu0 0.0
    %4053 = vmatpush1.msra.mxu0 0.0
    %4054 = vmatprep.subr.mxu0 0.0
    %4055 = vmatpush1.msra.mxu0 0.0
    %4056 = vmatprep.subr.mxu0 0.0
    %4057 = vmatpush1.msra.mxu0 0.0
    %4058 = vmatprep.subr.mxu0 0.0
    %4059 = vmatpush1.msra.mxu0 %v4023
    %4060 = vmatprep.subr.mxu0 0.0
    %4061 = vmatpush1.msra.mxu0 %v4022
    %4062 = vmatprep.subr.mxu0 0.0
    %4063 = vmatpush1.msra.mxu0 %v4021
    %4064 = vmatprep.subr.mxu0 0.0
    %4065 = vmatpush1.msra.mxu0 %v4020
    %4066 = vmatprep.subr.mxu0 0.0
    %4067 = vmatpush2.msra.mxu0 0.0
    %4068 = vmatprep.subr.mxu0 0.0
    %4069 = vmatpush2.msra.mxu0 0.0
    %4070 = vmatprep.subr.mxu0 0.0
    %4071 = vmatpush2.msra.mxu0 0.0
    %4072 = vmatprep.subr.mxu0 0.0
    %4073 = vmatpush2.msra.mxu0 0.0
    %4074 = vmatprep.subr.mxu0 0.0
    %4075 = vmatpush2.msra.mxu0 0.0
    %4076 = vmatprep.subr.mxu0 0.0
    %4077 = vmatpush2.msra.mxu0 0.0
    %4078 = vmatprep.subr.mxu0 0.0
    %4079 = vmatpush2.msra.mxu0 0.0
    %4080 = vmatprep.subr.mxu0 0.0
    %4081 = vmatpush2.msra.mxu0 0.0
    %4082 = vmatprep.subr.mxu0 0.0
    %4083 = vmatpush2.msra.mxu0 0.0
    %4084 = vmatprep.subr.mxu0 0.0
    %4085 = vmatpush2.msra.mxu0 0.0
    %4086 = vmatprep.subr.mxu0 0.0
    %4087 = vmatpush2.msra.mxu0 0.0
    %4088 = vmatprep.subr.mxu0 0.0
    %4089 = vmatpush2.msra.mxu0 0.0
    %4090 = vmatprep.subr.mxu0 0.0
    %4091 = vmatpush2.msra.mxu0 0.0
    %4092 = vmatprep.subr.mxu0 0.0
    %4093 = vmatpush2.msra.mxu0 0.0
    %4094 = vmatprep.subr.mxu0 0.0
    %4095 = vmatpush2.msra.mxu0 0.0
    %4096 = vmatprep.subr.mxu0 0.0
    %4097 = vmatpush2.msra.mxu0 0.0
    %4098 = vmatprep.mubr.f32.mxu0 0.0
    %4099 = vmatmul.mubr.f32.gmra.mxu0 %v4029
    %v4100 = vpop.f32.mrf.mxu0
    %v4101 = vadd.f32 %v4027, %v4100
    %v4102 = vpop.f32.mrf.mxu0
    %4103 = vmatprep.mubr.f32.mxu0 0.0
    %4104 = vmatmul.mubr.f32.gmra.mxu0 %v4032
    %v4105 = vpop.f32.mrf.mxu0
    %v4106 = vadd.f32 %v4027, %v4105
    %v4107 = vpop.f32.mrf.mxu0
    %4108 = vdwg.mxu0
    %v4109 = vmul.f32 %v4101, 0.5
    %v4110 = vmul.f32 %v4106, 0.5
    %v4111 = vmul.f32 %v4101, 0.70710677
    %v4112 = vmul.f32 %v4106, 0.70710677
    %v4113 = verf.f32.pop %v4111
    %v4114 = verf.f32.pop %v4112
    %v4115 = vadd.f32 %v4113, 1.0
    %v4116 = vadd.f32 %v4114, 1.0
    %v4117 = vmul.f32 %v4109, %v4115
    %v4118 = vmul.f32 %v4110, %v4116
    %v4119 = vsel %vm167, %v4117, 0.0
    %4120 = vadd.xlane.f32.xlu0 %v4119
    %v4121 = vpop.xlane.xlu0 %4120
    %v4122 = vsel %vm167, %v4118, 0.0
    %4123 = vadd.xlane.f32.xlu0 %v4122
    %v4124 = vpop.xlane.xlu0 %4123
    %v4125 = vmul.f32 %v4121, %v1945
    %v4126 = vmul.f32 %v4124, %v1945
    %v4127 = vsub.f32 %v4117, %v4125
    %v4128 = vsub.f32 %v4118, %v4126
    %v4129 = vmul.f32 %v4127, %v4127
    %v4130 = vmul.f32 %v4128, %v4128
    %v4131 = vsel %vm167, %v4129, 0.0
    %4132 = vadd.xlane.f32.xlu0 %v4131
    %v4133 = vpop.xlane.xlu0 %4132
    %v4134 = vsel %vm167, %v4130, 0.0
    %4135 = vadd.xlane.f32.xlu0 %v4134
    %v4136 = vpop.xlane.xlu0 %4135
    %v4137 = vmul.f32 %v4133, %v1945
    %v4138 = vmul.f32 %v4136, %v1945
    %v4139 = vadd.f32 %v4137, 1e-05
    %v4140 = vadd.f32 %v4138, 1e-05
    %v4141 = vrsqrt.pop %v4139
    %v4142 = vrsqrt.pop %v4140
    %v4143 = vmul.f32 %v4127, %v4141
    %v4144 = vmul.f32 %v4128, %v4142
    %v4145 = vlaneseq
    %v4146 = vshrl.u32 %v4145, 7
    %v4147 = vsub.s32 1, %v4146
    %v4148 = vrot.slane %v4015, %v4147
    %v4149 = vmul.f32 %v4143, %v4148
    %v4150 = vmul.f32 %v4144, %v4148
    %v4151 = vlaneseq
    %v4152 = vshrl.u32 %v4151, 7
    %v4153 = vsub.s32 2, %v4152
    %v4154 = vrot.slane %v4015, %v4153
    %v4155 = vadd.f32 %v4149, %v4154
    %v4156 = vadd.f32 %v4150, %v4154
    %v4157 = vld [vmem:[%s20] sm:$0xff]
    %v4158 = vld [vmem:[%s20 + $0x8] sm:$0xff]
    %v4159 = vld [vmem:[%s20 + $0x10] sm:$0xff]
    %v4160 = vld [vmem:[%s20 + $0x18] sm:$0xff]
    %v4161 = vld [vmem:[#allocation12] sm:$0x1]
    %v4163 = vlaneseq
    %v4164 = vshrl.u32 %v4163, 7
    %v4165 = vsub.s32 0, %v4164
    %v4166 = vrot.slane %v4161, %v4165
    %v4169 = vsel %vm167, %v4155, 0
    %v4172 = vsel %vm167, %v4156, 0
    %4174 = vmatprep.subr.mxu0 0.0
    %4175 = vmatpush1.msra.mxu0 0.0
    %4176 = vmatprep.subr.mxu0 0.0
    %4177 = vmatpush1.msra.mxu0 0.0
    %4178 = vmatprep.subr.mxu0 0.0
    %4179 = vmatpush1.msra.mxu0 0.0
    %4180 = vmatprep.subr.mxu0 0.0
    %4181 = vmatpush1.msra.mxu0 0.0
    %4182 = vmatprep.subr.mxu0 0.0
    %4183 = vmatpush1.msra.mxu0 0.0
    %4184 = vmatprep.subr.mxu0 0.0
    %4185 = vmatpush1.msra.mxu0 0.0
    %4186 = vmatprep.subr.mxu0 0.0
    %4187 = vmatpush1.msra.mxu0 0.0
    %4188 = vmatprep.subr.mxu0 0.0
    %4189 = vmatpush1.msra.mxu0 0.0
    %4190 = vmatprep.subr.mxu0 0.0
    %4191 = vmatpush1.msra.mxu0 0.0
    %4192 = vmatprep.subr.mxu0 0.0
    %4193 = vmatpush1.msra.mxu0 0.0
    %4194 = vmatprep.subr.mxu0 0.0
    %4195 = vmatpush1.msra.mxu0 0.0
    %4196 = vmatprep.subr.mxu0 0.0
    %4197 = vmatpush1.msra.mxu0 0.0
    %4198 = vmatprep.subr.mxu0 0.0
    %4199 = vmatpush1.msra.mxu0 %v4160
    %4200 = vmatprep.subr.mxu0 0.0
    %4201 = vmatpush1.msra.mxu0 %v4159
    %4202 = vmatprep.subr.mxu0 0.0
    %4203 = vmatpush1.msra.mxu0 %v4158
    %4204 = vmatprep.subr.mxu0 0.0
    %4205 = vmatpush1.msra.mxu0 %v4157
    %4206 = vmatprep.subr.mxu0 0.0
    %4207 = vmatpush2.msra.mxu0 0.0
    %4208 = vmatprep.subr.mxu0 0.0
    %4209 = vmatpush2.msra.mxu0 0.0
    %4210 = vmatprep.subr.mxu0 0.0
    %4211 = vmatpush2.msra.mxu0 0.0
    %4212 = vmatprep.subr.mxu0 0.0
    %4213 = vmatpush2.msra.mxu0 0.0
    %4214 = vmatprep.subr.mxu0 0.0
    %4215 = vmatpush2.msra.mxu0 0.0
    %4216 = vmatprep.subr.mxu0 0.0
    %4217 = vmatpush2.msra.mxu0 0.0
    %4218 = vmatprep.subr.mxu0 0.0
    %4219 = vmatpush2.msra.mxu0 0.0
    %4220 = vmatprep.subr.mxu0 0.0
    %4221 = vmatpush2.msra.mxu0 0.0
    %4222 = vmatprep.subr.mxu0 0.0
    %4223 = vmatpush2.msra.mxu0 0.0
    %4224 = vmatprep.subr.mxu0 0.0
    %4225 = vmatpush2.msra.mxu0 0.0
    %4226 = vmatprep.subr.mxu0 0.0
    %4227 = vmatpush2.msra.mxu0 0.0
    %4228 = vmatprep.subr.mxu0 0.0
    %4229 = vmatpush2.msra.mxu0 0.0
    %4230 = vmatprep.subr.mxu0 0.0
    %4231 = vmatpush2.msra.mxu0 0.0
    %4232 = vmatprep.subr.mxu0 0.0
    %4233 = vmatpush2.msra.mxu0 0.0
    %4234 = vmatprep.subr.mxu0 0.0
    %4235 = vmatpush2.msra.mxu0 0.0
    %4236 = vmatprep.subr.mxu0 0.0
    %4237 = vmatpush2.msra.mxu0 0.0
    %4238 = vmatprep.mubr.f32.mxu0 0.0
    %4239 = vmatmul.mubr.f32.gmra.mxu0 %v4169
    %v4240 = vpop.f32.mrf.mxu0
    %v4241 = vadd.f32 %v4166, %v4240
    %v4242 = vpop.f32.mrf.mxu0
    %4243 = vmatprep.mubr.f32.mxu0 0.0
    %4244 = vmatmul.mubr.f32.gmra.mxu0 %v4172
    %v4245 = vpop.f32.mrf.mxu0
    %v4246 = vadd.f32 %v4166, %v4245
    %v4247 = vpop.f32.mrf.mxu0
    %4248 = vdwg.mxu0
    %v4249 = vsel %vm259, %v4241, -inf
    %4250 = vmax.xlane.f32.xlu0 %v4249
    %v4251 = vpop.xlane.xlu0 %4250
    %v4252 = vsel %vm259, %v4246, -inf
    %4253 = vmax.xlane.f32.xlu0 %v4252
    %v4254 = vpop.xlane.xlu0 %4253
    %v4255 = vsub.f32 %v4241, %v4251
    %v4256 = vsub.f32 %v4246, %v4254
    %v4257 = vmul.f32 %v4255, 1.442695
    %v4258 = vpow.pop %v4257
    %v4259 = vmul.f32 %v4256, 1.442695
    %v4260 = vpow.pop %v4259
    %v4261 = vsel %vm259, %v4258, 0.0
    %4262 = vadd.xlane.f32.xlu0 %v4261
    %v4263 = vpop.xlane.xlu0 %4262
    %v4264 = vsel %vm259, %v4260, 0.0
    %4265 = vadd.xlane.f32.xlu0 %v4264
    %v4266 = vpop.xlane.xlu0 %4265
    %v4267 = vlog2.pop %v4263
    %v4268 = vmul.f32 %v4267, 0.6931472
    %v4269 = vlog2.pop %v4266
    %v4270 = vmul.f32 %v4269, 0.6931472
    %v4271 = vadd.f32 %v4268, %v4251
    %v4272 = vadd.f32 %v4270, %v4254
    %v4273 = vsub.f32 %v4241, %v4271
    %v4274 = vsub.f32 %v4246, %v4272
    %4275 = vst.msk [vmem:[#allocation15] sm:$0xff] %vm259, %v4273
    %4276 = vst.msk [vmem:[#allocation15 + $0x8] sm:$0xff] %vm259, %v4274
    // Predicated region
    $region122: #{kmeans_ctc_asr_forward.1} parent=1 // pred_check
      _
    $region123: #{kmeans_ctc_asr_forward.1} parent=1 // pred_check_branch
      %4278 = sbr.rel (0) target = $region125
    $region124: #{kmeans_ctc_asr_forward.1} parent=1 // pred_region
      %s4280 = ssub.s32 256, 256
      %4281 = vsyncadd [#allocation5], %s4280
      %s4282 = sshll.u32 [#allocation15], 4
      %s4283 = int_to_ptr.vmem [resolvable:$true] %s4282
      %4288 = dma.vmem_to_hbm [thread:$0]  %s4283, 256, %s23, [#allocation5], 128, 128, 8
    $region125: #{kmeans_ctc_asr_forward.1} parent=1 // pred_fallthru
      _
    // Predicated region
    $region126: #{kmeans_ctc_asr_forward.1} parent=1 // pred_check
      _
    $region127: #{kmeans_ctc_asr_forward.1} parent=1 // pred_check_branch
      %4290 = sbr.rel (0) target = $region129
    $region128: #{kmeans_ctc_asr_forward.1} parent=1 // pred_region
      %4291 = dma.done [#allocation5], 256
    $region129: #{kmeans_ctc_asr_forward.1} parent=1 // pred_fallthru
      _
    %4292 = vsyncpa [#allocation4], 1
    %4293 = vsyncpa [#allocation7], 1
    %4294 = vsyncpa [#allocation10], 1
    %4295 = vsyncpa [#allocation13], 1
    %4296 = vsyncpa [#allocation5], 1

</llo_original>
